<compile_context>
chip_gen: v6e
topology: v6e:2x2x1
jax: 0.10.0
libtpu: 0.0.40
codegen_flags: <defaults>
</compile_context>

<pallas_src>
import functools

import jax
import jax.numpy as jnp
from jax.experimental import pallas as pl
from jax.experimental.pallas import tpu as pltpu


# ----------------------------- Pallas kernel --------------------------------
def _ptnet_kernel(x_ref, m_ref, y_ref,
                  wv_ref, wt_ref, wout_ref, bout_ref,
                  out_ref):
    """One grid step = one node-tile of one batch element.

    Layout: activations are (features, nodes) with the node axis on the
    128-wide lane axis -> lane-dense DMAs, matmuls and an unmasked output
    store.  The date-mark embeddings (m_ref / y_ref) are precomputed in XLA
    (node independent), so the kernel is just three bf16 MXU matmuls with f32
    accumulation plus two GELUs.
    """
    x = x_ref[0]            # (L, TN)    bf16 node value series, nodes on lanes
    m_col = m_ref[0]        # (L*D, 1)   f32 input-mark embedding (+ bias)
    y_col = y_ref[0]        # (P*D, 1)   f32 future-mark embedding (+ bias)

    # value embedding + GELU for all nodes at once:  (L*D, L) @ (L, TN)
    h = jnp.dot(wv_ref[...], x, preferred_element_type=jnp.float32) + m_col
    h = jax.nn.gelu(h)                                           # (L*D, TN) f32

    # temporal mixing inp_len -> pred_len (block-diagonal over D):
    #   (P*D, L*D) @ (L*D, TN)
    ht = jnp.dot(wt_ref[...], h.astype(jnp.bfloat16),
                 preferred_element_type=jnp.float32)             # (P*D, TN)

    # decoder conditioned on the future date marks
    dec = jax.nn.gelu(ht + y_col)                                # (P*D, TN)

    # output head:  (P*c_out, P*D) @ (P*D, TN)  -> lane-dense store
    out = jnp.dot(wout_ref[...], dec.astype(jnp.bfloat16),
                  preferred_element_type=jnp.float32)
    out_ref[0] = out + bout_ref[...]                             # (P*c_out, TN)


# ----------------------------- parameters -----------------------------------
def make_params(configs, key):
    """Raw (reference) parameters of the stand-in Model."""
    D = configs["d_model"]
    c_date = configs["c_date"]
    c_in = configs["c_in"]
    c_out = configs["c_out"]
    L = configs["inp_len"]
    P = configs["pred_len"]
    F = c_in + c_date

    ks = jax.random.split(key, 6)
    scale = 0.1
    return {
        "W_emb": scale * jax.random.normal(ks[0], (F, D), jnp.float32),
        "b_emb": jnp.zeros((1, D), jnp.float32),
        "W_time": scale * jax.random.normal(ks[1], (P, L), jnp.float32),
        "W_ymark": scale * jax.random.normal(ks[2], (c_date, D), jnp.float32),
        "b_ymark": jnp.zeros((1, D), jnp.float32),
        "W_out": scale * jax.random.normal(ks[3], (D, c_out), jnp.float32),
        "b_out": jnp.zeros((1, c_out), jnp.float32),
    }


def pack_kernel_weights(params, configs):
    """Fold the per-node layers into block-diagonal, pre-transposed bf16 matrices.

    One-time weight preprocessing; the kernel then only needs plain 2-D MXU
    matmuls in a (features, nodes) layout.  The node-independent date-mark
    weights are kept in f32 for the hoisted XLA mark-embedding path.
    """
    L = configs["inp_len"]
    P = configs["pred_len"]
    D = configs["d_model"]
    c_in = configs["c_in"]
    c_out = configs["c_out"]
    assert c_in == 1, "seq_x.size(2) == 1 implies a single value channel"

    W_emb = params["W_emb"]          # (c_in + c_date, D)
    w_val = W_emb[0]                 # (D,)       value-channel embedding
    W_mark = W_emb[c_in:]            # (c_date, D)

    eyeL = jnp.eye(L, dtype=jnp.float32)
    eyeP = jnp.eye(P, dtype=jnp.float32)
    eyeD = jnp.eye(D, dtype=jnp.float32)

    # (L*D, L):   [l*D+d, k]       = (l==k) * w_val[d]
    WvT = jnp.einsum("lk,d->ldk", eyeL, w_val).reshape(L * D, L)
    # (P*D, L*D): [p*D+d, l*D+e]   = W_time[p, l] * (d==e)
    WtT = jnp.einsum("pl,de->pdle", params["W_time"], eyeD).reshape(P * D, L * D)
    # (P*c_out, P*D): [p*c_out+c, q*D+d] = (p==q) * W_out[d, c]
    WoutT = jnp.einsum("pq,dc->pcqd", eyeP, params["W_out"]).reshape(P * c_out, P * D)
    b_out = jnp.tile(params["b_out"], (P, 1)).reshape(P * c_out, 1)

    # Size gate: the dense block-diag temporal mix does D x the mathematically
    # required MACs and its bf16 footprint is P*L*D^2*2 bytes.
    wt_bytes = P * D * L * D * 2
    assert D <= 128 and wt_bytes <= (32 << 20), (
        "block-diagonal temporal-mix weight too large for VMEM "
        f"(d_model={D}, bytes={wt_bytes}); use the skinny (P,L)@(L,D*TN) form")

    return {
        # bf16 MXU operands (f32 accumulation happens in-kernel)
        "WvT": WvT.astype(jnp.bfloat16),
        "WtT": WtT.astype(jnp.bfloat16),
        "WoutT": WoutT.astype(jnp.bfloat16),
        "b_out": b_out,                              # f32
        # f32 weights for the hoisted (node-independent) date-mark path
        "W_mark": W_mark,
        "b_emb": params["b_emb"][0],
        "W_ymark": params["W_ymark"],
        "b_ymark": params["b_ymark"][0],
    }


# ----------------------------- tiling / sizing -------------------------------
def _node_tiling(n_nodes):
    """Node tile width TN (multiple of 128 -> lane-dense) and padded node count."""
    n_pad = ((n_nodes + 127) // 128) * 128
    if n_pad <= 1024:
        return n_pad, n_pad
    tn = 512
    return tn, ((n_nodes + tn - 1) // tn) * tn


def _padded_bytes(shape, dtype):
    """VMEM footprint of a 2-D-trailing block, padded to the native tile."""
    itemsize = jnp.dtype(dtype).itemsize
    sub = {4: 8, 2: 16, 1: 32}.get(itemsize, 8)
    rows = -(-shape[-2] // sub) * sub
    cols = -(-shape[-1] // 128) * 128
    lead = 1
    for s in shape[:-2]:
        lead *= s
    return lead * rows * cols * itemsize


def _vmem_limit_bytes(L, D, P, c_out, tn):
    LD, PD, PCo = L * D, P * D, P * c_out
    est = 0
    # per-step inputs / outputs (double buffered by the pipeline)
    est += 2 * _padded_bytes((L, tn), jnp.bfloat16)
    est += 2 * _padded_bytes((LD, 1), jnp.float32)
    est += 2 * _padded_bytes((PD, 1), jnp.float32)
    est += 2 * _padded_bytes((PCo, tn), jnp.float32)
    # weights (assume worst case: double buffered)
    est += 2 * (_padded_bytes((LD, L), jnp.bfloat16)
                + _padded_bytes((PD, LD), jnp.bfloat16)
                + _padded_bytes((PCo, PD), jnp.bfloat16)
                + _padded_bytes((PCo, 1), jnp.float32))
    # live activations (h / ht / dec)
    est += (LD + 2 * PD) * tn * 4
    return int(min(max(2 * est, 16 << 20), 64 << 20))


def _cost_estimate(B, L, D, P, c_out, n_pad, weight_bytes):
    flops = 2 * B * n_pad * (L * D * L + (P * D) * (L * D) + (P * c_out) * (P * D))
    transcendentals = B * n_pad * (L * D + P * D)
    bytes_accessed = (B * L * n_pad * 2                 # bf16 x
                      + B * (L * D + P * D) * 4          # mark columns
                      + B * P * c_out * n_pad * 4        # output
                      + weight_bytes)
    return pl.CostEstimate(flops=int(flops),
                           transcendentals=int(transcendentals),
                           bytes_accessed=int(bytes_accessed))


# ----------------------------- fused runner ----------------------------------
@functools.partial(jax.jit, static_argnames=("tn", "n_pad", "buffered_weights"))
def _run_model(x, seq_x_mark, seq_y_mark, kw, *, tn, n_pad, buffered_weights):
    # x:          (B, L, N) f32 node values, nodes last (lane axis)
    # seq_x_mark: (B, L, c_date)   seq_y_mark: (B, P, c_date)
    B, L, N = x.shape
    P = seq_y_mark.shape[1]
    D = kw["W_mark"].shape[1]
    c_out = kw["b_out"].shape[0] // P
    LD, PD, PCo = L * D, P * D, P * c_out

    # --- hoisted, node-independent date-mark embeddings (plain XLA) ---------
    m_col = (seq_x_mark @ kw["W_mark"] + kw["b_emb"]).reshape(B, LD, 1)
    y_col = (seq_y_mark @ kw["W_ymark"] + kw["b_ymark"]).reshape(B, PD, 1)

    # lane-dense bf16 value input (pad node axis to a 128 multiple)
    if n_pad != N:
        x = jnp.pad(x, ((0, 0), (0, 0), (0, n_pad - N)))
    x = x.astype(jnp.bfloat16)

    grid = (B, n_pad // tn)

    # weights never change block index -> single buffer when supported
    wkw = dict(pipeline_mode=pl.Buffered(1)) if buffered_weights else {}

    in_specs = [
        pl.BlockSpec((1, L, tn), lambda b, j: (b, 0, j)),
        pl.BlockSpec((1, LD, 1), lambda b, j: (b, 0, 0)),
        pl.BlockSpec((1, PD, 1), lambda b, j: (b, 0, 0)),
        pl.BlockSpec((LD, L), lambda b, j: (0, 0), **wkw),
        pl.BlockSpec((PD, LD), lambda b, j: (0, 0), **wkw),
        pl.BlockSpec((PCo, PD), lambda b, j: (0, 0), **wkw),
        pl.BlockSpec((PCo, 1), lambda b, j: (0, 0), **wkw),
    ]

    weight_bytes = (kw["WvT"].size + kw["WtT"].size + kw["WoutT"].size) * 2 \
        + kw["b_out"].size * 4

    return pl.pallas_call(
        _ptnet_kernel,
        out_shape=jax.ShapeDtypeStruct((B, PCo, n_pad), jnp.float32),
        grid=grid,
        in_specs=in_specs,
        out_specs=pl.BlockSpec((1, PCo, tn), lambda b, j: (b, 0, j)),
        compiler_params=pltpu.CompilerParams(
            dimension_semantics=("parallel", "parallel"),
            vmem_limit_bytes=_vmem_limit_bytes(L, D, P, c_out, tn)),
        cost_estimate=_cost_estimate(B, L, D, P, c_out, n_pad, weight_bytes),
    )(x, m_col, y_col, kw["WvT"], kw["WtT"], kw["WoutT"], kw["b_out"])


# ----------------------------- wrapper ("Model") ----------------------------
class CatPtnetAPI:
    """JAX/Pallas equivalent of cat_ptnet_api (forward only)."""

    def __init__(self, configs, graph_generator=None, fixed_adjs=None, key=None):
        model_configs = self.load_configs(configs)
        self.configs = model_configs
        self.adjs = fixed_adjs
        self.with_GraphGen = graph_generator is not None
        # TODO(synk): graph_generator / fixed adjacency path is unused in the
        # reference forward (adjs=None is passed to the model), so it is not
        # lowered to Pallas here.
        # TODO(synk): dropout from configs is ignored (inference-only forward).
        if key is None:
            key = jax.random.PRNGKey(0)
        self.params = make_params(model_configs, key)
        self.kernel_weights = pack_kernel_weights(self.params, model_configs)
        self._buffered_ok = None   # lazily probed: pipeline_mode support

    @staticmethod
    def load_configs(configs):
        model_configs = dict(configs["model"])
        model_configs["c_date"] = configs["dataset"]["c_date"]
        model_configs["n_nodes"] = configs["dataset"]["n_nodes"]
        model_configs["c_in"] = configs["envs"]["c_in"]
        model_configs["c_out"] = configs["envs"]["c_out"]
        model_configs["device"] = configs["envs"]["device"]
        model_configs["inp_len"] = configs["envs"]["inp_len"]
        model_configs["pred_len"] = configs["envs"]["pred_len"]
        model_configs["dropout"] = configs["envs"]["dropout"]
        return model_configs

    def forward(self, seq_x, seq_x_mark, seq_y_mark, **args):
        # seq_x:      (B, inp_len, 1, n_nodes)
        # seq_x_mark: (B, inp_len, c_date)
        # seq_y_mark: (B, pred_len, c_date)
        assert seq_x.shape[2] == 1
        B, L, _, N = seq_x.shape
        P = seq_y_mark.shape[1]
        c_out = self.configs["c_out"]

        seq_x = jnp.asarray(seq_x, jnp.float32)
        seq_x_mark = jnp.asarray(seq_x_mark, jnp.float32)
        seq_y_mark = jnp.asarray(seq_y_mark, jnp.float32)

        tn, n_pad = _node_tiling(N)
        x = seq_x[:, :, 0, :]                          # (B, L, N), layout only

        if self._buffered_ok is None:
            try:
                out = _run_model(x, seq_x_mark, seq_y_mark, self.kernel_weights,
                                 tn=tn, n_pad=n_pad, buffered_weights=True)
                out = jax.block_until_ready(out)
                self._buffered_ok = True
            except Exception:
                # this Pallas build does not accept pipeline_mode on BlockSpec
                self._buffered_ok = False
                out = _run_model(x, seq_x_mark, seq_y_mark, self.kernel_weights,
                                 tn=tn, n_pad=n_pad, buffered_weights=False)
        else:
            out = _run_model(x, seq_x_mark, seq_y_mark, self.kernel_weights,
                             tn=tn, n_pad=n_pad, buffered_weights=self._buffered_ok)

        out = out[:, :, :N].reshape(B, P, c_out, N)    # free reshape, drop pad
        return out, 0.0

    __call__ = forward


# ----------------------------- pure-JAX reference ---------------------------
def _reference_forward(params, seq_x, seq_x_mark, seq_y_mark):
    """Same math, plain XLA f32, for a numerical sanity check."""
    x = seq_x[:, :, 0, :].astype(jnp.float32)                    # (B, L, N)
    W_emb = params["W_emb"]
    w_val = W_emb[0]                                             # (D,)
    W_mark = W_emb[1:]                                           # (c_date, D)
    mark_emb = seq_x_mark.astype(jnp.float32) @ W_mark           # (B, L, D)
    pre = (x[..., None] * w_val + mark_emb[:, :, None, :]
           + params["b_emb"][0])                                 # (B, L, N, D)
    h = jax.nn.gelu(pre)
    ht = jnp.einsum("pl,blnd->bpnd", params["W_time"], h)        # (B, P, N, D)
    y_emb = seq_y_mark.astype(jnp.float32) @ params["W_ymark"] + params["b_ymark"][0]
    dec = jax.nn.gelu(ht + y_emb[:, :, None, :])                 # (B, P, N, D)
    out = jnp.einsum("bpnd,dc->bpcn", dec, params["W_out"])
    out = out + params["b_out"][0][None, None, :, None]
    return out                                                   # (B, P, c_out, N)


# --------------------------------- demo -------------------------------------
if __name__ == "__main__":
    configs = {
        "model": {"d_model": 32},
        "dataset": {"c_date": 4, "n_nodes": 4},
        "envs": {"c_in": 1, "c_out": 1, "device": "tpu",
                 "inp_len": 8, "pred_len": 8, "dropout": 0.0},
    }
    B = 2
    L = configs["envs"]["inp_len"]
    P = configs["envs"]["pred_len"]
    N = configs["dataset"]["n_nodes"]
    c_date = configs["dataset"]["c_date"]

    key = jax.random.PRNGKey(0)
    k1, k2, k3, k4 = jax.random.split(key, 4)
    seq_x = jax.random.normal(k1, (B, L, 1, N), jnp.float32)
    seq_x_mark = jax.random.normal(k2, (B, L, c_date), jnp.float32)
    seq_y_mark = jax.random.normal(k3, (B, P, c_date), jnp.float32)

    api = CatPtnetAPI(configs, graph_generator=None, fixed_adjs=None, key=k4)
    predicts, aux_loss = api(seq_x, seq_x_mark, seq_y_mark)
    predicts = jax.block_until_ready(predicts)

    assert predicts.shape == (B, P, 1, N), predicts.shape
    assert aux_loss == 0.0

    ref = jax.block_until_ready(
        _reference_forward(api.params, seq_x, seq_x_mark, seq_y_mark))
    # bf16 MXU operands (f32 accumulation) -> slightly looser tolerance than f32
    assert jnp.allclose(predicts, ref, atol=5e-2, rtol=5e-2), (
        float(jnp.max(jnp.abs(predicts - ref))))

    print("KERNEL_OK")
</pallas_src>

<mosaic_0001>
module attributes {stable_mosaic.version = 11 : i64} {
  func.func @_ptnet_kernel(%arg0: i32, %arg1: i32, %arg2: memref<1x8x128xbf16, #tpu.memory_space<vmem>>, %arg3: memref<1x256x1xf32, #tpu.memory_space<vmem>>, %arg4: memref<1x256x1xf32, #tpu.memory_space<vmem>>, %arg5: memref<256x8xbf16, #tpu.memory_space<vmem>>, %arg6: memref<256x256xbf16, #tpu.memory_space<vmem>>, %arg7: memref<8x256xbf16, #tpu.memory_space<vmem>>, %arg8: memref<8x1xf32, #tpu.memory_space<vmem>>, %arg9: memref<1x8x128xf32, #tpu.memory_space<vmem>>) attributes {dimension_semantics = [#tpu.dimension_semantics<parallel>, #tpu.dimension_semantics<parallel>], iteration_bounds = array<i64: 2, 1>, scalar_prefetch = 0 : i64, scratch_operands = 0 : i64, tpu.core_type = #tpu.core_type<tc>, window_params = [{transform_indices = @transform_0, window_bounds = array<i64: 1, 8, 128>}, {transform_indices = @transform_1, window_bounds = array<i64: 1, 256, 1>}, {transform_indices = @transform_2, window_bounds = array<i64: 1, 256, 1>}, {pipeline_mode = #tpu.pipeline_mode<synchronous>, transform_indices = @transform_3, window_bounds = array<i64: 256, 8>}, {pipeline_mode = #tpu.pipeline_mode<synchronous>, transform_indices = @transform_4, window_bounds = array<i64: 256, 256>}, {pipeline_mode = #tpu.pipeline_mode<synchronous>, transform_indices = @transform_5, window_bounds = array<i64: 8, 256>}, {pipeline_mode = #tpu.pipeline_mode<synchronous>, transform_indices = @transform_6, window_bounds = array<i64: 8, 1>}, {transform_indices = @transform_7, window_bounds = array<i64: 1, 8, 128>}]} {
    %c0 = arith.constant 0 : index
    %c0_0 = arith.constant 0 : index
    %c0_1 = arith.constant 0 : index
    %0 = vector.load %arg2[%c0, %c0_0, %c0_1] : memref<1x8x128xbf16, #tpu.memory_space<vmem>>, vector<1x8x128xbf16>
    %1 = vector.shape_cast %0 : vector<1x8x128xbf16> to vector<8x128xbf16>
    %c0_2 = arith.constant 0 : index
    %c0_3 = arith.constant 0 : index
    %c0_4 = arith.constant 0 : index
    %2 = vector.load %arg3[%c0_2, %c0_3, %c0_4] : memref<1x256x1xf32, #tpu.memory_space<vmem>>, vector<1x256x1xf32>
    %3 = vector.shape_cast %2 : vector<1x256x1xf32> to vector<256x1xf32>
    %c0_5 = arith.constant 0 : index
    %c0_6 = arith.constant 0 : index
    %c0_7 = arith.constant 0 : index
    %4 = vector.load %arg4[%c0_5, %c0_6, %c0_7] : memref<1x256x1xf32, #tpu.memory_space<vmem>>, vector<1x256x1xf32>
    %5 = vector.shape_cast %4 : vector<1x256x1xf32> to vector<256x1xf32>
    %c0_8 = arith.constant 0 : index
    %c0_9 = arith.constant 0 : index
    %6 = vector.load %arg5[%c0_8, %c0_9] : memref<256x8xbf16, #tpu.memory_space<vmem>>, vector<256x8xbf16>
    %cst = arith.constant dense<0.000000e+00> : vector<256x128xf32>
    %7 = tpu.matmul %6, %1, %cst {dimension_numbers = #tpu.dot_dimension_numbers<[1], [0], [0], [1], [0, 0, 1, 1], [], []>} : vector<256x8xbf16>, vector<8x128xbf16>, vector<256x128xf32> -> vector<256x128xf32>
    %8 = vector.broadcast %3 : vector<256x1xf32> to vector<256x128xf32>
    %9 = arith.addf %7, %8 : vector<256x128xf32>
    %10 = arith.mulf %9, %9 : vector<256x128xf32>
    %11 = arith.mulf %9, %10 : vector<256x128xf32>
    %cst_10 = arith.constant 4.471500e-02 : f32
    %12 = vector.broadcast %cst_10 : f32 to vector<256x128xf32>
    %13 = arith.mulf %12, %11 : vector<256x128xf32>
    %14 = arith.addf %9, %13 : vector<256x128xf32>
    %cst_11 = arith.constant 0.797884583 : f32
    %15 = vector.broadcast %cst_11 : f32 to vector<256x128xf32>
    %16 = arith.mulf %15, %14 : vector<256x128xf32>
    %17 = math.tanh %16 : vector<256x128xf32>
    %cst_12 = arith.constant 1.000000e+00 : f32
    %18 = vector.broadcast %cst_12 : f32 to vector<256x128xf32>
    %19 = arith.addf %18, %17 : vector<256x128xf32>
    %cst_13 = arith.constant 5.000000e-01 : f32
    %20 = vector.broadcast %cst_13 : f32 to vector<256x128xf32>
    %21 = arith.mulf %20, %19 : vector<256x128xf32>
    %22 = arith.mulf %9, %21 : vector<256x128xf32>
    %c0_14 = arith.constant 0 : index
    %c0_15 = arith.constant 0 : index
    %23 = vector.load %arg6[%c0_14, %c0_15] : memref<256x256xbf16, #tpu.memory_space<vmem>>, vector<256x256xbf16>
    %24 = arith.truncf %22 : vector<256x128xf32> to vector<256x128xbf16>
    %cst_16 = arith.constant dense<0.000000e+00> : vector<256x128xf32>
    %25 = tpu.matmul %23, %24, %cst_16 {dimension_numbers = #tpu.dot_dimension_numbers<[1], [0], [0], [1], [0, 0, 1, 1], [], []>} : vector<256x256xbf16>, vector<256x128xbf16>, vector<256x128xf32> -> vector<256x128xf32>
    %26 = vector.broadcast %5 : vector<256x1xf32> to vector<256x128xf32>
    %27 = arith.addf %25, %26 : vector<256x128xf32>
    %28 = arith.mulf %27, %27 : vector<256x128xf32>
    %29 = arith.mulf %27, %28 : vector<256x128xf32>
    %cst_17 = arith.constant 4.471500e-02 : f32
    %30 = vector.broadcast %cst_17 : f32 to vector<256x128xf32>
    %31 = arith.mulf %30, %29 : vector<256x128xf32>
    %32 = arith.addf %27, %31 : vector<256x128xf32>
    %cst_18 = arith.constant 0.797884583 : f32
    %33 = vector.broadcast %cst_18 : f32 to vector<256x128xf32>
    %34 = arith.mulf %33, %32 : vector<256x128xf32>
    %35 = math.tanh %34 : vector<256x128xf32>
    %cst_19 = arith.constant 1.000000e+00 : f32
    %36 = vector.broadcast %cst_19 : f32 to vector<256x128xf32>
    %37 = arith.addf %36, %35 : vector<256x128xf32>
    %cst_20 = arith.constant 5.000000e-01 : f32
    %38 = vector.broadcast %cst_20 : f32 to vector<256x128xf32>
    %39 = arith.mulf %38, %37 : vector<256x128xf32>
    %40 = arith.mulf %27, %39 : vector<256x128xf32>
    %c0_21 = arith.constant 0 : index
    %c0_22 = arith.constant 0 : index
    %41 = vector.load %arg7[%c0_21, %c0_22] : memref<8x256xbf16, #tpu.memory_space<vmem>>, vector<8x256xbf16>
    %42 = arith.truncf %40 : vector<256x128xf32> to vector<256x128xbf16>
    %cst_23 = arith.constant dense<0.000000e+00> : vector<8x128xf32>
    %43 = tpu.matmul %41, %42, %cst_23 {dimension_numbers = #tpu.dot_dimension_numbers<[1], [0], [0], [1], [0, 0, 1, 1], [], []>} : vector<8x256xbf16>, vector<256x128xbf16>, vector<8x128xf32> -> vector<8x128xf32>
    %c0_24 = arith.constant 0 : index
    %c0_25 = arith.constant 0 : index
    %44 = vector.load %arg8[%c0_24, %c0_25] : memref<8x1xf32, #tpu.memory_space<vmem>>, vector<8x1xf32>
    %45 = vector.broadcast %44 : vector<8x1xf32> to vector<8x128xf32>
    %46 = arith.addf %43, %45 : vector<8x128xf32>
    %c0_26 = arith.constant 0 : index
    %c0_27 = arith.constant 0 : index
    %c0_28 = arith.constant 0 : index
    %47 = vector.load %arg9[%c0_26, %c0_27, %c0_28] : memref<1x8x128xf32, #tpu.memory_space<vmem>>, vector<1x8x128xf32>
    %48 = vector.shape_cast %47 : vector<1x8x128xf32> to vector<8x128xf32>
    %49 = vector.shape_cast %46 : vector<8x128xf32> to vector<1x8x128xf32>
    tpu.vector_store %arg9[%c0_26, %c0_27, %c0_28], %49 {strides = array<i32>} : memref<1x8x128xf32, #tpu.memory_space<vmem>>, vector<1x8x128xf32>,
    return
  }
  func.func @transform_0(%arg0: i32, %arg1: i32) -> (i32, i32, i32) {
    %c0_i32 = arith.constant 0 : i32
    %c0_i32_0 = arith.constant 0 : i32
    return %arg0, %c0_i32, %arg1 : i32, i32, i32
  }
  func.func @transform_1(%arg0: i32, %arg1: i32) -> (i32, i32, i32) {
    %c0_i32 = arith.constant 0 : i32
    %c0_i32_0 = arith.constant 0 : i32
    %c0_i32_1 = arith.constant 0 : i32
    return %arg0, %c0_i32, %c0_i32_0 : i32, i32, i32
  }
  func.func @transform_2(%arg0: i32, %arg1: i32) -> (i32, i32, i32) {
    %c0_i32 = arith.constant 0 : i32
    %c0_i32_0 = arith.constant 0 : i32
    %c0_i32_1 = arith.constant 0 : i32
    return %arg0, %c0_i32, %c0_i32_0 : i32, i32, i32
  }
  func.func @transform_3(%arg0: i32, %arg1: i32) -> (i32, i32) {
    %c0_i32 = arith.constant 0 : i32
    %c0_i32_0 = arith.constant 0 : i32
    %c0_i32_1 = arith.constant 0 : i32
    return %c0_i32, %c0_i32_0 : i32, i32
  }
  func.func @transform_4(%arg0: i32, %arg1: i32) -> (i32, i32) {
    %c0_i32 = arith.constant 0 : i32
    %c0_i32_0 = arith.constant 0 : i32
    %c0_i32_1 = arith.constant 0 : i32
    return %c0_i32, %c0_i32_0 : i32, i32
  }
  func.func @transform_5(%arg0: i32, %arg1: i32) -> (i32, i32) {
    %c0_i32 = arith.constant 0 : i32
    %c0_i32_0 = arith.constant 0 : i32
    %c0_i32_1 = arith.constant 0 : i32
    return %c0_i32, %c0_i32_0 : i32, i32
  }
  func.func @transform_6(%arg0: i32, %arg1: i32) -> (i32, i32) {
    %c0_i32 = arith.constant 0 : i32
    %c0_i32_0 = arith.constant 0 : i32
    %c0_i32_1 = arith.constant 0 : i32
    return %c0_i32, %c0_i32_0 : i32, i32
  }
  func.func @transform_7(%arg0: i32, %arg1: i32) -> (i32, i32, i32) {
    %c0_i32 = arith.constant 0 : i32
    %c0_i32_0 = arith.constant 0 : i32
    return %arg0, %c0_i32, %arg1 : i32, i32, i32
  }
}

module attributes {stable_mosaic.version = 11 : i64} {
  func.func @_ptnet_kernel(%arg0: i32, %arg1: i32, %arg2: memref<1x8x128xbf16, #tpu.memory_space<vmem>>, %arg3: memref<1x256x1xf32, #tpu.memory_space<vmem>>, %arg4: memref<1x256x1xf32, #tpu.memory_space<vmem>>, %arg5: memref<256x8xbf16, #tpu.memory_space<vmem>>, %arg6: memref<256x256xbf16, #tpu.memory_space<vmem>>, %arg7: memref<8x256xbf16, #tpu.memory_space<vmem>>, %arg8: memref<8x1xf32, #tpu.memory_space<vmem>>, %arg9: memref<1x8x128xf32, #tpu.memory_space<vmem>>) attributes {dimension_semantics = [#tpu.dimension_semantics<parallel>, #tpu.dimension_semantics<parallel>], iteration_bounds = array<i64: 2, 1>, scalar_prefetch = 0 : i64, scratch_operands = 0 : i64, tpu.core_type = #tpu.core_type<tc>, window_params = [{transform_indices = @transform_0, window_bounds = array<i64: 1, 8, 128>}, {transform_indices = @transform_1, window_bounds = array<i64: 1, 256, 1>}, {transform_indices = @transform_2, window_bounds = array<i64: 1, 256, 1>}, {pipeline_mode = #tpu.pipeline_mode<synchronous>, transform_indices = @transform_3, window_bounds = array<i64: 256, 8>}, {pipeline_mode = #tpu.pipeline_mode<synchronous>, transform_indices = @transform_4, window_bounds = array<i64: 256, 256>}, {pipeline_mode = #tpu.pipeline_mode<synchronous>, transform_indices = @transform_5, window_bounds = array<i64: 8, 256>}, {pipeline_mode = #tpu.pipeline_mode<synchronous>, transform_indices = @transform_6, window_bounds = array<i64: 8, 1>}, {transform_indices = @transform_7, window_bounds = array<i64: 1, 8, 128>}]} {
    %c0 = arith.constant 0 : index
    %c0_0 = arith.constant 0 : index
    %c0_1 = arith.constant 0 : index
    %0 = vector.load %arg2[%c0, %c0_0, %c0_1] : memref<1x8x128xbf16, #tpu.memory_space<vmem>>, vector<1x8x128xbf16>
    %1 = vector.shape_cast %0 : vector<1x8x128xbf16> to vector<8x128xbf16>
    %c0_2 = arith.constant 0 : index
    %c0_3 = arith.constant 0 : index
    %c0_4 = arith.constant 0 : index
    %2 = vector.load %arg3[%c0_2, %c0_3, %c0_4] : memref<1x256x1xf32, #tpu.memory_space<vmem>>, vector<1x256x1xf32>
    %3 = vector.shape_cast %2 : vector<1x256x1xf32> to vector<256x1xf32>
    %c0_5 = arith.constant 0 : index
    %c0_6 = arith.constant 0 : index
    %c0_7 = arith.constant 0 : index
    %4 = vector.load %arg4[%c0_5, %c0_6, %c0_7] : memref<1x256x1xf32, #tpu.memory_space<vmem>>, vector<1x256x1xf32>
    %5 = vector.shape_cast %4 : vector<1x256x1xf32> to vector<256x1xf32>
    %c0_8 = arith.constant 0 : index
    %c0_9 = arith.constant 0 : index
    %6 = vector.load %arg5[%c0_8, %c0_9] : memref<256x8xbf16, #tpu.memory_space<vmem>>, vector<256x8xbf16>
    %cst = arith.constant dense<0.000000e+00> : vector<256x128xf32>
    %7 = tpu.matmul %6, %1, %cst {dimension_numbers = #tpu.dot_dimension_numbers<[1], [0], [0], [1], [0, 0, 1, 1], [], []>} : vector<256x8xbf16>, vector<8x128xbf16>, vector<256x128xf32> -> vector<256x128xf32>
    %8 = vector.broadcast %3 : vector<256x1xf32> to vector<256x128xf32>
    %9 = arith.addf %7, %8 : vector<256x128xf32>
    %10 = arith.mulf %9, %9 : vector<256x128xf32>
    %11 = arith.mulf %9, %10 : vector<256x128xf32>
    %cst_10 = arith.constant 4.471500e-02 : f32
    %12 = vector.broadcast %cst_10 : f32 to vector<256x128xf32>
    %13 = arith.mulf %12, %11 : vector<256x128xf32>
    %14 = arith.addf %9, %13 : vector<256x128xf32>
    %cst_11 = arith.constant 0.797884583 : f32
    %15 = vector.broadcast %cst_11 : f32 to vector<256x128xf32>
    %16 = arith.mulf %15, %14 : vector<256x128xf32>
    %17 = math.tanh %16 : vector<256x128xf32>
    %cst_12 = arith.constant 1.000000e+00 : f32
    %18 = vector.broadcast %cst_12 : f32 to vector<256x128xf32>
    %19 = arith.addf %18, %17 : vector<256x128xf32>
    %cst_13 = arith.constant 5.000000e-01 : f32
    %20 = vector.broadcast %cst_13 : f32 to vector<256x128xf32>
    %21 = arith.mulf %20, %19 : vector<256x128xf32>
    %22 = arith.mulf %9, %21 : vector<256x128xf32>
    %c0_14 = arith.constant 0 : index
    %c0_15 = arith.constant 0 : index
    %23 = vector.load %arg6[%c0_14, %c0_15] : memref<256x256xbf16, #tpu.memory_space<vmem>>, vector<256x256xbf16>
    %24 = arith.truncf %22 : vector<256x128xf32> to vector<256x128xbf16>
    %cst_16 = arith.constant dense<0.000000e+00> : vector<256x128xf32>
    %25 = tpu.matmul %23, %24, %cst_16 {dimension_numbers = #tpu.dot_dimension_numbers<[1], [0], [0], [1], [0, 0, 1, 1], [], []>} : vector<256x256xbf16>, vector<256x128xbf16>, vector<256x128xf32> -> vector<256x128xf32>
    %26 = vector.broadcast %5 : vector<256x1xf32> to vector<256x128xf32>
    %27 = arith.addf %25, %26 : vector<256x128xf32>
    %28 = arith.mulf %27, %27 : vector<256x128xf32>
    %29 = arith.mulf %27, %28 : vector<256x128xf32>
    %cst_17 = arith.constant 4.471500e-02 : f32
    %30 = vector.broadcast %cst_17 : f32 to vector<256x128xf32>
    %31 = arith.mulf %30, %29 : vector<256x128xf32>
    %32 = arith.addf %27, %31 : vector<256x128xf32>
    %cst_18 = arith.constant 0.797884583 : f32
    %33 = vector.broadcast %cst_18 : f32 to vector<256x128xf32>
    %34 = arith.mulf %33, %32 : vector<256x128xf32>
    %35 = math.tanh %34 : vector<256x128xf32>
    %cst_19 = arith.constant 1.000000e+00 : f32
    %36 = vector.broadcast %cst_19 : f32 to vector<256x128xf32>
    %37 = arith.addf %36, %35 : vector<256x128xf32>
    %cst_20 = arith.constant 5.000000e-01 : f32
    %38 = vector.broadcast %cst_20 : f32 to vector<256x128xf32>
    %39 = arith.mulf %38, %37 : vector<256x128xf32>
    %40 = arith.mulf %27, %39 : vector<256x128xf32>
    %c0_21 = arith.constant 0 : index
    %c0_22 = arith.constant 0 : index
    %41 = vector.load %arg7[%c0_21, %c0_22] : memref<8x256xbf16, #tpu.memory_space<vmem>>, vector<8x256xbf16>
    %42 = arith.truncf %40 : vector<256x128xf32> to vector<256x128xbf16>
    %cst_23 = arith.constant dense<0.000000e+00> : vector<8x128xf32>
    %43 = tpu.matmul %41, %42, %cst_23 {dimension_numbers = #tpu.dot_dimension_numbers<[1], [0], [0], [1], [0, 0, 1, 1], [], []>} : vector<8x256xbf16>, vector<256x128xbf16>, vector<8x128xf32> -> vector<8x128xf32>
    %c0_24 = arith.constant 0 : index
    %c0_25 = arith.constant 0 : index
    %44 = vector.load %arg8[%c0_24, %c0_25] : memref<8x1xf32, #tpu.memory_space<vmem>>, vector<8x1xf32>
    %45 = vector.broadcast %44 : vector<8x1xf32> to vector<8x128xf32>
    %46 = arith.addf %43, %45 : vector<8x128xf32>
    %c0_26 = arith.constant 0 : index
    %c0_27 = arith.constant 0 : index
    %c0_28 = arith.constant 0 : index
    %47 = vector.load %arg9[%c0_26, %c0_27, %c0_28] : memref<1x8x128xf32, #tpu.memory_space<vmem>>, vector<1x8x128xf32>
    %48 = vector.shape_cast %47 : vector<1x8x128xf32> to vector<8x128xf32>
    %49 = vector.shape_cast %46 : vector<8x128xf32> to vector<1x8x128xf32>
    tpu.vector_store %arg9[%c0_26, %c0_27, %c0_28], %49 {strides = array<i32>} : memref<1x8x128xf32, #tpu.memory_space<vmem>>, vector<1x8x128xf32>,
    return
  }
  func.func @transform_0(%arg0: i32, %arg1: i32) -> (i32, i32, i32) {
    %c0_i32 = arith.constant 0 : i32
    %c0_i32_0 = arith.constant 0 : i32
    return %arg0, %c0_i32, %arg1 : i32, i32, i32
  }
  func.func @transform_1(%arg0: i32, %arg1: i32) -> (i32, i32, i32) {
    %c0_i32 = arith.constant 0 : i32
    %c0_i32_0 = arith.constant 0 : i32
    %c0_i32_1 = arith.constant 0 : i32
    return %arg0, %c0_i32, %c0_i32_0 : i32, i32, i32
  }
  func.func @transform_2(%arg0: i32, %arg1: i32) -> (i32, i32, i32) {
    %c0_i32 = arith.constant 0 : i32
    %c0_i32_0 = arith.constant 0 : i32
    %c0_i32_1 = arith.constant 0 : i32
    return %arg0, %c0_i32, %c0_i32_0 : i32, i32, i32
  }
  func.func @transform_3(%arg0: i32, %arg1: i32) -> (i32, i32) {
    %c0_i32 = arith.constant 0 : i32
    %c0_i32_0 = arith.constant 0 : i32
    %c0_i32_1 = arith.constant 0 : i32
    return %c0_i32, %c0_i32_0 : i32, i32
  }
  func.func @transform_4(%arg0: i32, %arg1: i32) -> (i32, i32) {
    %c0_i32 = arith.constant 0 : i32
    %c0_i32_0 = arith.constant 0 : i32
    %c0_i32_1 = arith.constant 0 : i32
    return %c0_i32, %c0_i32_0 : i32, i32
  }
  func.func @transform_5(%arg0: i32, %arg1: i32) -> (i32, i32) {
    %c0_i32 = arith.constant 0 : i32
    %c0_i32_0 = arith.constant 0 : i32
    %c0_i32_1 = arith.constant 0 : i32
    return %c0_i32, %c0_i32_0 : i32, i32
  }
  func.func @transform_6(%arg0: i32, %arg1: i32) -> (i32, i32) {
    %c0_i32 = arith.constant 0 : i32
    %c0_i32_0 = arith.constant 0 : i32
    %c0_i32_1 = arith.constant 0 : i32
    return %c0_i32, %c0_i32_0 : i32, i32
  }
  func.func @transform_7(%arg0: i32, %arg1: i32) -> (i32, i32, i32) {
    %c0_i32 = arith.constant 0 : i32
    %c0_i32_0 = arith.constant 0 : i32
    return %arg0, %c0_i32, %arg1 : i32, i32, i32
  }
}

</mosaic_0001>

<llo_original>
// kernel: _run_model.1
$region0: #{_run_model.1}
  #allocation0 [shape = 'u32[]', space=smem, size = 0x4, offset = 0x4, fixed_abs, tag = 'smem constant byte address 0x4 - core index']
  #allocation1 [shape = 'u32[144,128]{1,0:T(1,128)}', space=vmem, size = 0x12000, scoped, tag = 'internal scratch']
  %s0 = inlined_call_operand.vmem [shape: bf16[2,8,128], index: 0, kind: input, shape index: {}]
  %s1 = inlined_call_operand.vmem [shape: f32[2,256,1], index: 1, kind: input, shape index: {}]
  %s2 = inlined_call_operand.vmem [shape: f32[2,256,1], index: 2, kind: input, shape index: {}]
  %s3 = inlined_call_operand.vmem [shape: bf16[256,8], index: 3, kind: input, shape index: {}]
  %s4 = inlined_call_operand.vmem [shape: bf16[256,256], index: 4, kind: input, shape index: {}]
  %s5 = inlined_call_operand.vmem [shape: bf16[8,256], index: 5, kind: input, shape index: {}]
  %s6 = inlined_call_operand.vmem [shape: f32[8,1], index: 6, kind: input, shape index: {}]
  %s7 = inlined_call_operand.hbm [shape: f32[2,8,128], index: 7, kind: output, shape index: {}]
  %s8 = sld [smem:[#allocation0]]
  $region61: #{_run_model.1} parent=0
    _
  %s10 = ssub.s32 1, %s8
  %s11 = scalar_select 0, %s10, %s8
  $region1: #{_run_model.1} parent=0
    #allocation2 [shape = 'u8[8192]{0}', space=vmem, size = 0x2000, scoped, tag = 'output window, operand 0']
    #allocation3 [shape = 's32[2]{0}', space=sflag, size = 0x8, scoped, tag = 'scoped memory for _run_model.1']
    %12 = vsyncpa [#allocation3], 0
    %s13 = scalar_lea.sflag [#allocation3], 1
    %14 = vsyncpa %s13, 0
    loop: start=0, step=1, limit=4
    $region2: #{_run_model.1} parent=1 // loop_pre_header
      _
    $region3: #{_run_model.1} parent=1 // loop_header
      %s16 = sphi 0, %s20
      %p17 = scmp.ge.s32.totalorder %s16, 4
      %s23 = sphi 0, %s35
      %s24 = sphi 0, %s31
      %s25 = sphi 0, %s23
      %s26 = sphi 0, %s24
      %s27 = sphi 0, %s25
      %s28 = sphi 0, %s26
      %s40 = sphi 0, %s42
      %s43 = sphi 0, %s40
      %s44 = sphi 0, %s43
      %s60 = sphi 0, %s44
      %s66 = sphi 0, %s68
      %s69 = sphi 0, %s66
      %s70 = sphi 0, %s69
      %s86 = sphi 0, %s70
      %s92 = sphi 0, %s94
      %s95 = sphi 0, %s92
      %s96 = sphi 0, %s95
      %s112 = sphi 0, %s96
      %s116 = sphi 0, %s116
      %s118 = sphi 0, %s116
      %s119 = sphi 0, %s118
      %s133 = sphi 0, %s119
      %s137 = sphi 0, %s137
      %s139 = sphi 0, %s137
      %s140 = sphi 0, %s139
      %s154 = sphi 0, %s140
      %s158 = sphi 0, %s158
      %s160 = sphi 0, %s158
      %s161 = sphi 0, %s160
      %s175 = sphi 0, %s161
      %s179 = sphi 0, %s179
      %s181 = sphi 0, %s179
      %s182 = sphi 0, %s181
      %s196 = sphi 0, %s182
      %s204 = sphi 0, %s206
      %s207 = sphi 0, %s204
      %s208 = sphi 0, %s207
      %s224 = sphi 0, %s208
    $region4: #{_run_model.1} parent=1 // loop_header_branch
      %19 = sbr.rel (%p17) target = $region8
    $region5: #{_run_model.1} parent=1 // loop_body
      %s21 = ssub.s32 %s16, 1
      %s22 = ssub.s32 %s16, 2
      %s29 = sadd.s32 1, %s24
      %p30 = scmp.ge.s32.totalorder %s29, 1
      %s31 = scalar_select %p30, 0, %s29
      %s32 = sadd.s32 1, %s23
      %s33 = scalar_select %p30, %s32, %s23
      %p34 = scmp.ge.s32.totalorder %s33, 2
      %s35 = scalar_select %p34, 0, %s33
      %s36 = ssub.s32 %s23, %s35
      %s37 = ssub.s32 %s24, %s31
      %s38 = sor.u32 %s36, %s37
      %p39 = scmp.eq.s32.totalorder %s38, 0
      %s41 = sadd.s32 %s40, 1
      %s42 = scalar_select %p39, %s40, %s41
      %p45 = pneg %p39
      %p46 = scmp.eq.s32.totalorder %s16, 1
      %p47 = por %p45, %p46
      %p48 = scmp.ne.s32.totalorder %s40, %s43
      %p49 = scmp.eq.s32.totalorder %s16, 0
      %p50 = por %p48, %p49
      %p51 = scmp.ne.s32.totalorder %s40, %s43
      %p52 = scmp.eq.s32.totalorder %s21, 1
      %p53 = por %p51, %p52
      %p54 = scmp.ne.s32.totalorder %s43, %s44
      %p55 = scmp.eq.s32.totalorder %s21, 0
      %p56 = por %p54, %p55
      %p57 = scmp.ne.s32.totalorder %s43, %s44
      %p58 = scmp.eq.s32.totalorder %s22, 1
      %p59 = por %p57, %p58
      %p61 = scmp.ne.s32.totalorder %s44, %s60
      %p62 = scmp.eq.s32.totalorder %s22, 0
      %p63 = por %p61, %p62
      %s64 = ssub.s32 %s23, %s35
      %p65 = scmp.eq.s32.totalorder %s64, 0
      %s67 = sadd.s32 %s66, 1
      %s68 = scalar_select %p65, %s66, %s67
      %p71 = pneg %p65
      %p72 = scmp.eq.s32.totalorder %s16, 1
      %p73 = por %p71, %p72
      %p74 = scmp.ne.s32.totalorder %s66, %s69
      %p75 = scmp.eq.s32.totalorder %s16, 0
      %p76 = por %p74, %p75
      %p77 = scmp.ne.s32.totalorder %s66, %s69
      %p78 = scmp.eq.s32.totalorder %s21, 1
      %p79 = por %p77, %p78
      %p80 = scmp.ne.s32.totalorder %s69, %s70
      %p81 = scmp.eq.s32.totalorder %s21, 0
      %p82 = por %p80, %p81
      %p83 = scmp.ne.s32.totalorder %s69, %s70
      %p84 = scmp.eq.s32.totalorder %s22, 1
      %p85 = por %p83, %p84
      %p87 = scmp.ne.s32.totalorder %s70, %s86
      %p88 = scmp.eq.s32.totalorder %s22, 0
      %p89 = por %p87, %p88
      %s90 = ssub.s32 %s23, %s35
      %p91 = scmp.eq.s32.totalorder %s90, 0
      %s93 = sadd.s32 %s92, 1
      %s94 = scalar_select %p91, %s92, %s93
      %p97 = pneg %p91
      %p98 = scmp.eq.s32.totalorder %s16, 1
      %p99 = por %p97, %p98
      %p100 = scmp.ne.s32.totalorder %s92, %s95
      %p101 = scmp.eq.s32.totalorder %s16, 0
      %p102 = por %p100, %p101
      %p103 = scmp.ne.s32.totalorder %s92, %s95
      %p104 = scmp.eq.s32.totalorder %s21, 1
      %p105 = por %p103, %p104
      %p106 = scmp.ne.s32.totalorder %s95, %s96
      %p107 = scmp.eq.s32.totalorder %s21, 0
      %p108 = por %p106, %p107
      %p109 = scmp.ne.s32.totalorder %s95, %s96
      %p110 = scmp.eq.s32.totalorder %s22, 1
      %p111 = por %p109, %p110
      %p113 = scmp.ne.s32.totalorder %s96, %s112
      %p114 = scmp.eq.s32.totalorder %s22, 0
      %p115 = por %p113, %p114
      %s117 = sadd.s32 %s116, 1
      %p120 = scmp.eq.s32.totalorder %s16, 1
      %p121 = scmp.ne.s32.totalorder %s116, %s118
      %p122 = scmp.eq.s32.totalorder %s16, 0
      %p123 = por %p121, %p122
      %p124 = scmp.ne.s32.totalorder %s116, %s118
      %p125 = scmp.eq.s32.totalorder %s21, 1
      %p126 = por %p124, %p125
      %p127 = scmp.ne.s32.totalorder %s118, %s119
      %p128 = scmp.eq.s32.totalorder %s21, 0
      %p129 = por %p127, %p128
      %p130 = scmp.ne.s32.totalorder %s118, %s119
      %p131 = scmp.eq.s32.totalorder %s22, 1
      %p132 = por %p130, %p131
      %p134 = scmp.ne.s32.totalorder %s119, %s133
      %p135 = scmp.eq.s32.totalorder %s22, 0
      %p136 = por %p134, %p135
      %s138 = sadd.s32 %s137, 1
      %p141 = scmp.eq.s32.totalorder %s16, 1
      %p142 = scmp.ne.s32.totalorder %s137, %s139
      %p143 = scmp.eq.s32.totalorder %s16, 0
      %p144 = por %p142, %p143
      %p145 = scmp.ne.s32.totalorder %s137, %s139
      %p146 = scmp.eq.s32.totalorder %s21, 1
      %p147 = por %p145, %p146
      %p148 = scmp.ne.s32.totalorder %s139, %s140
      %p149 = scmp.eq.s32.totalorder %s21, 0
      %p150 = por %p148, %p149
      %p151 = scmp.ne.s32.totalorder %s139, %s140
      %p152 = scmp.eq.s32.totalorder %s22, 1
      %p153 = por %p151, %p152
      %p155 = scmp.ne.s32.totalorder %s140, %s154
      %p156 = scmp.eq.s32.totalorder %s22, 0
      %p157 = por %p155, %p156
      %s159 = sadd.s32 %s158, 1
      %p162 = scmp.eq.s32.totalorder %s16, 1
      %p163 = scmp.ne.s32.totalorder %s158, %s160
      %p164 = scmp.eq.s32.totalorder %s16, 0
      %p165 = por %p163, %p164
      %p166 = scmp.ne.s32.totalorder %s158, %s160
      %p167 = scmp.eq.s32.totalorder %s21, 1
      %p168 = por %p166, %p167
      %p169 = scmp.ne.s32.totalorder %s160, %s161
      %p170 = scmp.eq.s32.totalorder %s21, 0
      %p171 = por %p169, %p170
      %p172 = scmp.ne.s32.totalorder %s160, %s161
      %p173 = scmp.eq.s32.totalorder %s22, 1
      %p174 = por %p172, %p173
      %p176 = scmp.ne.s32.totalorder %s161, %s175
      %p177 = scmp.eq.s32.totalorder %s22, 0
      %p178 = por %p176, %p177
      %s180 = sadd.s32 %s179, 1
      %p183 = scmp.eq.s32.totalorder %s16, 1
      %p184 = scmp.ne.s32.totalorder %s179, %s181
      %p185 = scmp.eq.s32.totalorder %s16, 0
      %p186 = por %p184, %p185
      %p187 = scmp.ne.s32.totalorder %s179, %s181
      %p188 = scmp.eq.s32.totalorder %s21, 1
      %p189 = por %p187, %p188
      %p190 = scmp.ne.s32.totalorder %s181, %s182
      %p191 = scmp.eq.s32.totalorder %s21, 0
      %p192 = por %p190, %p191
      %p193 = scmp.ne.s32.totalorder %s181, %s182
      %p194 = scmp.eq.s32.totalorder %s22, 1
      %p195 = por %p193, %p194
      %p197 = scmp.ne.s32.totalorder %s182, %s196
      %p198 = scmp.eq.s32.totalorder %s22, 0
      %p199 = por %p197, %p198
      %s200 = ssub.s32 %s23, %s35
      %s201 = ssub.s32 %s24, %s31
      %s202 = sor.u32 %s200, %s201
      %p203 = scmp.eq.s32.totalorder %s202, 0
      %s205 = sadd.s32 %s204, 1
      %s206 = scalar_select %p203, %s204, %s205
      %p209 = pneg %p203
      %p210 = scmp.eq.s32.totalorder %s16, 1
      %p211 = por %p209, %p210
      %p212 = scmp.ne.s32.totalorder %s204, %s207
      %p213 = scmp.eq.s32.totalorder %s16, 0
      %p214 = por %p212, %p213
      %p215 = scmp.ne.s32.totalorder %s204, %s207
      %p216 = scmp.eq.s32.totalorder %s21, 1
      %p217 = por %p215, %p216
      %p218 = scmp.ne.s32.totalorder %s207, %s208
      %p219 = scmp.eq.s32.totalorder %s21, 0
      %p220 = por %p218, %p219
      %p221 = scmp.ne.s32.totalorder %s207, %s208
      %p222 = scmp.eq.s32.totalorder %s22, 1
      %p223 = por %p221, %p222
      %p225 = scmp.ne.s32.totalorder %s208, %s224
      %p226 = scmp.eq.s32.totalorder %s22, 0
      %p227 = por %p225, %p226
      %p228 = scmp.le.s32.totalorder 1, %s16
      %p229 = scmp.lt.s32.totalorder %s16, 3
      %p230 = pnand %p228, %p229
      %p231 = pneg %p230
      // Predicated region
      $region9: #{_run_model.1} parent=5 // pred_check
        _
      $region10: #{_run_model.1} parent=5 // pred_check_branch
        %233 = sbr.rel (%p230) target = $region12
      $region11: #{_run_model.1} parent=5 // pred_region
        %s234 = ssub.s32 %s16, 1
        // Predicated region
        $region13: #{_run_model.1} parent=11 // pred_check
          %p235 = pneg %p129
        $region14: #{_run_model.1} parent=11 // pred_check_branch
          %237 = sbr.rel (%p235) target = $region16
        $region15: #{_run_model.1} parent=11 // pred_region
          _
        $region16: #{_run_model.1} parent=11 // pred_fallthru
          _
        // Predicated region
        $region17: #{_run_model.1} parent=11 // pred_check
          %p238 = pneg %p150
        $region18: #{_run_model.1} parent=11 // pred_check_branch
          %240 = sbr.rel (%p238) target = $region20
        $region19: #{_run_model.1} parent=11 // pred_region
          _
        $region20: #{_run_model.1} parent=11 // pred_fallthru
          _
        // Predicated region
        $region21: #{_run_model.1} parent=11 // pred_check
          %p241 = pneg %p171
        $region22: #{_run_model.1} parent=11 // pred_check_branch
          %243 = sbr.rel (%p241) target = $region24
        $region23: #{_run_model.1} parent=11 // pred_region
          _
        $region24: #{_run_model.1} parent=11 // pred_fallthru
          _
        // Predicated region
        $region25: #{_run_model.1} parent=11 // pred_check
          %p244 = pneg %p192
        $region26: #{_run_model.1} parent=11 // pred_check_branch
          %246 = sbr.rel (%p244) target = $region28
        $region27: #{_run_model.1} parent=11 // pred_region
          _
        $region28: #{_run_model.1} parent=11 // pred_fallthru
          _
      $region12: #{_run_model.1} parent=5 // pred_fallthru
        _
      %p247 = scmp.lt.s32.totalorder %s16, 2
      // Predicated region
      $region29: #{_run_model.1} parent=5 // pred_check
        %p248 = pneg %p247
      $region30: #{_run_model.1} parent=5 // pred_check_branch
        %250 = sbr.rel (%p248) target = $region32
      $region31: #{_run_model.1} parent=5 // pred_region
        // Predicated region
        $region33: #{_run_model.1} parent=31 // pred_check
          %p251 = pneg %p50
        $region34: #{_run_model.1} parent=31 // pred_check_branch
          %253 = sbr.rel (%p251) target = $region36
        $region35: #{_run_model.1} parent=31 // pred_region
          %p254 = scmp.lt.s32.totalorder %s23, 1
          %s255 = scalar_select %p254, %s23, 1
          %p256 = scmp.lt.s32.totalorder %s24, 0
          %s257 = scalar_select %p256, %s24, 0
          %s258 = sadd.s32 %s257, %s255
          %s259 = smul.addr %s258, 4
          %s260 = scalar_lea.vmem %s0, %s259
        $region36: #{_run_model.1} parent=31 // pred_fallthru
          _
        // Predicated region
        $region37: #{_run_model.1} parent=31 // pred_check
          %p261 = pneg %p76
        $region38: #{_run_model.1} parent=31 // pred_check_branch
          %263 = sbr.rel (%p261) target = $region40
        $region39: #{_run_model.1} parent=31 // pred_region
          %p264 = scmp.lt.s32.totalorder %s23, 1
          %s265 = scalar_select %p264, %s23, 1
          %s266 = smul.addr %s265, 32
          %s267 = smul.addr %s266, 8
          %s268 = scalar_lea.vmem %s1, %s267
        $region40: #{_run_model.1} parent=31 // pred_fallthru
          _
        // Predicated region
        $region41: #{_run_model.1} parent=31 // pred_check
          %p269 = pneg %p102
        $region42: #{_run_model.1} parent=31 // pred_check_branch
          %271 = sbr.rel (%p269) target = $region44
        $region43: #{_run_model.1} parent=31 // pred_region
          %p272 = scmp.lt.s32.totalorder %s23, 1
          %s273 = scalar_select %p272, %s23, 1
          %s274 = smul.addr %s273, 32
          %s275 = smul.addr %s274, 8
          %s276 = scalar_lea.vmem %s2, %s275
        $region44: #{_run_model.1} parent=31 // pred_fallthru
          _
      $region32: #{_run_model.1} parent=5 // pred_fallthru
        _
      %p277 = scmp.le.s32.totalorder 1, %s16
      %p278 = scmp.lt.s32.totalorder %s16, 3
      %p279 = pnand %p277, %p278
      %p280 = pneg %p279
      // Predicated region
      $region45: #{_run_model.1} parent=5 // pred_check
        _
      $region46: #{_run_model.1} parent=5 // pred_check_branch
        %282 = sbr.rel (%p279) target = $region48
      $region47: #{_run_model.1} parent=5 // pred_region
        %s283 = ssub.s32 %s16, 1
        %p284 = scmp.lt.s32.totalorder %s25, 1
        %s285 = scalar_select %p284, %s25, 1
        %p286 = scmp.lt.s32.totalorder %s26, 0
        %s287 = scalar_select %p286, %s26, 0
        %s288 = sadd.s32 %s287, %s285
        %s289 = smul.addr %s288, 4
        %s290 = scalar_lea.vmem %s0, %s289
        %p291 = pneg %p56
        %p292 = pneg %p53
        %p293 = scmp.lt.s32.totalorder %s25, 1
        %s294 = scalar_select %p293, %s25, 1
        %s295 = smul.addr %s294, 32
        %s296 = smul.addr %s295, 8
        %s297 = scalar_lea.vmem %s1, %s296
        %p298 = pneg %p82
        %p299 = pneg %p79
        %p300 = scmp.lt.s32.totalorder %s25, 1
        %s301 = scalar_select %p300, %s25, 1
        %s302 = smul.addr %s301, 32
        %s303 = smul.addr %s302, 8
        %s304 = scalar_lea.vmem %s2, %s303
        %p305 = pneg %p108
        %p306 = pneg %p105
        %p307 = pneg %p129
        %p308 = pneg %p126
        %p309 = pneg %p150
        %p310 = pneg %p147
        %p311 = pneg %p171
        %p312 = pneg %p168
        %p313 = pneg %p192
        %p314 = pneg %p189
        %p315 = pneg %p220
        %p316 = pneg %p217
        %s317 = sand.u32 %s207, 1
        %s318 = scalar_lea.sflag [#allocation3], %s317
        %s319 = sand.u32 %s207, 1
        %s320 = smul.addr %s319, 8
        %s321 = scalar_lea.vmem [#allocation2], %s320
        %p322 = scmp.lt.s32.totalorder %s25, 1
        %s323 = scalar_select %p322, %s25, 1
        %p324 = scmp.lt.s32.totalorder %s26, 0
        %s325 = scalar_select %p324, %s26, 0
        %s326 = sadd.s32 %s325, %s323
        %s327 = smul.addr %s326, 4
        %s328 = scalar_lea.vmem %s0, %s327
        %p329 = scmp.lt.s32.totalorder %s25, 1
        %s330 = scalar_select %p329, %s25, 1
        %s331 = smul.addr %s330, 32
        %s332 = smul.addr %s331, 8
        %s333 = scalar_lea.vmem %s1, %s332
        %p334 = scmp.lt.s32.totalorder %s25, 1
        %s335 = scalar_select %p334, %s25, 1
        %s336 = smul.addr %s335, 32
        %s337 = smul.addr %s336, 8
        %s338 = scalar_lea.vmem %s2, %s337
        %v340 = vld [vmem:[%s328] sm:$0xf]
        %v341 = vld [vmem:[%s333] sm:$0xff]
        %v342 = vld [vmem:[%s333 + $0x8] sm:$0xff]
        %v343 = vld [vmem:[%s333 + $0x10] sm:$0xff]
        %v344 = vld [vmem:[%s333 + $0x18] sm:$0xff]
        %v345 = vld [vmem:[%s333 + $0x20] sm:$0xff]
        %v346 = vld [vmem:[%s333 + $0x28] sm:$0xff]
        %v347 = vld [vmem:[%s333 + $0x30] sm:$0xff]
        %v348 = vld [vmem:[%s333 + $0x38] sm:$0xff]
        %v349 = vld [vmem:[%s333 + $0x40] sm:$0xff]
        %v350 = vld [vmem:[%s333 + $0x48] sm:$0xff]
        %v351 = vld [vmem:[%s333 + $0x50] sm:$0xff]
        %v352 = vld [vmem:[%s333 + $0x58] sm:$0xff]
        %v353 = vld [vmem:[%s333 + $0x60] sm:$0xff]
        %v354 = vld [vmem:[%s333 + $0x68] sm:$0xff]
        %v355 = vld [vmem:[%s333 + $0x70] sm:$0xff]
        %v356 = vld [vmem:[%s333 + $0x78] sm:$0xff]
        %v357 = vld [vmem:[%s333 + $0x80] sm:$0xff]
        %v358 = vld [vmem:[%s333 + $0x88] sm:$0xff]
        %v359 = vld [vmem:[%s333 + $0x90] sm:$0xff]
        %v360 = vld [vmem:[%s333 + $0x98] sm:$0xff]
        %v361 = vld [vmem:[%s333 + $0xa0] sm:$0xff]
        %v362 = vld [vmem:[%s333 + $0xa8] sm:$0xff]
        %v363 = vld [vmem:[%s333 + $0xb0] sm:$0xff]
        %v364 = vld [vmem:[%s333 + $0xb8] sm:$0xff]
        %v365 = vld [vmem:[%s333 + $0xc0] sm:$0xff]
        %v366 = vld [vmem:[%s333 + $0xc8] sm:$0xff]
        %v367 = vld [vmem:[%s333 + $0xd0] sm:$0xff]
        %v368 = vld [vmem:[%s333 + $0xd8] sm:$0xff]
        %v369 = vld [vmem:[%s333 + $0xe0] sm:$0xff]
        %v370 = vld [vmem:[%s333 + $0xe8] sm:$0xff]
        %v371 = vld [vmem:[%s333 + $0xf0] sm:$0xff]
        %v372 = vld [vmem:[%s333 + $0xf8] sm:$0xff]
        %v373 = vld [vmem:[%s338] sm:$0xff]
        %v374 = vld [vmem:[%s338 + $0x8] sm:$0xff]
        %v375 = vld [vmem:[%s338 + $0x10] sm:$0xff]
        %v376 = vld [vmem:[%s338 + $0x18] sm:$0xff]
        %v377 = vld [vmem:[%s338 + $0x20] sm:$0xff]
        %v378 = vld [vmem:[%s338 + $0x28] sm:$0xff]
        %v379 = vld [vmem:[%s338 + $0x30] sm:$0xff]
        %v380 = vld [vmem:[%s338 + $0x38] sm:$0xff]
        %v381 = vld [vmem:[%s338 + $0x40] sm:$0xff]
        %v382 = vld [vmem:[%s338 + $0x48] sm:$0xff]
        %v383 = vld [vmem:[%s338 + $0x50] sm:$0xff]
        %v384 = vld [vmem:[%s338 + $0x58] sm:$0xff]
        %v385 = vld [vmem:[%s338 + $0x60] sm:$0xff]
        %v386 = vld [vmem:[%s338 + $0x68] sm:$0xff]
        %v387 = vld [vmem:[%s338 + $0x70] sm:$0xff]
        %v388 = vld [vmem:[%s338 + $0x78] sm:$0xff]
        %v389 = vld [vmem:[%s338 + $0x80] sm:$0xff]
        %v390 = vld [vmem:[%s338 + $0x88] sm:$0xff]
        %v391 = vld [vmem:[%s338 + $0x90] sm:$0xff]
        %v392 = vld [vmem:[%s338 + $0x98] sm:$0xff]
        %v393 = vld [vmem:[%s338 + $0xa0] sm:$0xff]
        %v394 = vld [vmem:[%s338 + $0xa8] sm:$0xff]
        %v395 = vld [vmem:[%s338 + $0xb0] sm:$0xff]
        %v396 = vld [vmem:[%s338 + $0xb8] sm:$0xff]
        %v397 = vld [vmem:[%s338 + $0xc0] sm:$0xff]
        %v398 = vld [vmem:[%s338 + $0xc8] sm:$0xff]
        %v399 = vld [vmem:[%s338 + $0xd0] sm:$0xff]
        %v400 = vld [vmem:[%s338 + $0xd8] sm:$0xff]
        %v401 = vld [vmem:[%s338 + $0xe0] sm:$0xff]
        %v402 = vld [vmem:[%s338 + $0xe8] sm:$0xff]
        %v403 = vld [vmem:[%s338 + $0xf0] sm:$0xff]
        %v404 = vld [vmem:[%s338 + $0xf8] sm:$0xff]
        %v405 = vld [vmem:[%s3] sm:$0xf]
        %v406 = vld [vmem:[%s3 + $0x4] sm:$0xf]
        %v407 = vld [vmem:[%s3 + $0x8] sm:$0xf]
        %v408 = vld [vmem:[%s3 + $0xc] sm:$0xf]
        %v409 = vld [vmem:[%s3 + $0x10] sm:$0xf]
        %v410 = vld [vmem:[%s3 + $0x14] sm:$0xf]
        %v411 = vld [vmem:[%s3 + $0x18] sm:$0xf]
        %v412 = vld [vmem:[%s3 + $0x1c] sm:$0xf]
        %v413 = vld [vmem:[%s3 + $0x20] sm:$0xf]
        %v414 = vld [vmem:[%s3 + $0x24] sm:$0xf]
        %v415 = vld [vmem:[%s3 + $0x28] sm:$0xf]
        %v416 = vld [vmem:[%s3 + $0x2c] sm:$0xf]
        %v417 = vld [vmem:[%s3 + $0x30] sm:$0xf]
        %v418 = vld [vmem:[%s3 + $0x34] sm:$0xf]
        %v419 = vld [vmem:[%s3 + $0x38] sm:$0xf]
        %v420 = vld [vmem:[%s3 + $0x3c] sm:$0xf]
        %v421 = vld [vmem:[%s3 + $0x40] sm:$0xf]
        %v422 = vld [vmem:[%s3 + $0x44] sm:$0xf]
        %v423 = vld [vmem:[%s3 + $0x48] sm:$0xf]
        %v424 = vld [vmem:[%s3 + $0x4c] sm:$0xf]
        %v425 = vld [vmem:[%s3 + $0x50] sm:$0xf]
        %v426 = vld [vmem:[%s3 + $0x54] sm:$0xf]
        %v427 = vld [vmem:[%s3 + $0x58] sm:$0xf]
        %v428 = vld [vmem:[%s3 + $0x5c] sm:$0xf]
        %v429 = vld [vmem:[%s3 + $0x60] sm:$0xf]
        %v430 = vld [vmem:[%s3 + $0x64] sm:$0xf]
        %v431 = vld [vmem:[%s3 + $0x68] sm:$0xf]
        %v432 = vld [vmem:[%s3 + $0x6c] sm:$0xf]
        %v433 = vld [vmem:[%s3 + $0x70] sm:$0xf]
        %v434 = vld [vmem:[%s3 + $0x74] sm:$0xf]
        %v435 = vld [vmem:[%s3 + $0x78] sm:$0xf]
        %v436 = vld [vmem:[%s3 + $0x7c] sm:$0xf]
        %438 = vset.pattern.permute.xlu0 0
        %439 = vperm.xlu0 %438, %v341
        %v440 = vpop.permute.xlu0 %439
        %443 = vset.pattern.permute.xlu0 0
        %444 = vperm.xlu0 %443, %v342
        %v445 = vpop.permute.xlu0 %444
        %448 = vset.pattern.permute.xlu0 0
        %449 = vperm.xlu0 %448, %v343
        %v450 = vpop.permute.xlu0 %449
        %453 = vset.pattern.permute.xlu0 0
        %454 = vperm.xlu0 %453, %v344
        %v455 = vpop.permute.xlu0 %454
        %458 = vset.pattern.permute.xlu0 0
        %459 = vperm.xlu0 %458, %v345
        %v460 = vpop.permute.xlu0 %459
        %463 = vset.pattern.permute.xlu0 0
        %464 = vperm.xlu0 %463, %v346
        %v465 = vpop.permute.xlu0 %464
        %468 = vset.pattern.permute.xlu0 0
        %469 = vperm.xlu0 %468, %v347
        %v470 = vpop.permute.xlu0 %469
        %473 = vset.pattern.permute.xlu0 0
        %474 = vperm.xlu0 %473, %v348
        %v475 = vpop.permute.xlu0 %474
        %478 = vset.pattern.permute.xlu0 0
        %479 = vperm.xlu0 %478, %v349
        %v480 = vpop.permute.xlu0 %479
        %483 = vset.pattern.permute.xlu0 0
        %484 = vperm.xlu0 %483, %v350
        %v485 = vpop.permute.xlu0 %484
        %488 = vset.pattern.permute.xlu0 0
        %489 = vperm.xlu0 %488, %v351
        %v490 = vpop.permute.xlu0 %489
        %493 = vset.pattern.permute.xlu0 0
        %494 = vperm.xlu0 %493, %v352
        %v495 = vpop.permute.xlu0 %494
        %498 = vset.pattern.permute.xlu0 0
        %499 = vperm.xlu0 %498, %v353
        %v500 = vpop.permute.xlu0 %499
        %503 = vset.pattern.permute.xlu0 0
        %504 = vperm.xlu0 %503, %v354
        %v505 = vpop.permute.xlu0 %504
        %508 = vset.pattern.permute.xlu0 0
        %509 = vperm.xlu0 %508, %v355
        %v510 = vpop.permute.xlu0 %509
        %513 = vset.pattern.permute.xlu0 0
        %514 = vperm.xlu0 %513, %v356
        %v515 = vpop.permute.xlu0 %514
        %518 = vset.pattern.permute.xlu0 0
        %519 = vperm.xlu0 %518, %v357
        %v520 = vpop.permute.xlu0 %519
        %523 = vset.pattern.permute.xlu0 0
        %524 = vperm.xlu0 %523, %v358
        %v525 = vpop.permute.xlu0 %524
        %528 = vset.pattern.permute.xlu0 0
        %529 = vperm.xlu0 %528, %v359
        %v530 = vpop.permute.xlu0 %529
        %533 = vset.pattern.permute.xlu0 0
        %534 = vperm.xlu0 %533, %v360
        %v535 = vpop.permute.xlu0 %534
        %538 = vset.pattern.permute.xlu0 0
        %539 = vperm.xlu0 %538, %v361
        %v540 = vpop.permute.xlu0 %539
        %543 = vset.pattern.permute.xlu0 0
        %544 = vperm.xlu0 %543, %v362
        %v545 = vpop.permute.xlu0 %544
        %548 = vset.pattern.permute.xlu0 0
        %549 = vperm.xlu0 %548, %v363
        %v550 = vpop.permute.xlu0 %549
        %553 = vset.pattern.permute.xlu0 0
        %554 = vperm.xlu0 %553, %v364
        %v555 = vpop.permute.xlu0 %554
        %558 = vset.pattern.permute.xlu0 0
        %559 = vperm.xlu0 %558, %v365
        %v560 = vpop.permute.xlu0 %559
        %563 = vset.pattern.permute.xlu0 0
        %564 = vperm.xlu0 %563, %v366
        %v565 = vpop.permute.xlu0 %564
        %568 = vset.pattern.permute.xlu0 0
        %569 = vperm.xlu0 %568, %v367
        %v570 = vpop.permute.xlu0 %569
        %573 = vset.pattern.permute.xlu0 0
        %574 = vperm.xlu0 %573, %v368
        %v575 = vpop.permute.xlu0 %574
        %578 = vset.pattern.permute.xlu0 0
        %579 = vperm.xlu0 %578, %v369
        %v580 = vpop.permute.xlu0 %579
        %583 = vset.pattern.permute.xlu0 0
        %584 = vperm.xlu0 %583, %v370
        %v585 = vpop.permute.xlu0 %584
        %588 = vset.pattern.permute.xlu0 0
        %589 = vperm.xlu0 %588, %v371
        %v590 = vpop.permute.xlu0 %589
        %593 = vset.pattern.permute.xlu0 0
        %594 = vperm.xlu0 %593, %v372
        %v595 = vpop.permute.xlu0 %594
        %v629 = vunpack.c.l.b16 %v405
        %v630 = vunpack.c.l.b16 %v406
        %v631 = vunpack.c.l.b16 %v407
        %v632 = vunpack.c.l.b16 %v408
        %v633 = vunpack.c.l.b16 %v409
        %v634 = vunpack.c.l.b16 %v410
        %v635 = vunpack.c.l.b16 %v411
        %v636 = vunpack.c.l.b16 %v412
        %v637 = vunpack.c.l.b16 %v413
        %v638 = vunpack.c.l.b16 %v414
        %v639 = vunpack.c.l.b16 %v415
        %v640 = vunpack.c.l.b16 %v416
        %v641 = vunpack.c.l.b16 %v417
        %v642 = vunpack.c.l.b16 %v418
        %v643 = vunpack.c.l.b16 %v419
        %v644 = vunpack.c.l.b16 %v420
        %v645 = vunpack.c.l.b16 %v421
        %v646 = vunpack.c.l.b16 %v422
        %v647 = vunpack.c.l.b16 %v423
        %v648 = vunpack.c.l.b16 %v424
        %v649 = vunpack.c.l.b16 %v425
        %v650 = vunpack.c.l.b16 %v426
        %v651 = vunpack.c.l.b16 %v427
        %v652 = vunpack.c.l.b16 %v428
        %v653 = vunpack.c.l.b16 %v429
        %v654 = vunpack.c.l.b16 %v430
        %v655 = vunpack.c.l.b16 %v431
        %v656 = vunpack.c.l.b16 %v432
        %v657 = vunpack.c.l.b16 %v433
        %v658 = vunpack.c.l.b16 %v434
        %v659 = vunpack.c.l.b16 %v435
        %v660 = vunpack.c.l.b16 %v436
        %v661 = vpack.c.b16 %v630, %v629
        %v662 = vpack.c.b16 %v632, %v631
        %v663 = vpack.c.b16 %v634, %v633
        %v664 = vpack.c.b16 %v636, %v635
        %v665 = vpack.c.b16 %v638, %v637
        %v666 = vpack.c.b16 %v640, %v639
        %v667 = vpack.c.b16 %v642, %v641
        %v668 = vpack.c.b16 %v644, %v643
        %v669 = vpack.c.b16 %v646, %v645
        %v670 = vpack.c.b16 %v648, %v647
        %v671 = vpack.c.b16 %v650, %v649
        %v672 = vpack.c.b16 %v652, %v651
        %v673 = vpack.c.b16 %v654, %v653
        %v674 = vpack.c.b16 %v656, %v655
        %v675 = vpack.c.b16 %v658, %v657
        %v676 = vpack.c.b16 %v660, %v659
        %vm677 = vcmask 64512
        %v679 = vsel %vm677, %v661, 0
        %v682 = vsel %vm677, %v662, 0
        %v685 = vsel %vm677, %v663, 0
        %v688 = vsel %vm677, %v664, 0
        %v691 = vsel %vm677, %v665, 0
        %v694 = vsel %vm677, %v666, 0
        %v697 = vsel %vm677, %v667, 0
        %v700 = vsel %vm677, %v668, 0
        %v703 = vsel %vm677, %v669, 0
        %v706 = vsel %vm677, %v670, 0
        %v709 = vsel %vm677, %v671, 0
        %v712 = vsel %vm677, %v672, 0
        %v715 = vsel %vm677, %v673, 0
        %v718 = vsel %vm677, %v674, 0
        %v721 = vsel %vm677, %v675, 0
        %v724 = vsel %vm677, %v676, 0
        %vm726 = vcmask 1043456
        %v728 = vsel %vm726, %v340, 0
        %730 = vmatprep.subr.bf16.mxu0 0
        %731 = vmatpush1.bf16.msra.mxu0 0
        %732 = vmatprep.subr.bf16.mxu0 0
        %733 = vmatpush1.bf16.msra.mxu0 0
        %734 = vmatprep.subr.bf16.mxu0 0
        %735 = vmatpush1.bf16.msra.mxu0 0
        %736 = vmatprep.subr.bf16.mxu0 0
        %737 = vmatpush1.bf16.msra.mxu0 0
        %738 = vmatprep.subr.bf16.mxu0 0
        %739 = vmatpush1.bf16.msra.mxu0 0
        %740 = vmatprep.subr.bf16.mxu0 0
        %741 = vmatpush1.bf16.msra.mxu0 0
        %742 = vmatprep.subr.bf16.mxu0 0
        %743 = vmatpush1.bf16.msra.mxu0 0
        %744 = vmatprep.subr.bf16.mxu0 0
        %745 = vmatpush1.bf16.msra.mxu0 %v728
        %746 = vmatprep.subr.bf16.mxu0 0
        %747 = vmatpush2.bf16.msra.mxu0 0
        %748 = vmatprep.subr.bf16.mxu0 0
        %749 = vmatpush2.bf16.msra.mxu0 0
        %750 = vmatprep.subr.bf16.mxu0 0
        %751 = vmatpush2.bf16.msra.mxu0 0
        %752 = vmatprep.subr.bf16.mxu0 0
        %753 = vmatpush2.bf16.msra.mxu0 0
        %754 = vmatprep.subr.bf16.mxu0 0
        %755 = vmatpush2.bf16.msra.mxu0 0
        %756 = vmatprep.subr.bf16.mxu0 0
        %757 = vmatpush2.bf16.msra.mxu0 0
        %758 = vmatprep.subr.bf16.mxu0 0
        %759 = vmatpush2.bf16.msra.mxu0 0
        %760 = vmatprep.subr.bf16.mxu0 0
        %761 = vmatpush2.bf16.msra.mxu0 0
        %762 = vmatprep.mubr.bf16.mxu0 0
        %763 = vmatmul.mubr.bf16.gmra.mxu0 %v679
        %v764 = vpop.f32.mrf.mxu0
        %v765 = vadd.f32 %v440, %v764
        %v766 = vpop.f32.mrf.mxu0
        %v767 = vpop.f32.mrf.mxu0
        %v768 = vadd.f32 %v445, %v767
        %v769 = vpop.f32.mrf.mxu0
        %770 = vmatprep.mubr.bf16.mxu0 0
        %771 = vmatmul.mubr.bf16.gmra.mxu0 %v682
        %v772 = vpop.f32.mrf.mxu0
        %v773 = vadd.f32 %v450, %v772
        %v774 = vpop.f32.mrf.mxu0
        %v775 = vpop.f32.mrf.mxu0
        %v776 = vadd.f32 %v455, %v775
        %v777 = vpop.f32.mrf.mxu0
        %778 = vmatprep.mubr.bf16.mxu0 0
        %779 = vmatmul.mubr.bf16.gmra.mxu0 %v685
        %v780 = vpop.f32.mrf.mxu0
        %v781 = vadd.f32 %v460, %v780
        %v782 = vpop.f32.mrf.mxu0
        %v783 = vpop.f32.mrf.mxu0
        %v784 = vadd.f32 %v465, %v783
        %v785 = vpop.f32.mrf.mxu0
        %786 = vmatprep.mubr.bf16.mxu0 0
        %787 = vmatmul.mubr.bf16.gmra.mxu0 %v688
        %v788 = vpop.f32.mrf.mxu0
        %v789 = vadd.f32 %v470, %v788
        %v790 = vpop.f32.mrf.mxu0
        %v791 = vpop.f32.mrf.mxu0
        %v792 = vadd.f32 %v475, %v791
        %v793 = vpop.f32.mrf.mxu0
        %794 = vmatprep.mubr.bf16.mxu0 0
        %795 = vmatmul.mubr.bf16.gmra.mxu0 %v691
        %v796 = vpop.f32.mrf.mxu0
        %v797 = vadd.f32 %v480, %v796
        %v798 = vpop.f32.mrf.mxu0
        %v799 = vpop.f32.mrf.mxu0
        %v800 = vadd.f32 %v485, %v799
        %v801 = vpop.f32.mrf.mxu0
        %802 = vmatprep.mubr.bf16.mxu0 0
        %803 = vmatmul.mubr.bf16.gmra.mxu0 %v694
        %v804 = vpop.f32.mrf.mxu0
        %v805 = vadd.f32 %v490, %v804
        %v806 = vpop.f32.mrf.mxu0
        %v807 = vpop.f32.mrf.mxu0
        %v808 = vadd.f32 %v495, %v807
        %v809 = vpop.f32.mrf.mxu0
        %810 = vmatprep.mubr.bf16.mxu0 0
        %811 = vmatmul.mubr.bf16.gmra.mxu0 %v697
        %v812 = vpop.f32.mrf.mxu0
        %v813 = vadd.f32 %v500, %v812
        %v814 = vpop.f32.mrf.mxu0
        %v815 = vpop.f32.mrf.mxu0
        %v816 = vadd.f32 %v505, %v815
        %v817 = vpop.f32.mrf.mxu0
        %818 = vmatprep.mubr.bf16.mxu0 0
        %819 = vmatmul.mubr.bf16.gmra.mxu0 %v700
        %v820 = vpop.f32.mrf.mxu0
        %v821 = vadd.f32 %v510, %v820
        %v822 = vpop.f32.mrf.mxu0
        %v823 = vpop.f32.mrf.mxu0
        %v824 = vadd.f32 %v515, %v823
        %v825 = vpop.f32.mrf.mxu0
        %826 = vmatprep.mubr.bf16.mxu0 0
        %827 = vmatmul.mubr.bf16.gmra.mxu0 %v703
        %v828 = vpop.f32.mrf.mxu0
        %v829 = vadd.f32 %v520, %v828
        %v830 = vpop.f32.mrf.mxu0
        %v831 = vpop.f32.mrf.mxu0
        %v832 = vadd.f32 %v525, %v831
        %v833 = vpop.f32.mrf.mxu0
        %834 = vmatprep.mubr.bf16.mxu0 0
        %835 = vmatmul.mubr.bf16.gmra.mxu0 %v706
        %v836 = vpop.f32.mrf.mxu0
        %v837 = vadd.f32 %v530, %v836
        %v838 = vpop.f32.mrf.mxu0
        %v839 = vpop.f32.mrf.mxu0
        %v840 = vadd.f32 %v535, %v839
        %v841 = vpop.f32.mrf.mxu0
        %842 = vmatprep.mubr.bf16.mxu0 0
        %843 = vmatmul.mubr.bf16.gmra.mxu0 %v709
        %v844 = vpop.f32.mrf.mxu0
        %v845 = vadd.f32 %v540, %v844
        %v846 = vpop.f32.mrf.mxu0
        %v847 = vpop.f32.mrf.mxu0
        %v848 = vadd.f32 %v545, %v847
        %v849 = vpop.f32.mrf.mxu0
        %850 = vmatprep.mubr.bf16.mxu0 0
        %851 = vmatmul.mubr.bf16.gmra.mxu0 %v712
        %v852 = vpop.f32.mrf.mxu0
        %v853 = vadd.f32 %v550, %v852
        %v854 = vpop.f32.mrf.mxu0
        %v855 = vpop.f32.mrf.mxu0
        %v856 = vadd.f32 %v555, %v855
        %v857 = vpop.f32.mrf.mxu0
        %858 = vmatprep.mubr.bf16.mxu0 0
        %859 = vmatmul.mubr.bf16.gmra.mxu0 %v715
        %v860 = vpop.f32.mrf.mxu0
        %v861 = vadd.f32 %v560, %v860
        %v862 = vpop.f32.mrf.mxu0
        %v863 = vpop.f32.mrf.mxu0
        %v864 = vadd.f32 %v565, %v863
        %v865 = vpop.f32.mrf.mxu0
        %866 = vmatprep.mubr.bf16.mxu0 0
        %867 = vmatmul.mubr.bf16.gmra.mxu0 %v718
        %v868 = vpop.f32.mrf.mxu0
        %v869 = vadd.f32 %v570, %v868
        %v870 = vpop.f32.mrf.mxu0
        %v871 = vpop.f32.mrf.mxu0
        %v872 = vadd.f32 %v575, %v871
        %v873 = vpop.f32.mrf.mxu0
        %874 = vmatprep.mubr.bf16.mxu0 0
        %875 = vmatmul.mubr.bf16.gmra.mxu0 %v721
        %v876 = vpop.f32.mrf.mxu0
        %v877 = vadd.f32 %v580, %v876
        %v878 = vpop.f32.mrf.mxu0
        %v879 = vpop.f32.mrf.mxu0
        %v880 = vadd.f32 %v585, %v879
        %v881 = vpop.f32.mrf.mxu0
        %882 = vmatprep.mubr.bf16.mxu0 0
        %883 = vmatmul.mubr.bf16.gmra.mxu0 %v724
        %v884 = vpop.f32.mrf.mxu0
        %v885 = vadd.f32 %v590, %v884
        %v886 = vpop.f32.mrf.mxu0
        %v887 = vpop.f32.mrf.mxu0
        %v888 = vadd.f32 %v595, %v887
        %v889 = vpop.f32.mrf.mxu0
        %890 = vdwg.mxu0
        %v891 = vmul.f32 %v765, %v765
        %v892 = vmul.f32 %v768, %v768
        %v893 = vmul.f32 %v773, %v773
        %v894 = vmul.f32 %v776, %v776
        %v895 = vmul.f32 %v781, %v781
        %v896 = vmul.f32 %v784, %v784
        %v897 = vmul.f32 %v789, %v789
        %v898 = vmul.f32 %v792, %v792
        %v899 = vmul.f32 %v797, %v797
        %v900 = vmul.f32 %v800, %v800
        %v901 = vmul.f32 %v805, %v805
        %v902 = vmul.f32 %v808, %v808
        %v903 = vmul.f32 %v813, %v813
        %v904 = vmul.f32 %v816, %v816
        %v905 = vmul.f32 %v821, %v821
        %v906 = vmul.f32 %v824, %v824
        %v907 = vmul.f32 %v829, %v829
        %v908 = vmul.f32 %v832, %v832
        %v909 = vmul.f32 %v837, %v837
        %v910 = vmul.f32 %v840, %v840
        %v911 = vmul.f32 %v845, %v845
        %v912 = vmul.f32 %v848, %v848
        %v913 = vmul.f32 %v853, %v853
        %v914 = vmul.f32 %v856, %v856
        %v915 = vmul.f32 %v861, %v861
        %v916 = vmul.f32 %v864, %v864
        %v917 = vmul.f32 %v869, %v869
        %v918 = vmul.f32 %v872, %v872
        %v919 = vmul.f32 %v877, %v877
        %v920 = vmul.f32 %v880, %v880
        %v921 = vmul.f32 %v885, %v885
        %v922 = vmul.f32 %v888, %v888
        %v923 = vmul.f32 %v765, %v891
        %v924 = vmul.f32 %v768, %v892
        %v925 = vmul.f32 %v773, %v893
        %v926 = vmul.f32 %v776, %v894
        %v927 = vmul.f32 %v781, %v895
        %v928 = vmul.f32 %v784, %v896
        %v929 = vmul.f32 %v789, %v897
        %v930 = vmul.f32 %v792, %v898
        %v931 = vmul.f32 %v797, %v899
        %v932 = vmul.f32 %v800, %v900
        %v933 = vmul.f32 %v805, %v901
        %v934 = vmul.f32 %v808, %v902
        %v935 = vmul.f32 %v813, %v903
        %v936 = vmul.f32 %v816, %v904
        %v937 = vmul.f32 %v821, %v905
        %v938 = vmul.f32 %v824, %v906
        %v939 = vmul.f32 %v829, %v907
        %v940 = vmul.f32 %v832, %v908
        %v941 = vmul.f32 %v837, %v909
        %v942 = vmul.f32 %v840, %v910
        %v943 = vmul.f32 %v845, %v911
        %v944 = vmul.f32 %v848, %v912
        %v945 = vmul.f32 %v853, %v913
        %v946 = vmul.f32 %v856, %v914
        %v947 = vmul.f32 %v861, %v915
        %v948 = vmul.f32 %v864, %v916
        %v949 = vmul.f32 %v869, %v917
        %v950 = vmul.f32 %v872, %v918
        %v951 = vmul.f32 %v877, %v919
        %v952 = vmul.f32 %v880, %v920
        %v953 = vmul.f32 %v885, %v921
        %v954 = vmul.f32 %v888, %v922
        %v955 = vmul.f32 %v923, 0.044715
        %v956 = vmul.f32 %v924, 0.044715
        %v957 = vmul.f32 %v925, 0.044715
        %v958 = vmul.f32 %v926, 0.044715
        %v959 = vmul.f32 %v927, 0.044715
        %v960 = vmul.f32 %v928, 0.044715
        %v961 = vmul.f32 %v929, 0.044715
        %v962 = vmul.f32 %v930, 0.044715
        %v963 = vmul.f32 %v931, 0.044715
        %v964 = vmul.f32 %v932, 0.044715
        %v965 = vmul.f32 %v933, 0.044715
        %v966 = vmul.f32 %v934, 0.044715
        %v967 = vmul.f32 %v935, 0.044715
        %v968 = vmul.f32 %v936, 0.044715
        %v969 = vmul.f32 %v937, 0.044715
        %v970 = vmul.f32 %v938, 0.044715
        %v971 = vmul.f32 %v939, 0.044715
        %v972 = vmul.f32 %v940, 0.044715
        %v973 = vmul.f32 %v941, 0.044715
        %v974 = vmul.f32 %v942, 0.044715
        %v975 = vmul.f32 %v943, 0.044715
        %v976 = vmul.f32 %v944, 0.044715
        %v977 = vmul.f32 %v945, 0.044715
        %v978 = vmul.f32 %v946, 0.044715
        %v979 = vmul.f32 %v947, 0.044715
        %v980 = vmul.f32 %v948, 0.044715
        %v981 = vmul.f32 %v949, 0.044715
        %v982 = vmul.f32 %v950, 0.044715
        %v983 = vmul.f32 %v951, 0.044715
        %v984 = vmul.f32 %v952, 0.044715
        %v985 = vmul.f32 %v953, 0.044715
        %v986 = vmul.f32 %v954, 0.044715
        %v987 = vadd.f32 %v765, %v955
        %v988 = vadd.f32 %v768, %v956
        %v989 = vadd.f32 %v773, %v957
        %v990 = vadd.f32 %v776, %v958
        %v991 = vadd.f32 %v781, %v959
        %v992 = vadd.f32 %v784, %v960
        %v993 = vadd.f32 %v789, %v961
        %v994 = vadd.f32 %v792, %v962
        %v995 = vadd.f32 %v797, %v963
        %v996 = vadd.f32 %v800, %v964
        %v997 = vadd.f32 %v805, %v965
        %v998 = vadd.f32 %v808, %v966
        %v999 = vadd.f32 %v813, %v967
        %v1000 = vadd.f32 %v816, %v968
        %v1001 = vadd.f32 %v821, %v969
        %v1002 = vadd.f32 %v824, %v970
        %v1003 = vadd.f32 %v829, %v971
        %v1004 = vadd.f32 %v832, %v972
        %v1005 = vadd.f32 %v837, %v973
        %v1006 = vadd.f32 %v840, %v974
        %v1007 = vadd.f32 %v845, %v975
        %v1008 = vadd.f32 %v848, %v976
        %v1009 = vadd.f32 %v853, %v977
        %v1010 = vadd.f32 %v856, %v978
        %v1011 = vadd.f32 %v861, %v979
        %v1012 = vadd.f32 %v864, %v980
        %v1013 = vadd.f32 %v869, %v981
        %v1014 = vadd.f32 %v872, %v982
        %v1015 = vadd.f32 %v877, %v983
        %v1016 = vadd.f32 %v880, %v984
        %v1017 = vadd.f32 %v885, %v985
        %v1018 = vadd.f32 %v888, %v986
        %v1019 = vmul.f32 %v987, 0.7978846
        %v1020 = vmul.f32 %v988, 0.7978846
        %v1021 = vmul.f32 %v989, 0.7978846
        %v1022 = vmul.f32 %v990, 0.7978846
        %v1023 = vmul.f32 %v991, 0.7978846
        %v1024 = vmul.f32 %v992, 0.7978846
        %v1025 = vmul.f32 %v993, 0.7978846
        %v1026 = vmul.f32 %v994, 0.7978846
        %v1027 = vmul.f32 %v995, 0.7978846
        %v1028 = vmul.f32 %v996, 0.7978846
        %v1029 = vmul.f32 %v997, 0.7978846
        %v1030 = vmul.f32 %v998, 0.7978846
        %v1031 = vmul.f32 %v999, 0.7978846
        %v1032 = vmul.f32 %v1000, 0.7978846
        %v1033 = vmul.f32 %v1001, 0.7978846
        %v1034 = vmul.f32 %v1002, 0.7978846
        %v1035 = vmul.f32 %v1003, 0.7978846
        %v1036 = vmul.f32 %v1004, 0.7978846
        %v1037 = vmul.f32 %v1005, 0.7978846
        %v1038 = vmul.f32 %v1006, 0.7978846
        %v1039 = vmul.f32 %v1007, 0.7978846
        %v1040 = vmul.f32 %v1008, 0.7978846
        %v1041 = vmul.f32 %v1009, 0.7978846
        %v1042 = vmul.f32 %v1010, 0.7978846
        %v1043 = vmul.f32 %v1011, 0.7978846
        %v1044 = vmul.f32 %v1012, 0.7978846
        %v1045 = vmul.f32 %v1013, 0.7978846
        %v1046 = vmul.f32 %v1014, 0.7978846
        %v1047 = vmul.f32 %v1015, 0.7978846
        %v1048 = vmul.f32 %v1016, 0.7978846
        %v1049 = vmul.f32 %v1017, 0.7978846
        %v1050 = vmul.f32 %v1018, 0.7978846
        %v1051 = vtanh.pop %v1019
        %v1052 = vtanh.pop %v1020
        %v1053 = vtanh.pop %v1021
        %v1054 = vtanh.pop %v1022
        %v1055 = vtanh.pop %v1023
        %v1056 = vtanh.pop %v1024
        %v1057 = vtanh.pop %v1025
        %v1058 = vtanh.pop %v1026
        %v1059 = vtanh.pop %v1027
        %v1060 = vtanh.pop %v1028
        %v1061 = vtanh.pop %v1029
        %v1062 = vtanh.pop %v1030
        %v1063 = vtanh.pop %v1031
        %v1064 = vtanh.pop %v1032
        %v1065 = vtanh.pop %v1033
        %v1066 = vtanh.pop %v1034
        %v1067 = vtanh.pop %v1035
        %v1068 = vtanh.pop %v1036
        %v1069 = vtanh.pop %v1037
        %v1070 = vtanh.pop %v1038
        %v1071 = vtanh.pop %v1039
        %v1072 = vtanh.pop %v1040
        %v1073 = vtanh.pop %v1041
        %v1074 = vtanh.pop %v1042
        %v1075 = vtanh.pop %v1043
        %v1076 = vtanh.pop %v1044
        %v1077 = vtanh.pop %v1045
        %v1078 = vtanh.pop %v1046
        %v1079 = vtanh.pop %v1047
        %v1080 = vtanh.pop %v1048
        %v1081 = vtanh.pop %v1049
        %v1082 = vtanh.pop %v1050
        %v1083 = vadd.f32 %v1051, 1.0
        %v1084 = vadd.f32 %v1052, 1.0
        %v1085 = vadd.f32 %v1053, 1.0
        %v1086 = vadd.f32 %v1054, 1.0
        %v1087 = vadd.f32 %v1055, 1.0
        %v1088 = vadd.f32 %v1056, 1.0
        %v1089 = vadd.f32 %v1057, 1.0
        %v1090 = vadd.f32 %v1058, 1.0
        %v1091 = vadd.f32 %v1059, 1.0
        %v1092 = vadd.f32 %v1060, 1.0
        %v1093 = vadd.f32 %v1061, 1.0
        %v1094 = vadd.f32 %v1062, 1.0
        %v1095 = vadd.f32 %v1063, 1.0
        %v1096 = vadd.f32 %v1064, 1.0
        %v1097 = vadd.f32 %v1065, 1.0
        %v1098 = vadd.f32 %v1066, 1.0
        %v1099 = vadd.f32 %v1067, 1.0
        %v1100 = vadd.f32 %v1068, 1.0
        %v1101 = vadd.f32 %v1069, 1.0
        %v1102 = vadd.f32 %v1070, 1.0
        %v1103 = vadd.f32 %v1071, 1.0
        %v1104 = vadd.f32 %v1072, 1.0
        %v1105 = vadd.f32 %v1073, 1.0
        %v1106 = vadd.f32 %v1074, 1.0
        %v1107 = vadd.f32 %v1075, 1.0
        %v1108 = vadd.f32 %v1076, 1.0
        %v1109 = vadd.f32 %v1077, 1.0
        %v1110 = vadd.f32 %v1078, 1.0
        %v1111 = vadd.f32 %v1079, 1.0
        %v1112 = vadd.f32 %v1080, 1.0
        %v1113 = vadd.f32 %v1081, 1.0
        %v1114 = vadd.f32 %v1082, 1.0
        %v1115 = vmul.f32 %v1083, 0.5
        %v1116 = vmul.f32 %v1084, 0.5
        %v1117 = vmul.f32 %v1085, 0.5
        %v1118 = vmul.f32 %v1086, 0.5
        %v1119 = vmul.f32 %v1087, 0.5
        %v1120 = vmul.f32 %v1088, 0.5
        %v1121 = vmul.f32 %v1089, 0.5
        %v1122 = vmul.f32 %v1090, 0.5
        %v1123 = vmul.f32 %v1091, 0.5
        %v1124 = vmul.f32 %v1092, 0.5
        %v1125 = vmul.f32 %v1093, 0.5
        %v1126 = vmul.f32 %v1094, 0.5
        %v1127 = vmul.f32 %v1095, 0.5
        %v1128 = vmul.f32 %v1096, 0.5
        %v1129 = vmul.f32 %v1097, 0.5
        %v1130 = vmul.f32 %v1098, 0.5
        %v1131 = vmul.f32 %v1099, 0.5
        %v1132 = vmul.f32 %v1100, 0.5
        %v1133 = vmul.f32 %v1101, 0.5
        %v1134 = vmul.f32 %v1102, 0.5
        %v1135 = vmul.f32 %v1103, 0.5
        %v1136 = vmul.f32 %v1104, 0.5
        %v1137 = vmul.f32 %v1105, 0.5
        %v1138 = vmul.f32 %v1106, 0.5
        %v1139 = vmul.f32 %v1107, 0.5
        %v1140 = vmul.f32 %v1108, 0.5
        %v1141 = vmul.f32 %v1109, 0.5
        %v1142 = vmul.f32 %v1110, 0.5
        %v1143 = vmul.f32 %v1111, 0.5
        %v1144 = vmul.f32 %v1112, 0.5
        %v1145 = vmul.f32 %v1113, 0.5
        %v1146 = vmul.f32 %v1114, 0.5
        %v1147 = vmul.f32 %v765, %v1115
        %v1148 = vmul.f32 %v768, %v1116
        %v1149 = vmul.f32 %v773, %v1117
        %v1150 = vmul.f32 %v776, %v1118
        %v1151 = vmul.f32 %v781, %v1119
        %v1152 = vmul.f32 %v784, %v1120
        %v1153 = vmul.f32 %v789, %v1121
        %v1154 = vmul.f32 %v792, %v1122
        %v1155 = vmul.f32 %v797, %v1123
        %v1156 = vmul.f32 %v800, %v1124
        %v1157 = vmul.f32 %v805, %v1125
        %v1158 = vmul.f32 %v808, %v1126
        %v1159 = vmul.f32 %v813, %v1127
        %v1160 = vmul.f32 %v816, %v1128
        %v1161 = vmul.f32 %v821, %v1129
        %v1162 = vmul.f32 %v824, %v1130
        %v1163 = vmul.f32 %v829, %v1131
        %v1164 = vmul.f32 %v832, %v1132
        %v1165 = vmul.f32 %v837, %v1133
        %v1166 = vmul.f32 %v840, %v1134
        %v1167 = vmul.f32 %v845, %v1135
        %v1168 = vmul.f32 %v848, %v1136
        %v1169 = vmul.f32 %v853, %v1137
        %v1170 = vmul.f32 %v856, %v1138
        %v1171 = vmul.f32 %v861, %v1139
        %v1172 = vmul.f32 %v864, %v1140
        %v1173 = vmul.f32 %v869, %v1141
        %v1174 = vmul.f32 %v872, %v1142
        %v1175 = vmul.f32 %v877, %v1143
        %v1176 = vmul.f32 %v880, %v1144
        %v1177 = vmul.f32 %v885, %v1145
        %v1178 = vmul.f32 %v888, %v1146
        %v1179 = vld [vmem:[%s4] sm:$0xff]
        %v1180 = vld [vmem:[%s4 + $0x8] sm:$0xff]
        %v1181 = vld [vmem:[%s4 + $0x10] sm:$0xff]
        %v1182 = vld [vmem:[%s4 + $0x18] sm:$0xff]
        %v1183 = vld [vmem:[%s4 + $0x20] sm:$0xff]
        %v1184 = vld [vmem:[%s4 + $0x28] sm:$0xff]
        %v1185 = vld [vmem:[%s4 + $0x30] sm:$0xff]
        %v1186 = vld [vmem:[%s4 + $0x38] sm:$0xff]
        %v1187 = vld [vmem:[%s4 + $0x40] sm:$0xff]
        %v1188 = vld [vmem:[%s4 + $0x48] sm:$0xff]
        %v1189 = vld [vmem:[%s4 + $0x50] sm:$0xff]
        %v1190 = vld [vmem:[%s4 + $0x58] sm:$0xff]
        %v1191 = vld [vmem:[%s4 + $0x60] sm:$0xff]
        %v1192 = vld [vmem:[%s4 + $0x68] sm:$0xff]
        %v1193 = vld [vmem:[%s4 + $0x70] sm:$0xff]
        %v1194 = vld [vmem:[%s4 + $0x78] sm:$0xff]
        %v1195 = vld [vmem:[%s4 + $0x80] sm:$0xff]
        %v1196 = vld [vmem:[%s4 + $0x88] sm:$0xff]
        %v1197 = vld [vmem:[%s4 + $0x90] sm:$0xff]
        %v1198 = vld [vmem:[%s4 + $0x98] sm:$0xff]
        %v1199 = vld [vmem:[%s4 + $0xa0] sm:$0xff]
        %v1200 = vld [vmem:[%s4 + $0xa8] sm:$0xff]
        %v1201 = vld [vmem:[%s4 + $0xb0] sm:$0xff]
        %v1202 = vld [vmem:[%s4 + $0xb8] sm:$0xff]
        %v1203 = vld [vmem:[%s4 + $0xc0] sm:$0xff]
        %v1204 = vld [vmem:[%s4 + $0xc8] sm:$0xff]
        %v1205 = vld [vmem:[%s4 + $0xd0] sm:$0xff]
        %v1206 = vld [vmem:[%s4 + $0xd8] sm:$0xff]
        %v1207 = vld [vmem:[%s4 + $0xe0] sm:$0xff]
        %v1208 = vld [vmem:[%s4 + $0xe8] sm:$0xff]
        %v1209 = vld [vmem:[%s4 + $0xf0] sm:$0xff]
        %v1210 = vld [vmem:[%s4 + $0xf8] sm:$0xff]
        %v1211 = vpack.c.bf16 %v1148, %v1147
        %v1212 = vpack.c.bf16 %v1150, %v1149
        %v1213 = vpack.c.bf16 %v1152, %v1151
        %v1214 = vpack.c.bf16 %v1154, %v1153
        %v1215 = vpack.c.bf16 %v1156, %v1155
        %v1216 = vpack.c.bf16 %v1158, %v1157
        %v1217 = vpack.c.bf16 %v1160, %v1159
        %v1218 = vpack.c.bf16 %v1162, %v1161
        %v1219 = vpack.c.bf16 %v1164, %v1163
        %v1220 = vpack.c.bf16 %v1166, %v1165
        %v1221 = vpack.c.bf16 %v1168, %v1167
        %v1222 = vpack.c.bf16 %v1170, %v1169
        %v1223 = vpack.c.bf16 %v1172, %v1171
        %v1224 = vpack.c.bf16 %v1174, %v1173
        %v1225 = vpack.c.bf16 %v1176, %v1175
        %v1226 = vpack.c.bf16 %v1178, %v1177
        %1228 = vset.pattern.permute.xlu0 0
        %1229 = vperm.xlu0 %1228, %v373
        %v1230 = vpop.permute.xlu0 %1229
        %1233 = vset.pattern.permute.xlu0 0
        %1234 = vperm.xlu0 %1233, %v374
        %v1235 = vpop.permute.xlu0 %1234
        %1238 = vset.pattern.permute.xlu0 0
        %1239 = vperm.xlu0 %1238, %v375
        %v1240 = vpop.permute.xlu0 %1239
        %1243 = vset.pattern.permute.xlu0 0
        %1244 = vperm.xlu0 %1243, %v376
        %v1245 = vpop.permute.xlu0 %1244
        %1248 = vset.pattern.permute.xlu0 0
        %1249 = vperm.xlu0 %1248, %v377
        %v1250 = vpop.permute.xlu0 %1249
        %1253 = vset.pattern.permute.xlu0 0
        %1254 = vperm.xlu0 %1253, %v378
        %v1255 = vpop.permute.xlu0 %1254
        %1258 = vset.pattern.permute.xlu0 0
        %1259 = vperm.xlu0 %1258, %v379
        %v1260 = vpop.permute.xlu0 %1259
        %1263 = vset.pattern.permute.xlu0 0
        %1264 = vperm.xlu0 %1263, %v380
        %v1265 = vpop.permute.xlu0 %1264
        %1268 = vset.pattern.permute.xlu0 0
        %1269 = vperm.xlu0 %1268, %v381
        %v1270 = vpop.permute.xlu0 %1269
        %1273 = vset.pattern.permute.xlu0 0
        %1274 = vperm.xlu0 %1273, %v382
        %v1275 = vpop.permute.xlu0 %1274
        %1278 = vset.pattern.permute.xlu0 0
        %1279 = vperm.xlu0 %1278, %v383
        %v1280 = vpop.permute.xlu0 %1279
        %1283 = vset.pattern.permute.xlu0 0
        %1284 = vperm.xlu0 %1283, %v384
        %v1285 = vpop.permute.xlu0 %1284
        %1288 = vset.pattern.permute.xlu0 0
        %1289 = vperm.xlu0 %1288, %v385
        %v1290 = vpop.permute.xlu0 %1289
        %1293 = vset.pattern.permute.xlu0 0
        %1294 = vperm.xlu0 %1293, %v386
        %v1295 = vpop.permute.xlu0 %1294
        %1298 = vset.pattern.permute.xlu0 0
        %1299 = vperm.xlu0 %1298, %v387
        %v1300 = vpop.permute.xlu0 %1299
        %1303 = vset.pattern.permute.xlu0 0
        %1304 = vperm.xlu0 %1303, %v388
        %v1305 = vpop.permute.xlu0 %1304
        %1308 = vset.pattern.permute.xlu0 0
        %1309 = vperm.xlu0 %1308, %v389
        %v1310 = vpop.permute.xlu0 %1309
        %1313 = vset.pattern.permute.xlu0 0
        %1314 = vperm.xlu0 %1313, %v390
        %v1315 = vpop.permute.xlu0 %1314
        %1318 = vset.pattern.permute.xlu0 0
        %1319 = vperm.xlu0 %1318, %v391
        %v1320 = vpop.permute.xlu0 %1319
        %1323 = vset.pattern.permute.xlu0 0
        %1324 = vperm.xlu0 %1323, %v392
        %v1325 = vpop.permute.xlu0 %1324
        %1328 = vset.pattern.permute.xlu0 0
        %1329 = vperm.xlu0 %1328, %v393
        %v1330 = vpop.permute.xlu0 %1329
        %1333 = vset.pattern.permute.xlu0 0
        %1334 = vperm.xlu0 %1333, %v394
        %v1335 = vpop.permute.xlu0 %1334
        %1338 = vset.pattern.permute.xlu0 0
        %1339 = vperm.xlu0 %1338, %v395
        %v1340 = vpop.permute.xlu0 %1339
        %1343 = vset.pattern.permute.xlu0 0
        %1344 = vperm.xlu0 %1343, %v396
        %v1345 = vpop.permute.xlu0 %1344
        %1348 = vset.pattern.permute.xlu0 0
        %1349 = vperm.xlu0 %1348, %v397
        %v1350 = vpop.permute.xlu0 %1349
        %1353 = vset.pattern.permute.xlu0 0
        %1354 = vperm.xlu0 %1353, %v398
        %v1355 = vpop.permute.xlu0 %1354
        %1358 = vset.pattern.permute.xlu0 0
        %1359 = vperm.xlu0 %1358, %v399
        %v1360 = vpop.permute.xlu0 %1359
        %1363 = vset.pattern.permute.xlu0 0
        %1364 = vperm.xlu0 %1363, %v400
        %v1365 = vpop.permute.xlu0 %1364
        %1368 = vset.pattern.permute.xlu0 0
        %1369 = vperm.xlu0 %1368, %v401
        %v1370 = vpop.permute.xlu0 %1369
        %1373 = vset.pattern.permute.xlu0 0
        %1374 = vperm.xlu0 %1373, %v402
        %v1375 = vpop.permute.xlu0 %1374
        %1378 = vset.pattern.permute.xlu0 0
        %1379 = vperm.xlu0 %1378, %v403
        %v1380 = vpop.permute.xlu0 %1379
        %1383 = vset.pattern.permute.xlu0 0
        %1384 = vperm.xlu0 %1383, %v404
        %v1385 = vpop.permute.xlu0 %1384
        %v1419 = vunpack.c.l.b16 %v1179
        %v1420 = vunpack.c.h.b16 %v1179
        %v1421 = vunpack.c.l.b16 %v1180
        %v1422 = vunpack.c.h.b16 %v1180
        %v1423 = vunpack.c.l.b16 %v1181
        %v1424 = vunpack.c.h.b16 %v1181
        %v1425 = vunpack.c.l.b16 %v1182
        %v1426 = vunpack.c.h.b16 %v1182
        %v1427 = vunpack.c.l.b16 %v1183
        %v1428 = vunpack.c.h.b16 %v1183
        %v1429 = vunpack.c.l.b16 %v1184
        %v1430 = vunpack.c.h.b16 %v1184
        %v1431 = vunpack.c.l.b16 %v1185
        %v1432 = vunpack.c.h.b16 %v1185
        %v1433 = vunpack.c.l.b16 %v1186
        %v1434 = vunpack.c.h.b16 %v1186
        %v1435 = vunpack.c.l.b16 %v1187
        %v1436 = vunpack.c.h.b16 %v1187
        %v1437 = vunpack.c.l.b16 %v1188
        %v1438 = vunpack.c.h.b16 %v1188
        %v1439 = vunpack.c.l.b16 %v1189
        %v1440 = vunpack.c.h.b16 %v1189
        %v1441 = vunpack.c.l.b16 %v1190
        %v1442 = vunpack.c.h.b16 %v1190
        %v1443 = vunpack.c.l.b16 %v1191
        %v1444 = vunpack.c.h.b16 %v1191
        %v1445 = vunpack.c.l.b16 %v1192
        %v1446 = vunpack.c.h.b16 %v1192
        %v1447 = vunpack.c.l.b16 %v1193
        %v1448 = vunpack.c.h.b16 %v1193
        %v1449 = vunpack.c.l.b16 %v1194
        %v1450 = vunpack.c.h.b16 %v1194
        %v1451 = vunpack.c.l.b16 %v1195
        %v1452 = vunpack.c.h.b16 %v1195
        %v1453 = vunpack.c.l.b16 %v1196
        %v1454 = vunpack.c.h.b16 %v1196
        %v1455 = vunpack.c.l.b16 %v1197
        %v1456 = vunpack.c.h.b16 %v1197
        %v1457 = vunpack.c.l.b16 %v1198
        %v1458 = vunpack.c.h.b16 %v1198
        %v1459 = vunpack.c.l.b16 %v1199
        %v1460 = vunpack.c.h.b16 %v1199
        %v1461 = vunpack.c.l.b16 %v1200
        %v1462 = vunpack.c.h.b16 %v1200
        %v1463 = vunpack.c.l.b16 %v1201
        %v1464 = vunpack.c.h.b16 %v1201
        %v1465 = vunpack.c.l.b16 %v1202
        %v1466 = vunpack.c.h.b16 %v1202
        %v1467 = vunpack.c.l.b16 %v1203
        %v1468 = vunpack.c.h.b16 %v1203
        %v1469 = vunpack.c.l.b16 %v1204
        %v1470 = vunpack.c.h.b16 %v1204
        %v1471 = vunpack.c.l.b16 %v1205
        %v1472 = vunpack.c.h.b16 %v1205
        %v1473 = vunpack.c.l.b16 %v1206
        %v1474 = vunpack.c.h.b16 %v1206
        %v1475 = vunpack.c.l.b16 %v1207
        %v1476 = vunpack.c.h.b16 %v1207
        %v1477 = vunpack.c.l.b16 %v1208
        %v1478 = vunpack.c.h.b16 %v1208
        %v1479 = vunpack.c.l.b16 %v1209
        %v1480 = vunpack.c.h.b16 %v1209
        %v1481 = vunpack.c.l.b16 %v1210
        %v1482 = vunpack.c.h.b16 %v1210
        %v1483 = vpack.c.b16 %v1421, %v1419
        %v1484 = vpack.c.b16 %v1422, %v1420
        %v1485 = vpack.c.b16 %v1425, %v1423
        %v1486 = vpack.c.b16 %v1426, %v1424
        %v1487 = vpack.c.b16 %v1429, %v1427
        %v1488 = vpack.c.b16 %v1430, %v1428
        %v1489 = vpack.c.b16 %v1433, %v1431
        %v1490 = vpack.c.b16 %v1434, %v1432
        %v1491 = vpack.c.b16 %v1437, %v1435
        %v1492 = vpack.c.b16 %v1438, %v1436
        %v1493 = vpack.c.b16 %v1441, %v1439
        %v1494 = vpack.c.b16 %v1442, %v1440
        %v1495 = vpack.c.b16 %v1445, %v1443
        %v1496 = vpack.c.b16 %v1446, %v1444
        %v1497 = vpack.c.b16 %v1449, %v1447
        %v1498 = vpack.c.b16 %v1450, %v1448
        %v1499 = vpack.c.b16 %v1453, %v1451
        %v1500 = vpack.c.b16 %v1454, %v1452
        %v1501 = vpack.c.b16 %v1457, %v1455
        %v1502 = vpack.c.b16 %v1458, %v1456
        %v1503 = vpack.c.b16 %v1461, %v1459
        %v1504 = vpack.c.b16 %v1462, %v1460
        %v1505 = vpack.c.b16 %v1465, %v1463
        %v1506 = vpack.c.b16 %v1466, %v1464
        %v1507 = vpack.c.b16 %v1469, %v1467
        %v1508 = vpack.c.b16 %v1470, %v1468
        %v1509 = vpack.c.b16 %v1473, %v1471
        %v1510 = vpack.c.b16 %v1474, %v1472
        %v1511 = vpack.c.b16 %v1477, %v1475
        %v1512 = vpack.c.b16 %v1478, %v1476
        %v1513 = vpack.c.b16 %v1481, %v1479
        %v1514 = vpack.c.b16 %v1482, %v1480
        %1547 = vmatprep.subr.bf16.mxu0 0
        %1548 = vmatpush1.bf16.msra.mxu0 %v1218
        %1549 = vmatprep.subr.bf16.mxu0 0
        %1550 = vmatpush1.bf16.msra.mxu0 %v1217
        %1551 = vmatprep.subr.bf16.mxu0 0
        %1552 = vmatpush1.bf16.msra.mxu0 %v1216
        %1553 = vmatprep.subr.bf16.mxu0 0
        %1554 = vmatpush1.bf16.msra.mxu0 %v1215
        %1555 = vmatprep.subr.bf16.mxu0 0
        %1556 = vmatpush1.bf16.msra.mxu0 %v1214
        %1557 = vmatprep.subr.bf16.mxu0 0
        %1558 = vmatpush1.bf16.msra.mxu0 %v1213
        %1559 = vmatprep.subr.bf16.mxu0 0
        %1560 = vmatpush1.bf16.msra.mxu0 %v1212
        %1561 = vmatprep.subr.bf16.mxu0 0
        %1562 = vmatpush1.bf16.msra.mxu0 %v1211
        %1563 = vmatprep.subr.bf16.mxu0 0
        %1564 = vmatpush2.bf16.msra.mxu0 %v1226
        %1565 = vmatprep.subr.bf16.mxu0 0
        %1566 = vmatpush2.bf16.msra.mxu0 %v1225
        %1567 = vmatprep.subr.bf16.mxu0 0
        %1568 = vmatpush2.bf16.msra.mxu0 %v1224
        %1569 = vmatprep.subr.bf16.mxu0 0
        %1570 = vmatpush2.bf16.msra.mxu0 %v1223
        %1571 = vmatprep.subr.bf16.mxu0 0
        %1572 = vmatpush2.bf16.msra.mxu0 %v1222
        %1573 = vmatprep.subr.bf16.mxu0 0
        %1574 = vmatpush2.bf16.msra.mxu0 %v1221
        %1575 = vmatprep.subr.bf16.mxu0 0
        %1576 = vmatpush2.bf16.msra.mxu0 %v1220
        %1577 = vmatprep.subr.bf16.mxu0 0
        %1578 = vmatpush2.bf16.msra.mxu0 %v1219
        %1579 = vmatprep.mubr.bf16.mxu0 %v1484
        %1580 = vmatmul.mubr.bf16.gmra.mxu0 %v1483
        %v1581 = vpop.f32.mrf.mxu0
        %v1582 = vadd.f32 %v1230, %v1581
        %v1583 = vpop.f32.mrf.mxu0
        %v1584 = vpop.f32.mrf.mxu0
        %v1585 = vadd.f32 %v1235, %v1584
        %v1586 = vpop.f32.mrf.mxu0
        %1587 = vmatprep.mubr.bf16.mxu0 %v1486
        %1588 = vmatmul.mubr.bf16.gmra.mxu0 %v1485
        %v1589 = vpop.f32.mrf.mxu0
        %v1590 = vadd.f32 %v1240, %v1589
        %v1591 = vpop.f32.mrf.mxu0
        %v1592 = vpop.f32.mrf.mxu0
        %v1593 = vadd.f32 %v1245, %v1592
        %v1594 = vpop.f32.mrf.mxu0
        %1595 = vmatprep.mubr.bf16.mxu0 %v1488
        %1596 = vmatmul.mubr.bf16.gmra.mxu0 %v1487
        %v1597 = vpop.f32.mrf.mxu0
        %v1598 = vadd.f32 %v1250, %v1597
        %v1599 = vpop.f32.mrf.mxu0
        %v1600 = vpop.f32.mrf.mxu0
        %v1601 = vadd.f32 %v1255, %v1600
        %v1602 = vpop.f32.mrf.mxu0
        %1603 = vmatprep.mubr.bf16.mxu0 %v1490
        %1604 = vmatmul.mubr.bf16.gmra.mxu0 %v1489
        %v1605 = vpop.f32.mrf.mxu0
        %v1606 = vadd.f32 %v1260, %v1605
        %v1607 = vpop.f32.mrf.mxu0
        %v1608 = vpop.f32.mrf.mxu0
        %v1609 = vadd.f32 %v1265, %v1608
        %v1610 = vpop.f32.mrf.mxu0
        %1611 = vmatprep.mubr.bf16.mxu0 %v1492
        %1612 = vmatmul.mubr.bf16.gmra.mxu0 %v1491
        %v1613 = vpop.f32.mrf.mxu0
        %v1614 = vadd.f32 %v1270, %v1613
        %v1615 = vpop.f32.mrf.mxu0
        %v1616 = vpop.f32.mrf.mxu0
        %v1617 = vadd.f32 %v1275, %v1616
        %v1618 = vpop.f32.mrf.mxu0
        %1619 = vmatprep.mubr.bf16.mxu0 %v1494
        %1620 = vmatmul.mubr.bf16.gmra.mxu0 %v1493
        %v1621 = vpop.f32.mrf.mxu0
        %v1622 = vadd.f32 %v1280, %v1621
        %v1623 = vpop.f32.mrf.mxu0
        %v1624 = vpop.f32.mrf.mxu0
        %v1625 = vadd.f32 %v1285, %v1624
        %v1626 = vpop.f32.mrf.mxu0
        %1627 = vmatprep.mubr.bf16.mxu0 %v1496
        %1628 = vmatmul.mubr.bf16.gmra.mxu0 %v1495
        %v1629 = vpop.f32.mrf.mxu0
        %v1630 = vadd.f32 %v1290, %v1629
        %v1631 = vpop.f32.mrf.mxu0
        %v1632 = vpop.f32.mrf.mxu0
        %v1633 = vadd.f32 %v1295, %v1632
        %v1634 = vpop.f32.mrf.mxu0
        %1635 = vmatprep.mubr.bf16.mxu0 %v1498
        %1636 = vmatmul.mubr.bf16.gmra.mxu0 %v1497
        %v1637 = vpop.f32.mrf.mxu0
        %v1638 = vadd.f32 %v1300, %v1637
        %v1639 = vpop.f32.mrf.mxu0
        %v1640 = vpop.f32.mrf.mxu0
        %v1641 = vadd.f32 %v1305, %v1640
        %v1642 = vpop.f32.mrf.mxu0
        %1643 = vmatprep.mubr.bf16.mxu0 %v1500
        %1644 = vmatmul.mubr.bf16.gmra.mxu0 %v1499
        %v1645 = vpop.f32.mrf.mxu0
        %v1646 = vadd.f32 %v1310, %v1645
        %v1647 = vpop.f32.mrf.mxu0
        %v1648 = vpop.f32.mrf.mxu0
        %v1649 = vadd.f32 %v1315, %v1648
        %v1650 = vpop.f32.mrf.mxu0
        %1651 = vmatprep.mubr.bf16.mxu0 %v1502
        %1652 = vmatmul.mubr.bf16.gmra.mxu0 %v1501
        %v1653 = vpop.f32.mrf.mxu0
        %v1654 = vadd.f32 %v1320, %v1653
        %v1655 = vpop.f32.mrf.mxu0
        %v1656 = vpop.f32.mrf.mxu0
        %v1657 = vadd.f32 %v1325, %v1656
        %v1658 = vpop.f32.mrf.mxu0
        %1659 = vmatprep.mubr.bf16.mxu0 %v1504
        %1660 = vmatmul.mubr.bf16.gmra.mxu0 %v1503
        %v1661 = vpop.f32.mrf.mxu0
        %v1662 = vadd.f32 %v1330, %v1661
        %v1663 = vpop.f32.mrf.mxu0
        %v1664 = vpop.f32.mrf.mxu0
        %v1665 = vadd.f32 %v1335, %v1664
        %v1666 = vpop.f32.mrf.mxu0
        %1667 = vmatprep.mubr.bf16.mxu0 %v1506
        %1668 = vmatmul.mubr.bf16.gmra.mxu0 %v1505
        %v1669 = vpop.f32.mrf.mxu0
        %v1670 = vadd.f32 %v1340, %v1669
        %v1671 = vpop.f32.mrf.mxu0
        %v1672 = vpop.f32.mrf.mxu0
        %v1673 = vadd.f32 %v1345, %v1672
        %v1674 = vpop.f32.mrf.mxu0
        %1675 = vmatprep.mubr.bf16.mxu0 %v1508
        %1676 = vmatmul.mubr.bf16.gmra.mxu0 %v1507
        %v1677 = vpop.f32.mrf.mxu0
        %v1678 = vadd.f32 %v1350, %v1677
        %v1679 = vpop.f32.mrf.mxu0
        %v1680 = vpop.f32.mrf.mxu0
        %v1681 = vadd.f32 %v1355, %v1680
        %v1682 = vpop.f32.mrf.mxu0
        %1683 = vmatprep.mubr.bf16.mxu0 %v1510
        %1684 = vmatmul.mubr.bf16.gmra.mxu0 %v1509
        %v1685 = vpop.f32.mrf.mxu0
        %v1686 = vadd.f32 %v1360, %v1685
        %v1687 = vpop.f32.mrf.mxu0
        %v1688 = vpop.f32.mrf.mxu0
        %v1689 = vadd.f32 %v1365, %v1688
        %v1690 = vpop.f32.mrf.mxu0
        %1691 = vmatprep.mubr.bf16.mxu0 %v1512
        %1692 = vmatmul.mubr.bf16.gmra.mxu0 %v1511
        %v1693 = vpop.f32.mrf.mxu0
        %v1694 = vadd.f32 %v1370, %v1693
        %v1695 = vpop.f32.mrf.mxu0
        %v1696 = vpop.f32.mrf.mxu0
        %v1697 = vadd.f32 %v1375, %v1696
        %v1698 = vpop.f32.mrf.mxu0
        %1699 = vmatprep.mubr.bf16.mxu0 %v1514
        %1700 = vmatmul.mubr.bf16.gmra.mxu0 %v1513
        %v1701 = vpop.f32.mrf.mxu0
        %v1702 = vadd.f32 %v1380, %v1701
        %v1703 = vpop.f32.mrf.mxu0
        %v1704 = vpop.f32.mrf.mxu0
        %v1705 = vadd.f32 %v1385, %v1704
        %v1706 = vpop.f32.mrf.mxu0
        %1707 = vdwg.mxu0
        %v1708 = vmul.f32 %v1582, %v1582
        %v1709 = vmul.f32 %v1585, %v1585
        %v1710 = vmul.f32 %v1590, %v1590
        %v1711 = vmul.f32 %v1593, %v1593
        %v1712 = vmul.f32 %v1598, %v1598
        %v1713 = vmul.f32 %v1601, %v1601
        %v1714 = vmul.f32 %v1606, %v1606
        %v1715 = vmul.f32 %v1609, %v1609
        %v1716 = vmul.f32 %v1614, %v1614
        %v1717 = vmul.f32 %v1617, %v1617
        %v1718 = vmul.f32 %v1622, %v1622
        %v1719 = vmul.f32 %v1625, %v1625
        %v1720 = vmul.f32 %v1630, %v1630
        %v1721 = vmul.f32 %v1633, %v1633
        %v1722 = vmul.f32 %v1638, %v1638
        %v1723 = vmul.f32 %v1641, %v1641
        %v1724 = vmul.f32 %v1646, %v1646
        %v1725 = vmul.f32 %v1649, %v1649
        %v1726 = vmul.f32 %v1654, %v1654
        %v1727 = vmul.f32 %v1657, %v1657
        %v1728 = vmul.f32 %v1662, %v1662
        %v1729 = vmul.f32 %v1665, %v1665
        %v1730 = vmul.f32 %v1670, %v1670
        %v1731 = vmul.f32 %v1673, %v1673
        %v1732 = vmul.f32 %v1678, %v1678
        %v1733 = vmul.f32 %v1681, %v1681
        %v1734 = vmul.f32 %v1686, %v1686
        %v1735 = vmul.f32 %v1689, %v1689
        %v1736 = vmul.f32 %v1694, %v1694
        %v1737 = vmul.f32 %v1697, %v1697
        %v1738 = vmul.f32 %v1702, %v1702
        %v1739 = vmul.f32 %v1705, %v1705
        %v1740 = vmul.f32 %v1582, %v1708
        %v1741 = vmul.f32 %v1585, %v1709
        %v1742 = vmul.f32 %v1590, %v1710
        %v1743 = vmul.f32 %v1593, %v1711
        %v1744 = vmul.f32 %v1598, %v1712
        %v1745 = vmul.f32 %v1601, %v1713
        %v1746 = vmul.f32 %v1606, %v1714
        %v1747 = vmul.f32 %v1609, %v1715
        %v1748 = vmul.f32 %v1614, %v1716
        %v1749 = vmul.f32 %v1617, %v1717
        %v1750 = vmul.f32 %v1622, %v1718
        %v1751 = vmul.f32 %v1625, %v1719
        %v1752 = vmul.f32 %v1630, %v1720
        %v1753 = vmul.f32 %v1633, %v1721
        %v1754 = vmul.f32 %v1638, %v1722
        %v1755 = vmul.f32 %v1641, %v1723
        %v1756 = vmul.f32 %v1646, %v1724
        %v1757 = vmul.f32 %v1649, %v1725
        %v1758 = vmul.f32 %v1654, %v1726
        %v1759 = vmul.f32 %v1657, %v1727
        %v1760 = vmul.f32 %v1662, %v1728
        %v1761 = vmul.f32 %v1665, %v1729
        %v1762 = vmul.f32 %v1670, %v1730
        %v1763 = vmul.f32 %v1673, %v1731
        %v1764 = vmul.f32 %v1678, %v1732
        %v1765 = vmul.f32 %v1681, %v1733
        %v1766 = vmul.f32 %v1686, %v1734
        %v1767 = vmul.f32 %v1689, %v1735
        %v1768 = vmul.f32 %v1694, %v1736
        %v1769 = vmul.f32 %v1697, %v1737
        %v1770 = vmul.f32 %v1702, %v1738
        %v1771 = vmul.f32 %v1705, %v1739
        %v1772 = vmul.f32 %v1740, 0.044715
        %v1773 = vmul.f32 %v1741, 0.044715
        %v1774 = vmul.f32 %v1742, 0.044715
        %v1775 = vmul.f32 %v1743, 0.044715
        %v1776 = vmul.f32 %v1744, 0.044715
        %v1777 = vmul.f32 %v1745, 0.044715
        %v1778 = vmul.f32 %v1746, 0.044715
        %v1779 = vmul.f32 %v1747, 0.044715
        %v1780 = vmul.f32 %v1748, 0.044715
        %v1781 = vmul.f32 %v1749, 0.044715
        %v1782 = vmul.f32 %v1750, 0.044715
        %v1783 = vmul.f32 %v1751, 0.044715
        %v1784 = vmul.f32 %v1752, 0.044715
        %v1785 = vmul.f32 %v1753, 0.044715
        %v1786 = vmul.f32 %v1754, 0.044715
        %v1787 = vmul.f32 %v1755, 0.044715
        %v1788 = vmul.f32 %v1756, 0.044715
        %v1789 = vmul.f32 %v1757, 0.044715
        %v1790 = vmul.f32 %v1758, 0.044715
        %v1791 = vmul.f32 %v1759, 0.044715
        %v1792 = vmul.f32 %v1760, 0.044715
        %v1793 = vmul.f32 %v1761, 0.044715
        %v1794 = vmul.f32 %v1762, 0.044715
        %v1795 = vmul.f32 %v1763, 0.044715
        %v1796 = vmul.f32 %v1764, 0.044715
        %v1797 = vmul.f32 %v1765, 0.044715
        %v1798 = vmul.f32 %v1766, 0.044715
        %v1799 = vmul.f32 %v1767, 0.044715
        %v1800 = vmul.f32 %v1768, 0.044715
        %v1801 = vmul.f32 %v1769, 0.044715
        %v1802 = vmul.f32 %v1770, 0.044715
        %v1803 = vmul.f32 %v1771, 0.044715
        %v1804 = vadd.f32 %v1582, %v1772
        %v1805 = vadd.f32 %v1585, %v1773
        %v1806 = vadd.f32 %v1590, %v1774
        %v1807 = vadd.f32 %v1593, %v1775
        %v1808 = vadd.f32 %v1598, %v1776
        %v1809 = vadd.f32 %v1601, %v1777
        %v1810 = vadd.f32 %v1606, %v1778
        %v1811 = vadd.f32 %v1609, %v1779
        %v1812 = vadd.f32 %v1614, %v1780
        %v1813 = vadd.f32 %v1617, %v1781
        %v1814 = vadd.f32 %v1622, %v1782
        %v1815 = vadd.f32 %v1625, %v1783
        %v1816 = vadd.f32 %v1630, %v1784
        %v1817 = vadd.f32 %v1633, %v1785
        %v1818 = vadd.f32 %v1638, %v1786
        %v1819 = vadd.f32 %v1641, %v1787
        %v1820 = vadd.f32 %v1646, %v1788
        %v1821 = vadd.f32 %v1649, %v1789
        %v1822 = vadd.f32 %v1654, %v1790
        %v1823 = vadd.f32 %v1657, %v1791
        %v1824 = vadd.f32 %v1662, %v1792
        %v1825 = vadd.f32 %v1665, %v1793
        %v1826 = vadd.f32 %v1670, %v1794
        %v1827 = vadd.f32 %v1673, %v1795
        %v1828 = vadd.f32 %v1678, %v1796
        %v1829 = vadd.f32 %v1681, %v1797
        %v1830 = vadd.f32 %v1686, %v1798
        %v1831 = vadd.f32 %v1689, %v1799
        %v1832 = vadd.f32 %v1694, %v1800
        %v1833 = vadd.f32 %v1697, %v1801
        %v1834 = vadd.f32 %v1702, %v1802
        %v1835 = vadd.f32 %v1705, %v1803
        %v1836 = vmul.f32 %v1804, 0.7978846
        %v1837 = vmul.f32 %v1805, 0.7978846
        %v1838 = vmul.f32 %v1806, 0.7978846
        %v1839 = vmul.f32 %v1807, 0.7978846
        %v1840 = vmul.f32 %v1808, 0.7978846
        %v1841 = vmul.f32 %v1809, 0.7978846
        %v1842 = vmul.f32 %v1810, 0.7978846
        %v1843 = vmul.f32 %v1811, 0.7978846
        %v1844 = vmul.f32 %v1812, 0.7978846
        %v1845 = vmul.f32 %v1813, 0.7978846
        %v1846 = vmul.f32 %v1814, 0.7978846
        %v1847 = vmul.f32 %v1815, 0.7978846
        %v1848 = vmul.f32 %v1816, 0.7978846
        %v1849 = vmul.f32 %v1817, 0.7978846
        %v1850 = vmul.f32 %v1818, 0.7978846
        %v1851 = vmul.f32 %v1819, 0.7978846
        %v1852 = vmul.f32 %v1820, 0.7978846
        %v1853 = vmul.f32 %v1821, 0.7978846
        %v1854 = vmul.f32 %v1822, 0.7978846
        %v1855 = vmul.f32 %v1823, 0.7978846
        %v1856 = vmul.f32 %v1824, 0.7978846
        %v1857 = vmul.f32 %v1825, 0.7978846
        %v1858 = vmul.f32 %v1826, 0.7978846
        %v1859 = vmul.f32 %v1827, 0.7978846
        %v1860 = vmul.f32 %v1828, 0.7978846
        %v1861 = vmul.f32 %v1829, 0.7978846
        %v1862 = vmul.f32 %v1830, 0.7978846
        %v1863 = vmul.f32 %v1831, 0.7978846
        %v1864 = vmul.f32 %v1832, 0.7978846
        %v1865 = vmul.f32 %v1833, 0.7978846
        %v1866 = vmul.f32 %v1834, 0.7978846
        %v1867 = vmul.f32 %v1835, 0.7978846
        %v1868 = vtanh.pop %v1836
        %v1869 = vtanh.pop %v1837
        %v1870 = vtanh.pop %v1838
        %v1871 = vtanh.pop %v1839
        %v1872 = vtanh.pop %v1840
        %v1873 = vtanh.pop %v1841
        %v1874 = vtanh.pop %v1842
        %v1875 = vtanh.pop %v1843
        %v1876 = vtanh.pop %v1844
        %v1877 = vtanh.pop %v1845
        %v1878 = vtanh.pop %v1846
        %v1879 = vtanh.pop %v1847
        %v1880 = vtanh.pop %v1848
        %v1881 = vtanh.pop %v1849
        %v1882 = vtanh.pop %v1850
        %v1883 = vtanh.pop %v1851
        %v1884 = vtanh.pop %v1852
        %v1885 = vtanh.pop %v1853
        %v1886 = vtanh.pop %v1854
        %v1887 = vtanh.pop %v1855
        %v1888 = vtanh.pop %v1856
        %v1889 = vtanh.pop %v1857
        %v1890 = vtanh.pop %v1858
        %v1891 = vtanh.pop %v1859
        %v1892 = vtanh.pop %v1860
        %v1893 = vtanh.pop %v1861
        %v1894 = vtanh.pop %v1862
        %v1895 = vtanh.pop %v1863
        %v1896 = vtanh.pop %v1864
        %v1897 = vtanh.pop %v1865
        %v1898 = vtanh.pop %v1866
        %v1899 = vtanh.pop %v1867
        %v1900 = vadd.f32 %v1868, 1.0
        %v1901 = vadd.f32 %v1869, 1.0
        %v1902 = vadd.f32 %v1870, 1.0
        %v1903 = vadd.f32 %v1871, 1.0
        %v1904 = vadd.f32 %v1872, 1.0
        %v1905 = vadd.f32 %v1873, 1.0
        %v1906 = vadd.f32 %v1874, 1.0
        %v1907 = vadd.f32 %v1875, 1.0
        %v1908 = vadd.f32 %v1876, 1.0
        %v1909 = vadd.f32 %v1877, 1.0
        %v1910 = vadd.f32 %v1878, 1.0
        %v1911 = vadd.f32 %v1879, 1.0
        %v1912 = vadd.f32 %v1880, 1.0
        %v1913 = vadd.f32 %v1881, 1.0
        %v1914 = vadd.f32 %v1882, 1.0
        %v1915 = vadd.f32 %v1883, 1.0
        %v1916 = vadd.f32 %v1884, 1.0
        %v1917 = vadd.f32 %v1885, 1.0
        %v1918 = vadd.f32 %v1886, 1.0
        %v1919 = vadd.f32 %v1887, 1.0
        %v1920 = vadd.f32 %v1888, 1.0
        %v1921 = vadd.f32 %v1889, 1.0
        %v1922 = vadd.f32 %v1890, 1.0
        %v1923 = vadd.f32 %v1891, 1.0
        %v1924 = vadd.f32 %v1892, 1.0
        %v1925 = vadd.f32 %v1893, 1.0
        %v1926 = vadd.f32 %v1894, 1.0
        %v1927 = vadd.f32 %v1895, 1.0
        %v1928 = vadd.f32 %v1896, 1.0
        %v1929 = vadd.f32 %v1897, 1.0
        %v1930 = vadd.f32 %v1898, 1.0
        %v1931 = vadd.f32 %v1899, 1.0
        %v1932 = vmul.f32 %v1900, 0.5
        %v1933 = vmul.f32 %v1901, 0.5
        %v1934 = vmul.f32 %v1902, 0.5
        %v1935 = vmul.f32 %v1903, 0.5
        %v1936 = vmul.f32 %v1904, 0.5
        %v1937 = vmul.f32 %v1905, 0.5
        %v1938 = vmul.f32 %v1906, 0.5
        %v1939 = vmul.f32 %v1907, 0.5
        %v1940 = vmul.f32 %v1908, 0.5
        %v1941 = vmul.f32 %v1909, 0.5
        %v1942 = vmul.f32 %v1910, 0.5
        %v1943 = vmul.f32 %v1911, 0.5
        %v1944 = vmul.f32 %v1912, 0.5
        %v1945 = vmul.f32 %v1913, 0.5
        %v1946 = vmul.f32 %v1914, 0.5
        %v1947 = vmul.f32 %v1915, 0.5
        %v1948 = vmul.f32 %v1916, 0.5
        %v1949 = vmul.f32 %v1917, 0.5
        %v1950 = vmul.f32 %v1918, 0.5
        %v1951 = vmul.f32 %v1919, 0.5
        %v1952 = vmul.f32 %v1920, 0.5
        %v1953 = vmul.f32 %v1921, 0.5
        %v1954 = vmul.f32 %v1922, 0.5
        %v1955 = vmul.f32 %v1923, 0.5
        %v1956 = vmul.f32 %v1924, 0.5
        %v1957 = vmul.f32 %v1925, 0.5
        %v1958 = vmul.f32 %v1926, 0.5
        %v1959 = vmul.f32 %v1927, 0.5
        %v1960 = vmul.f32 %v1928, 0.5
        %v1961 = vmul.f32 %v1929, 0.5
        %v1962 = vmul.f32 %v1930, 0.5
        %v1963 = vmul.f32 %v1931, 0.5
        %v1964 = vmul.f32 %v1582, %v1932
        %v1965 = vmul.f32 %v1585, %v1933
        %v1966 = vmul.f32 %v1590, %v1934
        %v1967 = vmul.f32 %v1593, %v1935
        %v1968 = vmul.f32 %v1598, %v1936
        %v1969 = vmul.f32 %v1601, %v1937
        %v1970 = vmul.f32 %v1606, %v1938
        %v1971 = vmul.f32 %v1609, %v1939
        %v1972 = vmul.f32 %v1614, %v1940
        %v1973 = vmul.f32 %v1617, %v1941
        %v1974 = vmul.f32 %v1622, %v1942
        %v1975 = vmul.f32 %v1625, %v1943
        %v1976 = vmul.f32 %v1630, %v1944
        %v1977 = vmul.f32 %v1633, %v1945
        %v1978 = vmul.f32 %v1638, %v1946
        %v1979 = vmul.f32 %v1641, %v1947
        %v1980 = vmul.f32 %v1646, %v1948
        %v1981 = vmul.f32 %v1649, %v1949
        %v1982 = vmul.f32 %v1654, %v1950
        %v1983 = vmul.f32 %v1657, %v1951
        %v1984 = vmul.f32 %v1662, %v1952
        %v1985 = vmul.f32 %v1665, %v1953
        %v1986 = vmul.f32 %v1670, %v1954
        %v1987 = vmul.f32 %v1673, %v1955
        %v1988 = vmul.f32 %v1678, %v1956
        %v1989 = vmul.f32 %v1681, %v1957
        %v1990 = vmul.f32 %v1686, %v1958
        %v1991 = vmul.f32 %v1689, %v1959
        %v1992 = vmul.f32 %v1694, %v1960
        %v1993 = vmul.f32 %v1697, %v1961
        %v1994 = vmul.f32 %v1702, %v1962
        %v1995 = vmul.f32 %v1705, %v1963
        %v1996 = vld [vmem:[%s5] sm:$0xff]
        %v1997 = vpack.c.bf16 %v1965, %v1964
        %v1998 = vpack.c.bf16 %v1967, %v1966
        %v1999 = vpack.c.bf16 %v1969, %v1968
        %v2000 = vpack.c.bf16 %v1971, %v1970
        %v2001 = vpack.c.bf16 %v1973, %v1972
        %v2002 = vpack.c.bf16 %v1975, %v1974
        %v2003 = vpack.c.bf16 %v1977, %v1976
        %v2004 = vpack.c.bf16 %v1979, %v1978
        %v2005 = vpack.c.bf16 %v1981, %v1980
        %v2006 = vpack.c.bf16 %v1983, %v1982
        %v2007 = vpack.c.bf16 %v1985, %v1984
        %v2008 = vpack.c.bf16 %v1987, %v1986
        %v2009 = vpack.c.bf16 %v1989, %v1988
        %v2010 = vpack.c.bf16 %v1991, %v1990
        %v2011 = vpack.c.bf16 %v1993, %v1992
        %v2012 = vpack.c.bf16 %v1995, %v1994
        %v2013 = vld [vmem:[%s6] sm:$0xff]
        %2015 = vset.pattern.permute.xlu0 0
        %2016 = vperm.xlu0 %2015, %v2013
        %v2017 = vpop.permute.xlu0 %2016
        %v2020 = vunpack.c.l.b16 %v1996
        %v2021 = vunpack.c.h.b16 %v1996
        %v2022 = vpack.c.b16 %v2020, %v2020
        %v2023 = vpack.c.b16 %v2021, %v2021
        %2026 = vmatprep.subr.bf16.mxu0 0
        %2027 = vmatpush1.bf16.msra.mxu0 %v2004
        %2028 = vmatprep.subr.bf16.mxu0 0
        %2029 = vmatpush1.bf16.msra.mxu0 %v2003
        %2030 = vmatprep.subr.bf16.mxu0 0
        %2031 = vmatpush1.bf16.msra.mxu0 %v2002
        %2032 = vmatprep.subr.bf16.mxu0 0
        %2033 = vmatpush1.bf16.msra.mxu0 %v2001
        %2034 = vmatprep.subr.bf16.mxu0 0
        %2035 = vmatpush1.bf16.msra.mxu0 %v2000
        %2036 = vmatprep.subr.bf16.mxu0 0
        %2037 = vmatpush1.bf16.msra.mxu0 %v1999
        %2038 = vmatprep.subr.bf16.mxu0 0
        %2039 = vmatpush1.bf16.msra.mxu0 %v1998
        %2040 = vmatprep.subr.bf16.mxu0 0
        %2041 = vmatpush1.bf16.msra.mxu0 %v1997
        %2042 = vmatprep.subr.bf16.mxu0 0
        %2043 = vmatpush2.bf16.msra.mxu0 %v2012
        %2044 = vmatprep.subr.bf16.mxu0 0
        %2045 = vmatpush2.bf16.msra.mxu0 %v2011
        %2046 = vmatprep.subr.bf16.mxu0 0
        %2047 = vmatpush2.bf16.msra.mxu0 %v2010
        %2048 = vmatprep.subr.bf16.mxu0 0
        %2049 = vmatpush2.bf16.msra.mxu0 %v2009
        %2050 = vmatprep.subr.bf16.mxu0 0
        %2051 = vmatpush2.bf16.msra.mxu0 %v2008
        %2052 = vmatprep.subr.bf16.mxu0 0
        %2053 = vmatpush2.bf16.msra.mxu0 %v2007
        %2054 = vmatprep.subr.bf16.mxu0 0
        %2055 = vmatpush2.bf16.msra.mxu0 %v2006
        %2056 = vmatprep.subr.bf16.mxu0 0
        %2057 = vmatpush2.bf16.msra.mxu0 %v2005
        %2058 = vmatprep.mubr.bf16.mxu0 %v2023
        %2059 = vmatmul.mubr.bf16.gmra.mxu0 %v2022
        %v2060 = vpop.f32.mrf.mxu0
        %v2061 = vadd.f32 %v2017, %v2060
        %v2062 = vpop.f32.mrf.mxu0
        %v2063 = vpop.f32.mrf.mxu0
        %v2064 = vpop.f32.mrf.mxu0
        %2065 = vdwg.mxu0
        %2066 = vst [vmem:[%s321] sm:$0xff] %v2061
        %s2067 = sand.u32 %s207, 1
        %s2068 = scalar_lea.sflag [#allocation3], %s2067
        %s2069 = sand.u32 %s207, 1
        %s2070 = smul.addr %s2069, 8
        %s2071 = scalar_lea.vmem [#allocation2], %s2070
        // Predicated region
        $region49: #{_run_model.1} parent=47 // pred_check
          %p2072 = pneg %p217
        $region50: #{_run_model.1} parent=47 // pred_check_branch
          %2074 = sbr.rel (%p2072) target = $region52
        $region51: #{_run_model.1} parent=47 // pred_region
          %s2076 = ssub.s32 128, 128
          %2077 = vsyncadd %s2068, %s2076
          %s2078 = sadd.s32 %s26, %s25
          %s2079 = smul.addr %s2078, 128
          %s2080 = scalar_lea.hbm %s7, %s2079
          %s2082 = sshll.u32 %s2071, 4
          %s2083 = int_to_ptr.vmem [resolvable:$true] %s2082
          %2085 = dma.vmem_to_hbm [thread:$0]  %s2083, 128, %s2080, %s2068
        $region52: #{_run_model.1} parent=47 // pred_fallthru
          _
      $region48: #{_run_model.1} parent=5 // pred_fallthru
        _
      %p2086 = scmp.le.s32.totalorder 2, %s16
      // Predicated region
      $region53: #{_run_model.1} parent=5 // pred_check
        %p2087 = pneg %p2086
      $region54: #{_run_model.1} parent=5 // pred_check_branch
        %2089 = sbr.rel (%p2087) target = $region56
      $region55: #{_run_model.1} parent=5 // pred_region
        %s2090 = ssub.s32 %s16, 2
        // Predicated region
        $region57: #{_run_model.1} parent=55 // pred_check
          %p2091 = pneg %p223
        $region58: #{_run_model.1} parent=55 // pred_check_branch
          %2093 = sbr.rel (%p2091) target = $region60
        $region59: #{_run_model.1} parent=55 // pred_region
          %s2094 = sand.u32 %s208, 1
          %s2095 = scalar_lea.sflag [#allocation3], %s2094
          %s2096 = sand.u32 %s208, 1
          %s2097 = smul.addr %s2096, 8
          %s2098 = scalar_lea.vmem [#allocation2], %s2097
          %2099 = dma.done %s2095, 128
        $region60: #{_run_model.1} parent=55 // pred_fallthru
          _
      $region56: #{_run_model.1} parent=5 // pred_fallthru
        _
    $region6: #{_run_model.1} parent=1 // loop_footer
      %s20 = sadd.s32 1, %s16
    $region7: #{_run_model.1} parent=1 // loop_footer_branch
      %15 = sbr.rel target = $region3
    $region8: #{_run_model.1} parent=1 // loop_exit
      _
    %2100 = vsyncpa [#allocation3], 1
    %s2101 = scalar_lea.sflag [#allocation3], 1
    %2102 = vsyncpa %s2101, 1

// kernel: _run_model.1
$region0: #{_run_model.1}
  #allocation0 [shape = 'u32[]', space=smem, size = 0x4, offset = 0x4, fixed_abs, tag = 'smem constant byte address 0x4 - core index']
  #allocation1 [shape = 'u32[144,128]{1,0:T(1,128)}', space=vmem, size = 0x12000, scoped, tag = 'internal scratch']
  %s0 = inlined_call_operand.vmem [shape: bf16[2,8,128], index: 0, kind: input, shape index: {}]
  %s1 = inlined_call_operand.vmem [shape: f32[2,256,1], index: 1, kind: input, shape index: {}]
  %s2 = inlined_call_operand.vmem [shape: f32[2,256,1], index: 2, kind: input, shape index: {}]
  %s3 = inlined_call_operand.vmem [shape: bf16[256,8], index: 3, kind: input, shape index: {}]
  %s4 = inlined_call_operand.vmem [shape: bf16[256,256], index: 4, kind: input, shape index: {}]
  %s5 = inlined_call_operand.vmem [shape: bf16[8,256], index: 5, kind: input, shape index: {}]
  %s6 = inlined_call_operand.vmem [shape: f32[8,1], index: 6, kind: input, shape index: {}]
  %s7 = inlined_call_operand.hbm [shape: f32[2,8,128], index: 7, kind: output, shape index: {}]
  %s8 = sld [smem:[#allocation0]]
  $region61: #{_run_model.1} parent=0
    _
  %s10 = ssub.s32 1, %s8
  %s11 = scalar_select 0, %s10, %s8
  $region1: #{_run_model.1} parent=0
    #allocation2 [shape = 'u8[8192]{0}', space=vmem, size = 0x2000, scoped, tag = 'output window, operand 0']
    #allocation3 [shape = 's32[2]{0}', space=sflag, size = 0x8, scoped, tag = 'scoped memory for _run_model.1']
    %12 = vsyncpa [#allocation3], 0
    %s13 = scalar_lea.sflag [#allocation3], 1
    %14 = vsyncpa %s13, 0
    loop: start=0, step=1, limit=4
    $region2: #{_run_model.1} parent=1 // loop_pre_header
      _
    $region3: #{_run_model.1} parent=1 // loop_header
      %s16 = sphi 0, %s20
      %p17 = scmp.ge.s32.totalorder %s16, 4
      %s23 = sphi 0, %s35
      %s24 = sphi 0, %s31
      %s25 = sphi 0, %s23
      %s26 = sphi 0, %s24
      %s27 = sphi 0, %s25
      %s28 = sphi 0, %s26
      %s40 = sphi 0, %s42
      %s43 = sphi 0, %s40
      %s44 = sphi 0, %s43
      %s60 = sphi 0, %s44
      %s66 = sphi 0, %s68
      %s69 = sphi 0, %s66
      %s70 = sphi 0, %s69
      %s86 = sphi 0, %s70
      %s92 = sphi 0, %s94
      %s95 = sphi 0, %s92
      %s96 = sphi 0, %s95
      %s112 = sphi 0, %s96
      %s116 = sphi 0, %s116
      %s118 = sphi 0, %s116
      %s119 = sphi 0, %s118
      %s133 = sphi 0, %s119
      %s137 = sphi 0, %s137
      %s139 = sphi 0, %s137
      %s140 = sphi 0, %s139
      %s154 = sphi 0, %s140
      %s158 = sphi 0, %s158
      %s160 = sphi 0, %s158
      %s161 = sphi 0, %s160
      %s175 = sphi 0, %s161
      %s179 = sphi 0, %s179
      %s181 = sphi 0, %s179
      %s182 = sphi 0, %s181
      %s196 = sphi 0, %s182
      %s204 = sphi 0, %s206
      %s207 = sphi 0, %s204
      %s208 = sphi 0, %s207
      %s224 = sphi 0, %s208
    $region4: #{_run_model.1} parent=1 // loop_header_branch
      %19 = sbr.rel (%p17) target = $region8
    $region5: #{_run_model.1} parent=1 // loop_body
      %s21 = ssub.s32 %s16, 1
      %s22 = ssub.s32 %s16, 2
      %s29 = sadd.s32 1, %s24
      %p30 = scmp.ge.s32.totalorder %s29, 1
      %s31 = scalar_select %p30, 0, %s29
      %s32 = sadd.s32 1, %s23
      %s33 = scalar_select %p30, %s32, %s23
      %p34 = scmp.ge.s32.totalorder %s33, 2
      %s35 = scalar_select %p34, 0, %s33
      %s36 = ssub.s32 %s23, %s35
      %s37 = ssub.s32 %s24, %s31
      %s38 = sor.u32 %s36, %s37
      %p39 = scmp.eq.s32.totalorder %s38, 0
      %s41 = sadd.s32 %s40, 1
      %s42 = scalar_select %p39, %s40, %s41
      %p45 = pneg %p39
      %p46 = scmp.eq.s32.totalorder %s16, 1
      %p47 = por %p45, %p46
      %p48 = scmp.ne.s32.totalorder %s40, %s43
      %p49 = scmp.eq.s32.totalorder %s16, 0
      %p50 = por %p48, %p49
      %p51 = scmp.ne.s32.totalorder %s40, %s43
      %p52 = scmp.eq.s32.totalorder %s21, 1
      %p53 = por %p51, %p52
      %p54 = scmp.ne.s32.totalorder %s43, %s44
      %p55 = scmp.eq.s32.totalorder %s21, 0
      %p56 = por %p54, %p55
      %p57 = scmp.ne.s32.totalorder %s43, %s44
      %p58 = scmp.eq.s32.totalorder %s22, 1
      %p59 = por %p57, %p58
      %p61 = scmp.ne.s32.totalorder %s44, %s60
      %p62 = scmp.eq.s32.totalorder %s22, 0
      %p63 = por %p61, %p62
      %s64 = ssub.s32 %s23, %s35
      %p65 = scmp.eq.s32.totalorder %s64, 0
      %s67 = sadd.s32 %s66, 1
      %s68 = scalar_select %p65, %s66, %s67
      %p71 = pneg %p65
      %p72 = scmp.eq.s32.totalorder %s16, 1
      %p73 = por %p71, %p72
      %p74 = scmp.ne.s32.totalorder %s66, %s69
      %p75 = scmp.eq.s32.totalorder %s16, 0
      %p76 = por %p74, %p75
      %p77 = scmp.ne.s32.totalorder %s66, %s69
      %p78 = scmp.eq.s32.totalorder %s21, 1
      %p79 = por %p77, %p78
      %p80 = scmp.ne.s32.totalorder %s69, %s70
      %p81 = scmp.eq.s32.totalorder %s21, 0
      %p82 = por %p80, %p81
      %p83 = scmp.ne.s32.totalorder %s69, %s70
      %p84 = scmp.eq.s32.totalorder %s22, 1
      %p85 = por %p83, %p84
      %p87 = scmp.ne.s32.totalorder %s70, %s86
      %p88 = scmp.eq.s32.totalorder %s22, 0
      %p89 = por %p87, %p88
      %s90 = ssub.s32 %s23, %s35
      %p91 = scmp.eq.s32.totalorder %s90, 0
      %s93 = sadd.s32 %s92, 1
      %s94 = scalar_select %p91, %s92, %s93
      %p97 = pneg %p91
      %p98 = scmp.eq.s32.totalorder %s16, 1
      %p99 = por %p97, %p98
      %p100 = scmp.ne.s32.totalorder %s92, %s95
      %p101 = scmp.eq.s32.totalorder %s16, 0
      %p102 = por %p100, %p101
      %p103 = scmp.ne.s32.totalorder %s92, %s95
      %p104 = scmp.eq.s32.totalorder %s21, 1
      %p105 = por %p103, %p104
      %p106 = scmp.ne.s32.totalorder %s95, %s96
      %p107 = scmp.eq.s32.totalorder %s21, 0
      %p108 = por %p106, %p107
      %p109 = scmp.ne.s32.totalorder %s95, %s96
      %p110 = scmp.eq.s32.totalorder %s22, 1
      %p111 = por %p109, %p110
      %p113 = scmp.ne.s32.totalorder %s96, %s112
      %p114 = scmp.eq.s32.totalorder %s22, 0
      %p115 = por %p113, %p114
      %s117 = sadd.s32 %s116, 1
      %p120 = scmp.eq.s32.totalorder %s16, 1
      %p121 = scmp.ne.s32.totalorder %s116, %s118
      %p122 = scmp.eq.s32.totalorder %s16, 0
      %p123 = por %p121, %p122
      %p124 = scmp.ne.s32.totalorder %s116, %s118
      %p125 = scmp.eq.s32.totalorder %s21, 1
      %p126 = por %p124, %p125
      %p127 = scmp.ne.s32.totalorder %s118, %s119
      %p128 = scmp.eq.s32.totalorder %s21, 0
      %p129 = por %p127, %p128
      %p130 = scmp.ne.s32.totalorder %s118, %s119
      %p131 = scmp.eq.s32.totalorder %s22, 1
      %p132 = por %p130, %p131
      %p134 = scmp.ne.s32.totalorder %s119, %s133
      %p135 = scmp.eq.s32.totalorder %s22, 0
      %p136 = por %p134, %p135
      %s138 = sadd.s32 %s137, 1
      %p141 = scmp.eq.s32.totalorder %s16, 1
      %p142 = scmp.ne.s32.totalorder %s137, %s139
      %p143 = scmp.eq.s32.totalorder %s16, 0
      %p144 = por %p142, %p143
      %p145 = scmp.ne.s32.totalorder %s137, %s139
      %p146 = scmp.eq.s32.totalorder %s21, 1
      %p147 = por %p145, %p146
      %p148 = scmp.ne.s32.totalorder %s139, %s140
      %p149 = scmp.eq.s32.totalorder %s21, 0
      %p150 = por %p148, %p149
      %p151 = scmp.ne.s32.totalorder %s139, %s140
      %p152 = scmp.eq.s32.totalorder %s22, 1
      %p153 = por %p151, %p152
      %p155 = scmp.ne.s32.totalorder %s140, %s154
      %p156 = scmp.eq.s32.totalorder %s22, 0
      %p157 = por %p155, %p156
      %s159 = sadd.s32 %s158, 1
      %p162 = scmp.eq.s32.totalorder %s16, 1
      %p163 = scmp.ne.s32.totalorder %s158, %s160
      %p164 = scmp.eq.s32.totalorder %s16, 0
      %p165 = por %p163, %p164
      %p166 = scmp.ne.s32.totalorder %s158, %s160
      %p167 = scmp.eq.s32.totalorder %s21, 1
      %p168 = por %p166, %p167
      %p169 = scmp.ne.s32.totalorder %s160, %s161
      %p170 = scmp.eq.s32.totalorder %s21, 0
      %p171 = por %p169, %p170
      %p172 = scmp.ne.s32.totalorder %s160, %s161
      %p173 = scmp.eq.s32.totalorder %s22, 1
      %p174 = por %p172, %p173
      %p176 = scmp.ne.s32.totalorder %s161, %s175
      %p177 = scmp.eq.s32.totalorder %s22, 0
      %p178 = por %p176, %p177
      %s180 = sadd.s32 %s179, 1
      %p183 = scmp.eq.s32.totalorder %s16, 1
      %p184 = scmp.ne.s32.totalorder %s179, %s181
      %p185 = scmp.eq.s32.totalorder %s16, 0
      %p186 = por %p184, %p185
      %p187 = scmp.ne.s32.totalorder %s179, %s181
      %p188 = scmp.eq.s32.totalorder %s21, 1
      %p189 = por %p187, %p188
      %p190 = scmp.ne.s32.totalorder %s181, %s182
      %p191 = scmp.eq.s32.totalorder %s21, 0
      %p192 = por %p190, %p191
      %p193 = scmp.ne.s32.totalorder %s181, %s182
      %p194 = scmp.eq.s32.totalorder %s22, 1
      %p195 = por %p193, %p194
      %p197 = scmp.ne.s32.totalorder %s182, %s196
      %p198 = scmp.eq.s32.totalorder %s22, 0
      %p199 = por %p197, %p198
      %s200 = ssub.s32 %s23, %s35
      %s201 = ssub.s32 %s24, %s31
      %s202 = sor.u32 %s200, %s201
      %p203 = scmp.eq.s32.totalorder %s202, 0
      %s205 = sadd.s32 %s204, 1
      %s206 = scalar_select %p203, %s204, %s205
      %p209 = pneg %p203
      %p210 = scmp.eq.s32.totalorder %s16, 1
      %p211 = por %p209, %p210
      %p212 = scmp.ne.s32.totalorder %s204, %s207
      %p213 = scmp.eq.s32.totalorder %s16, 0
      %p214 = por %p212, %p213
      %p215 = scmp.ne.s32.totalorder %s204, %s207
      %p216 = scmp.eq.s32.totalorder %s21, 1
      %p217 = por %p215, %p216
      %p218 = scmp.ne.s32.totalorder %s207, %s208
      %p219 = scmp.eq.s32.totalorder %s21, 0
      %p220 = por %p218, %p219
      %p221 = scmp.ne.s32.totalorder %s207, %s208
      %p222 = scmp.eq.s32.totalorder %s22, 1
      %p223 = por %p221, %p222
      %p225 = scmp.ne.s32.totalorder %s208, %s224
      %p226 = scmp.eq.s32.totalorder %s22, 0
      %p227 = por %p225, %p226
      %p228 = scmp.le.s32.totalorder 1, %s16
      %p229 = scmp.lt.s32.totalorder %s16, 3
      %p230 = pnand %p228, %p229
      %p231 = pneg %p230
      // Predicated region
      $region9: #{_run_model.1} parent=5 // pred_check
        _
      $region10: #{_run_model.1} parent=5 // pred_check_branch
        %233 = sbr.rel (%p230) target = $region12
      $region11: #{_run_model.1} parent=5 // pred_region
        %s234 = ssub.s32 %s16, 1
        // Predicated region
        $region13: #{_run_model.1} parent=11 // pred_check
          %p235 = pneg %p129
        $region14: #{_run_model.1} parent=11 // pred_check_branch
          %237 = sbr.rel (%p235) target = $region16
        $region15: #{_run_model.1} parent=11 // pred_region
          _
        $region16: #{_run_model.1} parent=11 // pred_fallthru
          _
        // Predicated region
        $region17: #{_run_model.1} parent=11 // pred_check
          %p238 = pneg %p150
        $region18: #{_run_model.1} parent=11 // pred_check_branch
          %240 = sbr.rel (%p238) target = $region20
        $region19: #{_run_model.1} parent=11 // pred_region
          _
        $region20: #{_run_model.1} parent=11 // pred_fallthru
          _
        // Predicated region
        $region21: #{_run_model.1} parent=11 // pred_check
          %p241 = pneg %p171
        $region22: #{_run_model.1} parent=11 // pred_check_branch
          %243 = sbr.rel (%p241) target = $region24
        $region23: #{_run_model.1} parent=11 // pred_region
          _
        $region24: #{_run_model.1} parent=11 // pred_fallthru
          _
        // Predicated region
        $region25: #{_run_model.1} parent=11 // pred_check
          %p244 = pneg %p192
        $region26: #{_run_model.1} parent=11 // pred_check_branch
          %246 = sbr.rel (%p244) target = $region28
        $region27: #{_run_model.1} parent=11 // pred_region
          _
        $region28: #{_run_model.1} parent=11 // pred_fallthru
          _
      $region12: #{_run_model.1} parent=5 // pred_fallthru
        _
      %p247 = scmp.lt.s32.totalorder %s16, 2
      // Predicated region
      $region29: #{_run_model.1} parent=5 // pred_check
        %p248 = pneg %p247
      $region30: #{_run_model.1} parent=5 // pred_check_branch
        %250 = sbr.rel (%p248) target = $region32
      $region31: #{_run_model.1} parent=5 // pred_region
        // Predicated region
        $region33: #{_run_model.1} parent=31 // pred_check
          %p251 = pneg %p50
        $region34: #{_run_model.1} parent=31 // pred_check_branch
          %253 = sbr.rel (%p251) target = $region36
        $region35: #{_run_model.1} parent=31 // pred_region
          %p254 = scmp.lt.s32.totalorder %s23, 1
          %s255 = scalar_select %p254, %s23, 1
          %p256 = scmp.lt.s32.totalorder %s24, 0
          %s257 = scalar_select %p256, %s24, 0
          %s258 = sadd.s32 %s257, %s255
          %s259 = smul.addr %s258, 4
          %s260 = scalar_lea.vmem %s0, %s259
        $region36: #{_run_model.1} parent=31 // pred_fallthru
          _
        // Predicated region
        $region37: #{_run_model.1} parent=31 // pred_check
          %p261 = pneg %p76
        $region38: #{_run_model.1} parent=31 // pred_check_branch
          %263 = sbr.rel (%p261) target = $region40
        $region39: #{_run_model.1} parent=31 // pred_region
          %p264 = scmp.lt.s32.totalorder %s23, 1
          %s265 = scalar_select %p264, %s23, 1
          %s266 = smul.addr %s265, 32
          %s267 = smul.addr %s266, 8
          %s268 = scalar_lea.vmem %s1, %s267
        $region40: #{_run_model.1} parent=31 // pred_fallthru
          _
        // Predicated region
        $region41: #{_run_model.1} parent=31 // pred_check
          %p269 = pneg %p102
        $region42: #{_run_model.1} parent=31 // pred_check_branch
          %271 = sbr.rel (%p269) target = $region44
        $region43: #{_run_model.1} parent=31 // pred_region
          %p272 = scmp.lt.s32.totalorder %s23, 1
          %s273 = scalar_select %p272, %s23, 1
          %s274 = smul.addr %s273, 32
          %s275 = smul.addr %s274, 8
          %s276 = scalar_lea.vmem %s2, %s275
        $region44: #{_run_model.1} parent=31 // pred_fallthru
          _
      $region32: #{_run_model.1} parent=5 // pred_fallthru
        _
      %p277 = scmp.le.s32.totalorder 1, %s16
      %p278 = scmp.lt.s32.totalorder %s16, 3
      %p279 = pnand %p277, %p278
      %p280 = pneg %p279
      // Predicated region
      $region45: #{_run_model.1} parent=5 // pred_check
        _
      $region46: #{_run_model.1} parent=5 // pred_check_branch
        %282 = sbr.rel (%p279) target = $region48
      $region47: #{_run_model.1} parent=5 // pred_region
        %s283 = ssub.s32 %s16, 1
        %p284 = scmp.lt.s32.totalorder %s25, 1
        %s285 = scalar_select %p284, %s25, 1
        %p286 = scmp.lt.s32.totalorder %s26, 0
        %s287 = scalar_select %p286, %s26, 0
        %s288 = sadd.s32 %s287, %s285
        %s289 = smul.addr %s288, 4
        %s290 = scalar_lea.vmem %s0, %s289
        %p291 = pneg %p56
        %p292 = pneg %p53
        %p293 = scmp.lt.s32.totalorder %s25, 1
        %s294 = scalar_select %p293, %s25, 1
        %s295 = smul.addr %s294, 32
        %s296 = smul.addr %s295, 8
        %s297 = scalar_lea.vmem %s1, %s296
        %p298 = pneg %p82
        %p299 = pneg %p79
        %p300 = scmp.lt.s32.totalorder %s25, 1
        %s301 = scalar_select %p300, %s25, 1
        %s302 = smul.addr %s301, 32
        %s303 = smul.addr %s302, 8
        %s304 = scalar_lea.vmem %s2, %s303
        %p305 = pneg %p108
        %p306 = pneg %p105
        %p307 = pneg %p129
        %p308 = pneg %p126
        %p309 = pneg %p150
        %p310 = pneg %p147
        %p311 = pneg %p171
        %p312 = pneg %p168
        %p313 = pneg %p192
        %p314 = pneg %p189
        %p315 = pneg %p220
        %p316 = pneg %p217
        %s317 = sand.u32 %s207, 1
        %s318 = scalar_lea.sflag [#allocation3], %s317
        %s319 = sand.u32 %s207, 1
        %s320 = smul.addr %s319, 8
        %s321 = scalar_lea.vmem [#allocation2], %s320
        %p322 = scmp.lt.s32.totalorder %s25, 1
        %s323 = scalar_select %p322, %s25, 1
        %p324 = scmp.lt.s32.totalorder %s26, 0
        %s325 = scalar_select %p324, %s26, 0
        %s326 = sadd.s32 %s325, %s323
        %s327 = smul.addr %s326, 4
        %s328 = scalar_lea.vmem %s0, %s327
        %p329 = scmp.lt.s32.totalorder %s25, 1
        %s330 = scalar_select %p329, %s25, 1
        %s331 = smul.addr %s330, 32
        %s332 = smul.addr %s331, 8
        %s333 = scalar_lea.vmem %s1, %s332
        %p334 = scmp.lt.s32.totalorder %s25, 1
        %s335 = scalar_select %p334, %s25, 1
        %s336 = smul.addr %s335, 32
        %s337 = smul.addr %s336, 8
        %s338 = scalar_lea.vmem %s2, %s337
        %v340 = vld [vmem:[%s328] sm:$0xf]
        %v341 = vld [vmem:[%s333] sm:$0xff]
        %v342 = vld [vmem:[%s333 + $0x8] sm:$0xff]
        %v343 = vld [vmem:[%s333 + $0x10] sm:$0xff]
        %v344 = vld [vmem:[%s333 + $0x18] sm:$0xff]
        %v345 = vld [vmem:[%s333 + $0x20] sm:$0xff]
        %v346 = vld [vmem:[%s333 + $0x28] sm:$0xff]
        %v347 = vld [vmem:[%s333 + $0x30] sm:$0xff]
        %v348 = vld [vmem:[%s333 + $0x38] sm:$0xff]
        %v349 = vld [vmem:[%s333 + $0x40] sm:$0xff]
        %v350 = vld [vmem:[%s333 + $0x48] sm:$0xff]
        %v351 = vld [vmem:[%s333 + $0x50] sm:$0xff]
        %v352 = vld [vmem:[%s333 + $0x58] sm:$0xff]
        %v353 = vld [vmem:[%s333 + $0x60] sm:$0xff]
        %v354 = vld [vmem:[%s333 + $0x68] sm:$0xff]
        %v355 = vld [vmem:[%s333 + $0x70] sm:$0xff]
        %v356 = vld [vmem:[%s333 + $0x78] sm:$0xff]
        %v357 = vld [vmem:[%s333 + $0x80] sm:$0xff]
        %v358 = vld [vmem:[%s333 + $0x88] sm:$0xff]
        %v359 = vld [vmem:[%s333 + $0x90] sm:$0xff]
        %v360 = vld [vmem:[%s333 + $0x98] sm:$0xff]
        %v361 = vld [vmem:[%s333 + $0xa0] sm:$0xff]
        %v362 = vld [vmem:[%s333 + $0xa8] sm:$0xff]
        %v363 = vld [vmem:[%s333 + $0xb0] sm:$0xff]
        %v364 = vld [vmem:[%s333 + $0xb8] sm:$0xff]
        %v365 = vld [vmem:[%s333 + $0xc0] sm:$0xff]
        %v366 = vld [vmem:[%s333 + $0xc8] sm:$0xff]
        %v367 = vld [vmem:[%s333 + $0xd0] sm:$0xff]
        %v368 = vld [vmem:[%s333 + $0xd8] sm:$0xff]
        %v369 = vld [vmem:[%s333 + $0xe0] sm:$0xff]
        %v370 = vld [vmem:[%s333 + $0xe8] sm:$0xff]
        %v371 = vld [vmem:[%s333 + $0xf0] sm:$0xff]
        %v372 = vld [vmem:[%s333 + $0xf8] sm:$0xff]
        %v373 = vld [vmem:[%s338] sm:$0xff]
        %v374 = vld [vmem:[%s338 + $0x8] sm:$0xff]
        %v375 = vld [vmem:[%s338 + $0x10] sm:$0xff]
        %v376 = vld [vmem:[%s338 + $0x18] sm:$0xff]
        %v377 = vld [vmem:[%s338 + $0x20] sm:$0xff]
        %v378 = vld [vmem:[%s338 + $0x28] sm:$0xff]
        %v379 = vld [vmem:[%s338 + $0x30] sm:$0xff]
        %v380 = vld [vmem:[%s338 + $0x38] sm:$0xff]
        %v381 = vld [vmem:[%s338 + $0x40] sm:$0xff]
        %v382 = vld [vmem:[%s338 + $0x48] sm:$0xff]
        %v383 = vld [vmem:[%s338 + $0x50] sm:$0xff]
        %v384 = vld [vmem:[%s338 + $0x58] sm:$0xff]
        %v385 = vld [vmem:[%s338 + $0x60] sm:$0xff]
        %v386 = vld [vmem:[%s338 + $0x68] sm:$0xff]
        %v387 = vld [vmem:[%s338 + $0x70] sm:$0xff]
        %v388 = vld [vmem:[%s338 + $0x78] sm:$0xff]
        %v389 = vld [vmem:[%s338 + $0x80] sm:$0xff]
        %v390 = vld [vmem:[%s338 + $0x88] sm:$0xff]
        %v391 = vld [vmem:[%s338 + $0x90] sm:$0xff]
        %v392 = vld [vmem:[%s338 + $0x98] sm:$0xff]
        %v393 = vld [vmem:[%s338 + $0xa0] sm:$0xff]
        %v394 = vld [vmem:[%s338 + $0xa8] sm:$0xff]
        %v395 = vld [vmem:[%s338 + $0xb0] sm:$0xff]
        %v396 = vld [vmem:[%s338 + $0xb8] sm:$0xff]
        %v397 = vld [vmem:[%s338 + $0xc0] sm:$0xff]
        %v398 = vld [vmem:[%s338 + $0xc8] sm:$0xff]
        %v399 = vld [vmem:[%s338 + $0xd0] sm:$0xff]
        %v400 = vld [vmem:[%s338 + $0xd8] sm:$0xff]
        %v401 = vld [vmem:[%s338 + $0xe0] sm:$0xff]
        %v402 = vld [vmem:[%s338 + $0xe8] sm:$0xff]
        %v403 = vld [vmem:[%s338 + $0xf0] sm:$0xff]
        %v404 = vld [vmem:[%s338 + $0xf8] sm:$0xff]
        %v405 = vld [vmem:[%s3] sm:$0xf]
        %v406 = vld [vmem:[%s3 + $0x4] sm:$0xf]
        %v407 = vld [vmem:[%s3 + $0x8] sm:$0xf]
        %v408 = vld [vmem:[%s3 + $0xc] sm:$0xf]
        %v409 = vld [vmem:[%s3 + $0x10] sm:$0xf]
        %v410 = vld [vmem:[%s3 + $0x14] sm:$0xf]
        %v411 = vld [vmem:[%s3 + $0x18] sm:$0xf]
        %v412 = vld [vmem:[%s3 + $0x1c] sm:$0xf]
        %v413 = vld [vmem:[%s3 + $0x20] sm:$0xf]
        %v414 = vld [vmem:[%s3 + $0x24] sm:$0xf]
        %v415 = vld [vmem:[%s3 + $0x28] sm:$0xf]
        %v416 = vld [vmem:[%s3 + $0x2c] sm:$0xf]
        %v417 = vld [vmem:[%s3 + $0x30] sm:$0xf]
        %v418 = vld [vmem:[%s3 + $0x34] sm:$0xf]
        %v419 = vld [vmem:[%s3 + $0x38] sm:$0xf]
        %v420 = vld [vmem:[%s3 + $0x3c] sm:$0xf]
        %v421 = vld [vmem:[%s3 + $0x40] sm:$0xf]
        %v422 = vld [vmem:[%s3 + $0x44] sm:$0xf]
        %v423 = vld [vmem:[%s3 + $0x48] sm:$0xf]
        %v424 = vld [vmem:[%s3 + $0x4c] sm:$0xf]
        %v425 = vld [vmem:[%s3 + $0x50] sm:$0xf]
        %v426 = vld [vmem:[%s3 + $0x54] sm:$0xf]
        %v427 = vld [vmem:[%s3 + $0x58] sm:$0xf]
        %v428 = vld [vmem:[%s3 + $0x5c] sm:$0xf]
        %v429 = vld [vmem:[%s3 + $0x60] sm:$0xf]
        %v430 = vld [vmem:[%s3 + $0x64] sm:$0xf]
        %v431 = vld [vmem:[%s3 + $0x68] sm:$0xf]
        %v432 = vld [vmem:[%s3 + $0x6c] sm:$0xf]
        %v433 = vld [vmem:[%s3 + $0x70] sm:$0xf]
        %v434 = vld [vmem:[%s3 + $0x74] sm:$0xf]
        %v435 = vld [vmem:[%s3 + $0x78] sm:$0xf]
        %v436 = vld [vmem:[%s3 + $0x7c] sm:$0xf]
        %438 = vset.pattern.permute.xlu0 0
        %439 = vperm.xlu0 %438, %v341
        %v440 = vpop.permute.xlu0 %439
        %443 = vset.pattern.permute.xlu0 0
        %444 = vperm.xlu0 %443, %v342
        %v445 = vpop.permute.xlu0 %444
        %448 = vset.pattern.permute.xlu0 0
        %449 = vperm.xlu0 %448, %v343
        %v450 = vpop.permute.xlu0 %449
        %453 = vset.pattern.permute.xlu0 0
        %454 = vperm.xlu0 %453, %v344
        %v455 = vpop.permute.xlu0 %454
        %458 = vset.pattern.permute.xlu0 0
        %459 = vperm.xlu0 %458, %v345
        %v460 = vpop.permute.xlu0 %459
        %463 = vset.pattern.permute.xlu0 0
        %464 = vperm.xlu0 %463, %v346
        %v465 = vpop.permute.xlu0 %464
        %468 = vset.pattern.permute.xlu0 0
        %469 = vperm.xlu0 %468, %v347
        %v470 = vpop.permute.xlu0 %469
        %473 = vset.pattern.permute.xlu0 0
        %474 = vperm.xlu0 %473, %v348
        %v475 = vpop.permute.xlu0 %474
        %478 = vset.pattern.permute.xlu0 0
        %479 = vperm.xlu0 %478, %v349
        %v480 = vpop.permute.xlu0 %479
        %483 = vset.pattern.permute.xlu0 0
        %484 = vperm.xlu0 %483, %v350
        %v485 = vpop.permute.xlu0 %484
        %488 = vset.pattern.permute.xlu0 0
        %489 = vperm.xlu0 %488, %v351
        %v490 = vpop.permute.xlu0 %489
        %493 = vset.pattern.permute.xlu0 0
        %494 = vperm.xlu0 %493, %v352
        %v495 = vpop.permute.xlu0 %494
        %498 = vset.pattern.permute.xlu0 0
        %499 = vperm.xlu0 %498, %v353
        %v500 = vpop.permute.xlu0 %499
        %503 = vset.pattern.permute.xlu0 0
        %504 = vperm.xlu0 %503, %v354
        %v505 = vpop.permute.xlu0 %504
        %508 = vset.pattern.permute.xlu0 0
        %509 = vperm.xlu0 %508, %v355
        %v510 = vpop.permute.xlu0 %509
        %513 = vset.pattern.permute.xlu0 0
        %514 = vperm.xlu0 %513, %v356
        %v515 = vpop.permute.xlu0 %514
        %518 = vset.pattern.permute.xlu0 0
        %519 = vperm.xlu0 %518, %v357
        %v520 = vpop.permute.xlu0 %519
        %523 = vset.pattern.permute.xlu0 0
        %524 = vperm.xlu0 %523, %v358
        %v525 = vpop.permute.xlu0 %524
        %528 = vset.pattern.permute.xlu0 0
        %529 = vperm.xlu0 %528, %v359
        %v530 = vpop.permute.xlu0 %529
        %533 = vset.pattern.permute.xlu0 0
        %534 = vperm.xlu0 %533, %v360
        %v535 = vpop.permute.xlu0 %534
        %538 = vset.pattern.permute.xlu0 0
        %539 = vperm.xlu0 %538, %v361
        %v540 = vpop.permute.xlu0 %539
        %543 = vset.pattern.permute.xlu0 0
        %544 = vperm.xlu0 %543, %v362
        %v545 = vpop.permute.xlu0 %544
        %548 = vset.pattern.permute.xlu0 0
        %549 = vperm.xlu0 %548, %v363
        %v550 = vpop.permute.xlu0 %549
        %553 = vset.pattern.permute.xlu0 0
        %554 = vperm.xlu0 %553, %v364
        %v555 = vpop.permute.xlu0 %554
        %558 = vset.pattern.permute.xlu0 0
        %559 = vperm.xlu0 %558, %v365
        %v560 = vpop.permute.xlu0 %559
        %563 = vset.pattern.permute.xlu0 0
        %564 = vperm.xlu0 %563, %v366
        %v565 = vpop.permute.xlu0 %564
        %568 = vset.pattern.permute.xlu0 0
        %569 = vperm.xlu0 %568, %v367
        %v570 = vpop.permute.xlu0 %569
        %573 = vset.pattern.permute.xlu0 0
        %574 = vperm.xlu0 %573, %v368
        %v575 = vpop.permute.xlu0 %574
        %578 = vset.pattern.permute.xlu0 0
        %579 = vperm.xlu0 %578, %v369
        %v580 = vpop.permute.xlu0 %579
        %583 = vset.pattern.permute.xlu0 0
        %584 = vperm.xlu0 %583, %v370
        %v585 = vpop.permute.xlu0 %584
        %588 = vset.pattern.permute.xlu0 0
        %589 = vperm.xlu0 %588, %v371
        %v590 = vpop.permute.xlu0 %589
        %593 = vset.pattern.permute.xlu0 0
        %594 = vperm.xlu0 %593, %v372
        %v595 = vpop.permute.xlu0 %594
        %v629 = vunpack.c.l.b16 %v405
        %v630 = vunpack.c.l.b16 %v406
        %v631 = vunpack.c.l.b16 %v407
        %v632 = vunpack.c.l.b16 %v408
        %v633 = vunpack.c.l.b16 %v409
        %v634 = vunpack.c.l.b16 %v410
        %v635 = vunpack.c.l.b16 %v411
        %v636 = vunpack.c.l.b16 %v412
        %v637 = vunpack.c.l.b16 %v413
        %v638 = vunpack.c.l.b16 %v414
        %v639 = vunpack.c.l.b16 %v415
        %v640 = vunpack.c.l.b16 %v416
        %v641 = vunpack.c.l.b16 %v417
        %v642 = vunpack.c.l.b16 %v418
        %v643 = vunpack.c.l.b16 %v419
        %v644 = vunpack.c.l.b16 %v420
        %v645 = vunpack.c.l.b16 %v421
        %v646 = vunpack.c.l.b16 %v422
        %v647 = vunpack.c.l.b16 %v423
        %v648 = vunpack.c.l.b16 %v424
        %v649 = vunpack.c.l.b16 %v425
        %v650 = vunpack.c.l.b16 %v426
        %v651 = vunpack.c.l.b16 %v427
        %v652 = vunpack.c.l.b16 %v428
        %v653 = vunpack.c.l.b16 %v429
        %v654 = vunpack.c.l.b16 %v430
        %v655 = vunpack.c.l.b16 %v431
        %v656 = vunpack.c.l.b16 %v432
        %v657 = vunpack.c.l.b16 %v433
        %v658 = vunpack.c.l.b16 %v434
        %v659 = vunpack.c.l.b16 %v435
        %v660 = vunpack.c.l.b16 %v436
        %v661 = vpack.c.b16 %v630, %v629
        %v662 = vpack.c.b16 %v632, %v631
        %v663 = vpack.c.b16 %v634, %v633
        %v664 = vpack.c.b16 %v636, %v635
        %v665 = vpack.c.b16 %v638, %v637
        %v666 = vpack.c.b16 %v640, %v639
        %v667 = vpack.c.b16 %v642, %v641
        %v668 = vpack.c.b16 %v644, %v643
        %v669 = vpack.c.b16 %v646, %v645
        %v670 = vpack.c.b16 %v648, %v647
        %v671 = vpack.c.b16 %v650, %v649
        %v672 = vpack.c.b16 %v652, %v651
        %v673 = vpack.c.b16 %v654, %v653
        %v674 = vpack.c.b16 %v656, %v655
        %v675 = vpack.c.b16 %v658, %v657
        %v676 = vpack.c.b16 %v660, %v659
        %vm677 = vcmask 64512
        %v679 = vsel %vm677, %v661, 0
        %v682 = vsel %vm677, %v662, 0
        %v685 = vsel %vm677, %v663, 0
        %v688 = vsel %vm677, %v664, 0
        %v691 = vsel %vm677, %v665, 0
        %v694 = vsel %vm677, %v666, 0
        %v697 = vsel %vm677, %v667, 0
        %v700 = vsel %vm677, %v668, 0
        %v703 = vsel %vm677, %v669, 0
        %v706 = vsel %vm677, %v670, 0
        %v709 = vsel %vm677, %v671, 0
        %v712 = vsel %vm677, %v672, 0
        %v715 = vsel %vm677, %v673, 0
        %v718 = vsel %vm677, %v674, 0
        %v721 = vsel %vm677, %v675, 0
        %v724 = vsel %vm677, %v676, 0
        %vm726 = vcmask 1043456
        %v728 = vsel %vm726, %v340, 0
        %730 = vmatprep.subr.bf16.mxu0 0
        %731 = vmatpush1.bf16.msra.mxu0 0
        %732 = vmatprep.subr.bf16.mxu0 0
        %733 = vmatpush1.bf16.msra.mxu0 0
        %734 = vmatprep.subr.bf16.mxu0 0
        %735 = vmatpush1.bf16.msra.mxu0 0
        %736 = vmatprep.subr.bf16.mxu0 0
        %737 = vmatpush1.bf16.msra.mxu0 0
        %738 = vmatprep.subr.bf16.mxu0 0
        %739 = vmatpush1.bf16.msra.mxu0 0
        %740 = vmatprep.subr.bf16.mxu0 0
        %741 = vmatpush1.bf16.msra.mxu0 0
        %742 = vmatprep.subr.bf16.mxu0 0
        %743 = vmatpush1.bf16.msra.mxu0 0
        %744 = vmatprep.subr.bf16.mxu0 0
        %745 = vmatpush1.bf16.msra.mxu0 %v728
        %746 = vmatprep.subr.bf16.mxu0 0
        %747 = vmatpush2.bf16.msra.mxu0 0
        %748 = vmatprep.subr.bf16.mxu0 0
        %749 = vmatpush2.bf16.msra.mxu0 0
        %750 = vmatprep.subr.bf16.mxu0 0
        %751 = vmatpush2.bf16.msra.mxu0 0
        %752 = vmatprep.subr.bf16.mxu0 0
        %753 = vmatpush2.bf16.msra.mxu0 0
        %754 = vmatprep.subr.bf16.mxu0 0
        %755 = vmatpush2.bf16.msra.mxu0 0
        %756 = vmatprep.subr.bf16.mxu0 0
        %757 = vmatpush2.bf16.msra.mxu0 0
        %758 = vmatprep.subr.bf16.mxu0 0
        %759 = vmatpush2.bf16.msra.mxu0 0
        %760 = vmatprep.subr.bf16.mxu0 0
        %761 = vmatpush2.bf16.msra.mxu0 0
        %762 = vmatprep.mubr.bf16.mxu0 0
        %763 = vmatmul.mubr.bf16.gmra.mxu0 %v679
        %v764 = vpop.f32.mrf.mxu0
        %v765 = vadd.f32 %v440, %v764
        %v766 = vpop.f32.mrf.mxu0
        %v767 = vpop.f32.mrf.mxu0
        %v768 = vadd.f32 %v445, %v767
        %v769 = vpop.f32.mrf.mxu0
        %770 = vmatprep.mubr.bf16.mxu0 0
        %771 = vmatmul.mubr.bf16.gmra.mxu0 %v682
        %v772 = vpop.f32.mrf.mxu0
        %v773 = vadd.f32 %v450, %v772
        %v774 = vpop.f32.mrf.mxu0
        %v775 = vpop.f32.mrf.mxu0
        %v776 = vadd.f32 %v455, %v775
        %v777 = vpop.f32.mrf.mxu0
        %778 = vmatprep.mubr.bf16.mxu0 0
        %779 = vmatmul.mubr.bf16.gmra.mxu0 %v685
        %v780 = vpop.f32.mrf.mxu0
        %v781 = vadd.f32 %v460, %v780
        %v782 = vpop.f32.mrf.mxu0
        %v783 = vpop.f32.mrf.mxu0
        %v784 = vadd.f32 %v465, %v783
        %v785 = vpop.f32.mrf.mxu0
        %786 = vmatprep.mubr.bf16.mxu0 0
        %787 = vmatmul.mubr.bf16.gmra.mxu0 %v688
        %v788 = vpop.f32.mrf.mxu0
        %v789 = vadd.f32 %v470, %v788
        %v790 = vpop.f32.mrf.mxu0
        %v791 = vpop.f32.mrf.mxu0
        %v792 = vadd.f32 %v475, %v791
        %v793 = vpop.f32.mrf.mxu0
        %794 = vmatprep.mubr.bf16.mxu0 0
        %795 = vmatmul.mubr.bf16.gmra.mxu0 %v691
        %v796 = vpop.f32.mrf.mxu0
        %v797 = vadd.f32 %v480, %v796
        %v798 = vpop.f32.mrf.mxu0
        %v799 = vpop.f32.mrf.mxu0
        %v800 = vadd.f32 %v485, %v799
        %v801 = vpop.f32.mrf.mxu0
        %802 = vmatprep.mubr.bf16.mxu0 0
        %803 = vmatmul.mubr.bf16.gmra.mxu0 %v694
        %v804 = vpop.f32.mrf.mxu0
        %v805 = vadd.f32 %v490, %v804
        %v806 = vpop.f32.mrf.mxu0
        %v807 = vpop.f32.mrf.mxu0
        %v808 = vadd.f32 %v495, %v807
        %v809 = vpop.f32.mrf.mxu0
        %810 = vmatprep.mubr.bf16.mxu0 0
        %811 = vmatmul.mubr.bf16.gmra.mxu0 %v697
        %v812 = vpop.f32.mrf.mxu0
        %v813 = vadd.f32 %v500, %v812
        %v814 = vpop.f32.mrf.mxu0
        %v815 = vpop.f32.mrf.mxu0
        %v816 = vadd.f32 %v505, %v815
        %v817 = vpop.f32.mrf.mxu0
        %818 = vmatprep.mubr.bf16.mxu0 0
        %819 = vmatmul.mubr.bf16.gmra.mxu0 %v700
        %v820 = vpop.f32.mrf.mxu0
        %v821 = vadd.f32 %v510, %v820
        %v822 = vpop.f32.mrf.mxu0
        %v823 = vpop.f32.mrf.mxu0
        %v824 = vadd.f32 %v515, %v823
        %v825 = vpop.f32.mrf.mxu0
        %826 = vmatprep.mubr.bf16.mxu0 0
        %827 = vmatmul.mubr.bf16.gmra.mxu0 %v703
        %v828 = vpop.f32.mrf.mxu0
        %v829 = vadd.f32 %v520, %v828
        %v830 = vpop.f32.mrf.mxu0
        %v831 = vpop.f32.mrf.mxu0
        %v832 = vadd.f32 %v525, %v831
        %v833 = vpop.f32.mrf.mxu0
        %834 = vmatprep.mubr.bf16.mxu0 0
        %835 = vmatmul.mubr.bf16.gmra.mxu0 %v706
        %v836 = vpop.f32.mrf.mxu0
        %v837 = vadd.f32 %v530, %v836
        %v838 = vpop.f32.mrf.mxu0
        %v839 = vpop.f32.mrf.mxu0
        %v840 = vadd.f32 %v535, %v839
        %v841 = vpop.f32.mrf.mxu0
        %842 = vmatprep.mubr.bf16.mxu0 0
        %843 = vmatmul.mubr.bf16.gmra.mxu0 %v709
        %v844 = vpop.f32.mrf.mxu0
        %v845 = vadd.f32 %v540, %v844
        %v846 = vpop.f32.mrf.mxu0
        %v847 = vpop.f32.mrf.mxu0
        %v848 = vadd.f32 %v545, %v847
        %v849 = vpop.f32.mrf.mxu0
        %850 = vmatprep.mubr.bf16.mxu0 0
        %851 = vmatmul.mubr.bf16.gmra.mxu0 %v712
        %v852 = vpop.f32.mrf.mxu0
        %v853 = vadd.f32 %v550, %v852
        %v854 = vpop.f32.mrf.mxu0
        %v855 = vpop.f32.mrf.mxu0
        %v856 = vadd.f32 %v555, %v855
        %v857 = vpop.f32.mrf.mxu0
        %858 = vmatprep.mubr.bf16.mxu0 0
        %859 = vmatmul.mubr.bf16.gmra.mxu0 %v715
        %v860 = vpop.f32.mrf.mxu0
        %v861 = vadd.f32 %v560, %v860
        %v862 = vpop.f32.mrf.mxu0
        %v863 = vpop.f32.mrf.mxu0
        %v864 = vadd.f32 %v565, %v863
        %v865 = vpop.f32.mrf.mxu0
        %866 = vmatprep.mubr.bf16.mxu0 0
        %867 = vmatmul.mubr.bf16.gmra.mxu0 %v718
        %v868 = vpop.f32.mrf.mxu0
        %v869 = vadd.f32 %v570, %v868
        %v870 = vpop.f32.mrf.mxu0
        %v871 = vpop.f32.mrf.mxu0
        %v872 = vadd.f32 %v575, %v871
        %v873 = vpop.f32.mrf.mxu0
        %874 = vmatprep.mubr.bf16.mxu0 0
        %875 = vmatmul.mubr.bf16.gmra.mxu0 %v721
        %v876 = vpop.f32.mrf.mxu0
        %v877 = vadd.f32 %v580, %v876
        %v878 = vpop.f32.mrf.mxu0
        %v879 = vpop.f32.mrf.mxu0
        %v880 = vadd.f32 %v585, %v879
        %v881 = vpop.f32.mrf.mxu0
        %882 = vmatprep.mubr.bf16.mxu0 0
        %883 = vmatmul.mubr.bf16.gmra.mxu0 %v724
        %v884 = vpop.f32.mrf.mxu0
        %v885 = vadd.f32 %v590, %v884
        %v886 = vpop.f32.mrf.mxu0
        %v887 = vpop.f32.mrf.mxu0
        %v888 = vadd.f32 %v595, %v887
        %v889 = vpop.f32.mrf.mxu0
        %890 = vdwg.mxu0
        %v891 = vmul.f32 %v765, %v765
        %v892 = vmul.f32 %v768, %v768
        %v893 = vmul.f32 %v773, %v773
        %v894 = vmul.f32 %v776, %v776
        %v895 = vmul.f32 %v781, %v781
        %v896 = vmul.f32 %v784, %v784
        %v897 = vmul.f32 %v789, %v789
        %v898 = vmul.f32 %v792, %v792
        %v899 = vmul.f32 %v797, %v797
        %v900 = vmul.f32 %v800, %v800
        %v901 = vmul.f32 %v805, %v805
        %v902 = vmul.f32 %v808, %v808
        %v903 = vmul.f32 %v813, %v813
        %v904 = vmul.f32 %v816, %v816
        %v905 = vmul.f32 %v821, %v821
        %v906 = vmul.f32 %v824, %v824
        %v907 = vmul.f32 %v829, %v829
        %v908 = vmul.f32 %v832, %v832
        %v909 = vmul.f32 %v837, %v837
        %v910 = vmul.f32 %v840, %v840
        %v911 = vmul.f32 %v845, %v845
        %v912 = vmul.f32 %v848, %v848
        %v913 = vmul.f32 %v853, %v853
        %v914 = vmul.f32 %v856, %v856
        %v915 = vmul.f32 %v861, %v861
        %v916 = vmul.f32 %v864, %v864
        %v917 = vmul.f32 %v869, %v869
        %v918 = vmul.f32 %v872, %v872
        %v919 = vmul.f32 %v877, %v877
        %v920 = vmul.f32 %v880, %v880
        %v921 = vmul.f32 %v885, %v885
        %v922 = vmul.f32 %v888, %v888
        %v923 = vmul.f32 %v765, %v891
        %v924 = vmul.f32 %v768, %v892
        %v925 = vmul.f32 %v773, %v893
        %v926 = vmul.f32 %v776, %v894
        %v927 = vmul.f32 %v781, %v895
        %v928 = vmul.f32 %v784, %v896
        %v929 = vmul.f32 %v789, %v897
        %v930 = vmul.f32 %v792, %v898
        %v931 = vmul.f32 %v797, %v899
        %v932 = vmul.f32 %v800, %v900
        %v933 = vmul.f32 %v805, %v901
        %v934 = vmul.f32 %v808, %v902
        %v935 = vmul.f32 %v813, %v903
        %v936 = vmul.f32 %v816, %v904
        %v937 = vmul.f32 %v821, %v905
        %v938 = vmul.f32 %v824, %v906
        %v939 = vmul.f32 %v829, %v907
        %v940 = vmul.f32 %v832, %v908
        %v941 = vmul.f32 %v837, %v909
        %v942 = vmul.f32 %v840, %v910
        %v943 = vmul.f32 %v845, %v911
        %v944 = vmul.f32 %v848, %v912
        %v945 = vmul.f32 %v853, %v913
        %v946 = vmul.f32 %v856, %v914
        %v947 = vmul.f32 %v861, %v915
        %v948 = vmul.f32 %v864, %v916
        %v949 = vmul.f32 %v869, %v917
        %v950 = vmul.f32 %v872, %v918
        %v951 = vmul.f32 %v877, %v919
        %v952 = vmul.f32 %v880, %v920
        %v953 = vmul.f32 %v885, %v921
        %v954 = vmul.f32 %v888, %v922
        %v955 = vmul.f32 %v923, 0.044715
        %v956 = vmul.f32 %v924, 0.044715
        %v957 = vmul.f32 %v925, 0.044715
        %v958 = vmul.f32 %v926, 0.044715
        %v959 = vmul.f32 %v927, 0.044715
        %v960 = vmul.f32 %v928, 0.044715
        %v961 = vmul.f32 %v929, 0.044715
        %v962 = vmul.f32 %v930, 0.044715
        %v963 = vmul.f32 %v931, 0.044715
        %v964 = vmul.f32 %v932, 0.044715
        %v965 = vmul.f32 %v933, 0.044715
        %v966 = vmul.f32 %v934, 0.044715
        %v967 = vmul.f32 %v935, 0.044715
        %v968 = vmul.f32 %v936, 0.044715
        %v969 = vmul.f32 %v937, 0.044715
        %v970 = vmul.f32 %v938, 0.044715
        %v971 = vmul.f32 %v939, 0.044715
        %v972 = vmul.f32 %v940, 0.044715
        %v973 = vmul.f32 %v941, 0.044715
        %v974 = vmul.f32 %v942, 0.044715
        %v975 = vmul.f32 %v943, 0.044715
        %v976 = vmul.f32 %v944, 0.044715
        %v977 = vmul.f32 %v945, 0.044715
        %v978 = vmul.f32 %v946, 0.044715
        %v979 = vmul.f32 %v947, 0.044715
        %v980 = vmul.f32 %v948, 0.044715
        %v981 = vmul.f32 %v949, 0.044715
        %v982 = vmul.f32 %v950, 0.044715
        %v983 = vmul.f32 %v951, 0.044715
        %v984 = vmul.f32 %v952, 0.044715
        %v985 = vmul.f32 %v953, 0.044715
        %v986 = vmul.f32 %v954, 0.044715
        %v987 = vadd.f32 %v765, %v955
        %v988 = vadd.f32 %v768, %v956
        %v989 = vadd.f32 %v773, %v957
        %v990 = vadd.f32 %v776, %v958
        %v991 = vadd.f32 %v781, %v959
        %v992 = vadd.f32 %v784, %v960
        %v993 = vadd.f32 %v789, %v961
        %v994 = vadd.f32 %v792, %v962
        %v995 = vadd.f32 %v797, %v963
        %v996 = vadd.f32 %v800, %v964
        %v997 = vadd.f32 %v805, %v965
        %v998 = vadd.f32 %v808, %v966
        %v999 = vadd.f32 %v813, %v967
        %v1000 = vadd.f32 %v816, %v968
        %v1001 = vadd.f32 %v821, %v969
        %v1002 = vadd.f32 %v824, %v970
        %v1003 = vadd.f32 %v829, %v971
        %v1004 = vadd.f32 %v832, %v972
        %v1005 = vadd.f32 %v837, %v973
        %v1006 = vadd.f32 %v840, %v974
        %v1007 = vadd.f32 %v845, %v975
        %v1008 = vadd.f32 %v848, %v976
        %v1009 = vadd.f32 %v853, %v977
        %v1010 = vadd.f32 %v856, %v978
        %v1011 = vadd.f32 %v861, %v979
        %v1012 = vadd.f32 %v864, %v980
        %v1013 = vadd.f32 %v869, %v981
        %v1014 = vadd.f32 %v872, %v982
        %v1015 = vadd.f32 %v877, %v983
        %v1016 = vadd.f32 %v880, %v984
        %v1017 = vadd.f32 %v885, %v985
        %v1018 = vadd.f32 %v888, %v986
        %v1019 = vmul.f32 %v987, 0.7978846
        %v1020 = vmul.f32 %v988, 0.7978846
        %v1021 = vmul.f32 %v989, 0.7978846
        %v1022 = vmul.f32 %v990, 0.7978846
        %v1023 = vmul.f32 %v991, 0.7978846
        %v1024 = vmul.f32 %v992, 0.7978846
        %v1025 = vmul.f32 %v993, 0.7978846
        %v1026 = vmul.f32 %v994, 0.7978846
        %v1027 = vmul.f32 %v995, 0.7978846
        %v1028 = vmul.f32 %v996, 0.7978846
        %v1029 = vmul.f32 %v997, 0.7978846
        %v1030 = vmul.f32 %v998, 0.7978846
        %v1031 = vmul.f32 %v999, 0.7978846
        %v1032 = vmul.f32 %v1000, 0.7978846
        %v1033 = vmul.f32 %v1001, 0.7978846
        %v1034 = vmul.f32 %v1002, 0.7978846
        %v1035 = vmul.f32 %v1003, 0.7978846
        %v1036 = vmul.f32 %v1004, 0.7978846
        %v1037 = vmul.f32 %v1005, 0.7978846
        %v1038 = vmul.f32 %v1006, 0.7978846
        %v1039 = vmul.f32 %v1007, 0.7978846
        %v1040 = vmul.f32 %v1008, 0.7978846
        %v1041 = vmul.f32 %v1009, 0.7978846
        %v1042 = vmul.f32 %v1010, 0.7978846
        %v1043 = vmul.f32 %v1011, 0.7978846
        %v1044 = vmul.f32 %v1012, 0.7978846
        %v1045 = vmul.f32 %v1013, 0.7978846
        %v1046 = vmul.f32 %v1014, 0.7978846
        %v1047 = vmul.f32 %v1015, 0.7978846
        %v1048 = vmul.f32 %v1016, 0.7978846
        %v1049 = vmul.f32 %v1017, 0.7978846
        %v1050 = vmul.f32 %v1018, 0.7978846
        %v1051 = vtanh.pop %v1019
        %v1052 = vtanh.pop %v1020
        %v1053 = vtanh.pop %v1021
        %v1054 = vtanh.pop %v1022
        %v1055 = vtanh.pop %v1023
        %v1056 = vtanh.pop %v1024
        %v1057 = vtanh.pop %v1025
        %v1058 = vtanh.pop %v1026
        %v1059 = vtanh.pop %v1027
        %v1060 = vtanh.pop %v1028
        %v1061 = vtanh.pop %v1029
        %v1062 = vtanh.pop %v1030
        %v1063 = vtanh.pop %v1031
        %v1064 = vtanh.pop %v1032
        %v1065 = vtanh.pop %v1033
        %v1066 = vtanh.pop %v1034
        %v1067 = vtanh.pop %v1035
        %v1068 = vtanh.pop %v1036
        %v1069 = vtanh.pop %v1037
        %v1070 = vtanh.pop %v1038
        %v1071 = vtanh.pop %v1039
        %v1072 = vtanh.pop %v1040
        %v1073 = vtanh.pop %v1041
        %v1074 = vtanh.pop %v1042
        %v1075 = vtanh.pop %v1043
        %v1076 = vtanh.pop %v1044
        %v1077 = vtanh.pop %v1045
        %v1078 = vtanh.pop %v1046
        %v1079 = vtanh.pop %v1047
        %v1080 = vtanh.pop %v1048
        %v1081 = vtanh.pop %v1049
        %v1082 = vtanh.pop %v1050
        %v1083 = vadd.f32 %v1051, 1.0
        %v1084 = vadd.f32 %v1052, 1.0
        %v1085 = vadd.f32 %v1053, 1.0
        %v1086 = vadd.f32 %v1054, 1.0
        %v1087 = vadd.f32 %v1055, 1.0
        %v1088 = vadd.f32 %v1056, 1.0
        %v1089 = vadd.f32 %v1057, 1.0
        %v1090 = vadd.f32 %v1058, 1.0
        %v1091 = vadd.f32 %v1059, 1.0
        %v1092 = vadd.f32 %v1060, 1.0
        %v1093 = vadd.f32 %v1061, 1.0
        %v1094 = vadd.f32 %v1062, 1.0
        %v1095 = vadd.f32 %v1063, 1.0
        %v1096 = vadd.f32 %v1064, 1.0
        %v1097 = vadd.f32 %v1065, 1.0
        %v1098 = vadd.f32 %v1066, 1.0
        %v1099 = vadd.f32 %v1067, 1.0
        %v1100 = vadd.f32 %v1068, 1.0
        %v1101 = vadd.f32 %v1069, 1.0
        %v1102 = vadd.f32 %v1070, 1.0
        %v1103 = vadd.f32 %v1071, 1.0
        %v1104 = vadd.f32 %v1072, 1.0
        %v1105 = vadd.f32 %v1073, 1.0
        %v1106 = vadd.f32 %v1074, 1.0
        %v1107 = vadd.f32 %v1075, 1.0
        %v1108 = vadd.f32 %v1076, 1.0
        %v1109 = vadd.f32 %v1077, 1.0
        %v1110 = vadd.f32 %v1078, 1.0
        %v1111 = vadd.f32 %v1079, 1.0
        %v1112 = vadd.f32 %v1080, 1.0
        %v1113 = vadd.f32 %v1081, 1.0
        %v1114 = vadd.f32 %v1082, 1.0
        %v1115 = vmul.f32 %v1083, 0.5
        %v1116 = vmul.f32 %v1084, 0.5
        %v1117 = vmul.f32 %v1085, 0.5
        %v1118 = vmul.f32 %v1086, 0.5
        %v1119 = vmul.f32 %v1087, 0.5
        %v1120 = vmul.f32 %v1088, 0.5
        %v1121 = vmul.f32 %v1089, 0.5
        %v1122 = vmul.f32 %v1090, 0.5
        %v1123 = vmul.f32 %v1091, 0.5
        %v1124 = vmul.f32 %v1092, 0.5
        %v1125 = vmul.f32 %v1093, 0.5
        %v1126 = vmul.f32 %v1094, 0.5
        %v1127 = vmul.f32 %v1095, 0.5
        %v1128 = vmul.f32 %v1096, 0.5
        %v1129 = vmul.f32 %v1097, 0.5
        %v1130 = vmul.f32 %v1098, 0.5
        %v1131 = vmul.f32 %v1099, 0.5
        %v1132 = vmul.f32 %v1100, 0.5
        %v1133 = vmul.f32 %v1101, 0.5
        %v1134 = vmul.f32 %v1102, 0.5
        %v1135 = vmul.f32 %v1103, 0.5
        %v1136 = vmul.f32 %v1104, 0.5
        %v1137 = vmul.f32 %v1105, 0.5
        %v1138 = vmul.f32 %v1106, 0.5
        %v1139 = vmul.f32 %v1107, 0.5
        %v1140 = vmul.f32 %v1108, 0.5
        %v1141 = vmul.f32 %v1109, 0.5
        %v1142 = vmul.f32 %v1110, 0.5
        %v1143 = vmul.f32 %v1111, 0.5
        %v1144 = vmul.f32 %v1112, 0.5
        %v1145 = vmul.f32 %v1113, 0.5
        %v1146 = vmul.f32 %v1114, 0.5
        %v1147 = vmul.f32 %v765, %v1115
        %v1148 = vmul.f32 %v768, %v1116
        %v1149 = vmul.f32 %v773, %v1117
        %v1150 = vmul.f32 %v776, %v1118
        %v1151 = vmul.f32 %v781, %v1119
        %v1152 = vmul.f32 %v784, %v1120
        %v1153 = vmul.f32 %v789, %v1121
        %v1154 = vmul.f32 %v792, %v1122
        %v1155 = vmul.f32 %v797, %v1123
        %v1156 = vmul.f32 %v800, %v1124
        %v1157 = vmul.f32 %v805, %v1125
        %v1158 = vmul.f32 %v808, %v1126
        %v1159 = vmul.f32 %v813, %v1127
        %v1160 = vmul.f32 %v816, %v1128
        %v1161 = vmul.f32 %v821, %v1129
        %v1162 = vmul.f32 %v824, %v1130
        %v1163 = vmul.f32 %v829, %v1131
        %v1164 = vmul.f32 %v832, %v1132
        %v1165 = vmul.f32 %v837, %v1133
        %v1166 = vmul.f32 %v840, %v1134
        %v1167 = vmul.f32 %v845, %v1135
        %v1168 = vmul.f32 %v848, %v1136
        %v1169 = vmul.f32 %v853, %v1137
        %v1170 = vmul.f32 %v856, %v1138
        %v1171 = vmul.f32 %v861, %v1139
        %v1172 = vmul.f32 %v864, %v1140
        %v1173 = vmul.f32 %v869, %v1141
        %v1174 = vmul.f32 %v872, %v1142
        %v1175 = vmul.f32 %v877, %v1143
        %v1176 = vmul.f32 %v880, %v1144
        %v1177 = vmul.f32 %v885, %v1145
        %v1178 = vmul.f32 %v888, %v1146
        %v1179 = vld [vmem:[%s4] sm:$0xff]
        %v1180 = vld [vmem:[%s4 + $0x8] sm:$0xff]
        %v1181 = vld [vmem:[%s4 + $0x10] sm:$0xff]
        %v1182 = vld [vmem:[%s4 + $0x18] sm:$0xff]
        %v1183 = vld [vmem:[%s4 + $0x20] sm:$0xff]
        %v1184 = vld [vmem:[%s4 + $0x28] sm:$0xff]
        %v1185 = vld [vmem:[%s4 + $0x30] sm:$0xff]
        %v1186 = vld [vmem:[%s4 + $0x38] sm:$0xff]
        %v1187 = vld [vmem:[%s4 + $0x40] sm:$0xff]
        %v1188 = vld [vmem:[%s4 + $0x48] sm:$0xff]
        %v1189 = vld [vmem:[%s4 + $0x50] sm:$0xff]
        %v1190 = vld [vmem:[%s4 + $0x58] sm:$0xff]
        %v1191 = vld [vmem:[%s4 + $0x60] sm:$0xff]
        %v1192 = vld [vmem:[%s4 + $0x68] sm:$0xff]
        %v1193 = vld [vmem:[%s4 + $0x70] sm:$0xff]
        %v1194 = vld [vmem:[%s4 + $0x78] sm:$0xff]
        %v1195 = vld [vmem:[%s4 + $0x80] sm:$0xff]
        %v1196 = vld [vmem:[%s4 + $0x88] sm:$0xff]
        %v1197 = vld [vmem:[%s4 + $0x90] sm:$0xff]
        %v1198 = vld [vmem:[%s4 + $0x98] sm:$0xff]
        %v1199 = vld [vmem:[%s4 + $0xa0] sm:$0xff]
        %v1200 = vld [vmem:[%s4 + $0xa8] sm:$0xff]
        %v1201 = vld [vmem:[%s4 + $0xb0] sm:$0xff]
        %v1202 = vld [vmem:[%s4 + $0xb8] sm:$0xff]
        %v1203 = vld [vmem:[%s4 + $0xc0] sm:$0xff]
        %v1204 = vld [vmem:[%s4 + $0xc8] sm:$0xff]
        %v1205 = vld [vmem:[%s4 + $0xd0] sm:$0xff]
        %v1206 = vld [vmem:[%s4 + $0xd8] sm:$0xff]
        %v1207 = vld [vmem:[%s4 + $0xe0] sm:$0xff]
        %v1208 = vld [vmem:[%s4 + $0xe8] sm:$0xff]
        %v1209 = vld [vmem:[%s4 + $0xf0] sm:$0xff]
        %v1210 = vld [vmem:[%s4 + $0xf8] sm:$0xff]
        %v1211 = vpack.c.bf16 %v1148, %v1147
        %v1212 = vpack.c.bf16 %v1150, %v1149
        %v1213 = vpack.c.bf16 %v1152, %v1151
        %v1214 = vpack.c.bf16 %v1154, %v1153
        %v1215 = vpack.c.bf16 %v1156, %v1155
        %v1216 = vpack.c.bf16 %v1158, %v1157
        %v1217 = vpack.c.bf16 %v1160, %v1159
        %v1218 = vpack.c.bf16 %v1162, %v1161
        %v1219 = vpack.c.bf16 %v1164, %v1163
        %v1220 = vpack.c.bf16 %v1166, %v1165
        %v1221 = vpack.c.bf16 %v1168, %v1167
        %v1222 = vpack.c.bf16 %v1170, %v1169
        %v1223 = vpack.c.bf16 %v1172, %v1171
        %v1224 = vpack.c.bf16 %v1174, %v1173
        %v1225 = vpack.c.bf16 %v1176, %v1175
        %v1226 = vpack.c.bf16 %v1178, %v1177
        %1228 = vset.pattern.permute.xlu0 0
        %1229 = vperm.xlu0 %1228, %v373
        %v1230 = vpop.permute.xlu0 %1229
        %1233 = vset.pattern.permute.xlu0 0
        %1234 = vperm.xlu0 %1233, %v374
        %v1235 = vpop.permute.xlu0 %1234
        %1238 = vset.pattern.permute.xlu0 0
        %1239 = vperm.xlu0 %1238, %v375
        %v1240 = vpop.permute.xlu0 %1239
        %1243 = vset.pattern.permute.xlu0 0
        %1244 = vperm.xlu0 %1243, %v376
        %v1245 = vpop.permute.xlu0 %1244
        %1248 = vset.pattern.permute.xlu0 0
        %1249 = vperm.xlu0 %1248, %v377
        %v1250 = vpop.permute.xlu0 %1249
        %1253 = vset.pattern.permute.xlu0 0
        %1254 = vperm.xlu0 %1253, %v378
        %v1255 = vpop.permute.xlu0 %1254
        %1258 = vset.pattern.permute.xlu0 0
        %1259 = vperm.xlu0 %1258, %v379
        %v1260 = vpop.permute.xlu0 %1259
        %1263 = vset.pattern.permute.xlu0 0
        %1264 = vperm.xlu0 %1263, %v380
        %v1265 = vpop.permute.xlu0 %1264
        %1268 = vset.pattern.permute.xlu0 0
        %1269 = vperm.xlu0 %1268, %v381
        %v1270 = vpop.permute.xlu0 %1269
        %1273 = vset.pattern.permute.xlu0 0
        %1274 = vperm.xlu0 %1273, %v382
        %v1275 = vpop.permute.xlu0 %1274
        %1278 = vset.pattern.permute.xlu0 0
        %1279 = vperm.xlu0 %1278, %v383
        %v1280 = vpop.permute.xlu0 %1279
        %1283 = vset.pattern.permute.xlu0 0
        %1284 = vperm.xlu0 %1283, %v384
        %v1285 = vpop.permute.xlu0 %1284
        %1288 = vset.pattern.permute.xlu0 0
        %1289 = vperm.xlu0 %1288, %v385
        %v1290 = vpop.permute.xlu0 %1289
        %1293 = vset.pattern.permute.xlu0 0
        %1294 = vperm.xlu0 %1293, %v386
        %v1295 = vpop.permute.xlu0 %1294
        %1298 = vset.pattern.permute.xlu0 0
        %1299 = vperm.xlu0 %1298, %v387
        %v1300 = vpop.permute.xlu0 %1299
        %1303 = vset.pattern.permute.xlu0 0
        %1304 = vperm.xlu0 %1303, %v388
        %v1305 = vpop.permute.xlu0 %1304
        %1308 = vset.pattern.permute.xlu0 0
        %1309 = vperm.xlu0 %1308, %v389
        %v1310 = vpop.permute.xlu0 %1309
        %1313 = vset.pattern.permute.xlu0 0
        %1314 = vperm.xlu0 %1313, %v390
        %v1315 = vpop.permute.xlu0 %1314
        %1318 = vset.pattern.permute.xlu0 0
        %1319 = vperm.xlu0 %1318, %v391
        %v1320 = vpop.permute.xlu0 %1319
        %1323 = vset.pattern.permute.xlu0 0
        %1324 = vperm.xlu0 %1323, %v392
        %v1325 = vpop.permute.xlu0 %1324
        %1328 = vset.pattern.permute.xlu0 0
        %1329 = vperm.xlu0 %1328, %v393
        %v1330 = vpop.permute.xlu0 %1329
        %1333 = vset.pattern.permute.xlu0 0
        %1334 = vperm.xlu0 %1333, %v394
        %v1335 = vpop.permute.xlu0 %1334
        %1338 = vset.pattern.permute.xlu0 0
        %1339 = vperm.xlu0 %1338, %v395
        %v1340 = vpop.permute.xlu0 %1339
        %1343 = vset.pattern.permute.xlu0 0
        %1344 = vperm.xlu0 %1343, %v396
        %v1345 = vpop.permute.xlu0 %1344
        %1348 = vset.pattern.permute.xlu0 0
        %1349 = vperm.xlu0 %1348, %v397
        %v1350 = vpop.permute.xlu0 %1349
        %1353 = vset.pattern.permute.xlu0 0
        %1354 = vperm.xlu0 %1353, %v398
        %v1355 = vpop.permute.xlu0 %1354
        %1358 = vset.pattern.permute.xlu0 0
        %1359 = vperm.xlu0 %1358, %v399
        %v1360 = vpop.permute.xlu0 %1359
        %1363 = vset.pattern.permute.xlu0 0
        %1364 = vperm.xlu0 %1363, %v400
        %v1365 = vpop.permute.xlu0 %1364
        %1368 = vset.pattern.permute.xlu0 0
        %1369 = vperm.xlu0 %1368, %v401
        %v1370 = vpop.permute.xlu0 %1369
        %1373 = vset.pattern.permute.xlu0 0
        %1374 = vperm.xlu0 %1373, %v402
        %v1375 = vpop.permute.xlu0 %1374
        %1378 = vset.pattern.permute.xlu0 0
        %1379 = vperm.xlu0 %1378, %v403
        %v1380 = vpop.permute.xlu0 %1379
        %1383 = vset.pattern.permute.xlu0 0
        %1384 = vperm.xlu0 %1383, %v404
        %v1385 = vpop.permute.xlu0 %1384
        %v1419 = vunpack.c.l.b16 %v1179
        %v1420 = vunpack.c.h.b16 %v1179
        %v1421 = vunpack.c.l.b16 %v1180
        %v1422 = vunpack.c.h.b16 %v1180
        %v1423 = vunpack.c.l.b16 %v1181
        %v1424 = vunpack.c.h.b16 %v1181
        %v1425 = vunpack.c.l.b16 %v1182
        %v1426 = vunpack.c.h.b16 %v1182
        %v1427 = vunpack.c.l.b16 %v1183
        %v1428 = vunpack.c.h.b16 %v1183
        %v1429 = vunpack.c.l.b16 %v1184
        %v1430 = vunpack.c.h.b16 %v1184
        %v1431 = vunpack.c.l.b16 %v1185
        %v1432 = vunpack.c.h.b16 %v1185
        %v1433 = vunpack.c.l.b16 %v1186
        %v1434 = vunpack.c.h.b16 %v1186
        %v1435 = vunpack.c.l.b16 %v1187
        %v1436 = vunpack.c.h.b16 %v1187
        %v1437 = vunpack.c.l.b16 %v1188
        %v1438 = vunpack.c.h.b16 %v1188
        %v1439 = vunpack.c.l.b16 %v1189
        %v1440 = vunpack.c.h.b16 %v1189
        %v1441 = vunpack.c.l.b16 %v1190
        %v1442 = vunpack.c.h.b16 %v1190
        %v1443 = vunpack.c.l.b16 %v1191
        %v1444 = vunpack.c.h.b16 %v1191
        %v1445 = vunpack.c.l.b16 %v1192
        %v1446 = vunpack.c.h.b16 %v1192
        %v1447 = vunpack.c.l.b16 %v1193
        %v1448 = vunpack.c.h.b16 %v1193
        %v1449 = vunpack.c.l.b16 %v1194
        %v1450 = vunpack.c.h.b16 %v1194
        %v1451 = vunpack.c.l.b16 %v1195
        %v1452 = vunpack.c.h.b16 %v1195
        %v1453 = vunpack.c.l.b16 %v1196
        %v1454 = vunpack.c.h.b16 %v1196
        %v1455 = vunpack.c.l.b16 %v1197
        %v1456 = vunpack.c.h.b16 %v1197
        %v1457 = vunpack.c.l.b16 %v1198
        %v1458 = vunpack.c.h.b16 %v1198
        %v1459 = vunpack.c.l.b16 %v1199
        %v1460 = vunpack.c.h.b16 %v1199
        %v1461 = vunpack.c.l.b16 %v1200
        %v1462 = vunpack.c.h.b16 %v1200
        %v1463 = vunpack.c.l.b16 %v1201
        %v1464 = vunpack.c.h.b16 %v1201
        %v1465 = vunpack.c.l.b16 %v1202
        %v1466 = vunpack.c.h.b16 %v1202
        %v1467 = vunpack.c.l.b16 %v1203
        %v1468 = vunpack.c.h.b16 %v1203
        %v1469 = vunpack.c.l.b16 %v1204
        %v1470 = vunpack.c.h.b16 %v1204
        %v1471 = vunpack.c.l.b16 %v1205
        %v1472 = vunpack.c.h.b16 %v1205
        %v1473 = vunpack.c.l.b16 %v1206
        %v1474 = vunpack.c.h.b16 %v1206
        %v1475 = vunpack.c.l.b16 %v1207
        %v1476 = vunpack.c.h.b16 %v1207
        %v1477 = vunpack.c.l.b16 %v1208
        %v1478 = vunpack.c.h.b16 %v1208
        %v1479 = vunpack.c.l.b16 %v1209
        %v1480 = vunpack.c.h.b16 %v1209
        %v1481 = vunpack.c.l.b16 %v1210
        %v1482 = vunpack.c.h.b16 %v1210
        %v1483 = vpack.c.b16 %v1421, %v1419
        %v1484 = vpack.c.b16 %v1422, %v1420
        %v1485 = vpack.c.b16 %v1425, %v1423
        %v1486 = vpack.c.b16 %v1426, %v1424
        %v1487 = vpack.c.b16 %v1429, %v1427
        %v1488 = vpack.c.b16 %v1430, %v1428
        %v1489 = vpack.c.b16 %v1433, %v1431
        %v1490 = vpack.c.b16 %v1434, %v1432
        %v1491 = vpack.c.b16 %v1437, %v1435
        %v1492 = vpack.c.b16 %v1438, %v1436
        %v1493 = vpack.c.b16 %v1441, %v1439
        %v1494 = vpack.c.b16 %v1442, %v1440
        %v1495 = vpack.c.b16 %v1445, %v1443
        %v1496 = vpack.c.b16 %v1446, %v1444
        %v1497 = vpack.c.b16 %v1449, %v1447
        %v1498 = vpack.c.b16 %v1450, %v1448
        %v1499 = vpack.c.b16 %v1453, %v1451
        %v1500 = vpack.c.b16 %v1454, %v1452
        %v1501 = vpack.c.b16 %v1457, %v1455
        %v1502 = vpack.c.b16 %v1458, %v1456
        %v1503 = vpack.c.b16 %v1461, %v1459
        %v1504 = vpack.c.b16 %v1462, %v1460
        %v1505 = vpack.c.b16 %v1465, %v1463
        %v1506 = vpack.c.b16 %v1466, %v1464
        %v1507 = vpack.c.b16 %v1469, %v1467
        %v1508 = vpack.c.b16 %v1470, %v1468
        %v1509 = vpack.c.b16 %v1473, %v1471
        %v1510 = vpack.c.b16 %v1474, %v1472
        %v1511 = vpack.c.b16 %v1477, %v1475
        %v1512 = vpack.c.b16 %v1478, %v1476
        %v1513 = vpack.c.b16 %v1481, %v1479
        %v1514 = vpack.c.b16 %v1482, %v1480
        %1547 = vmatprep.subr.bf16.mxu0 0
        %1548 = vmatpush1.bf16.msra.mxu0 %v1218
        %1549 = vmatprep.subr.bf16.mxu0 0
        %1550 = vmatpush1.bf16.msra.mxu0 %v1217
        %1551 = vmatprep.subr.bf16.mxu0 0
        %1552 = vmatpush1.bf16.msra.mxu0 %v1216
        %1553 = vmatprep.subr.bf16.mxu0 0
        %1554 = vmatpush1.bf16.msra.mxu0 %v1215
        %1555 = vmatprep.subr.bf16.mxu0 0
        %1556 = vmatpush1.bf16.msra.mxu0 %v1214
        %1557 = vmatprep.subr.bf16.mxu0 0
        %1558 = vmatpush1.bf16.msra.mxu0 %v1213
        %1559 = vmatprep.subr.bf16.mxu0 0
        %1560 = vmatpush1.bf16.msra.mxu0 %v1212
        %1561 = vmatprep.subr.bf16.mxu0 0
        %1562 = vmatpush1.bf16.msra.mxu0 %v1211
        %1563 = vmatprep.subr.bf16.mxu0 0
        %1564 = vmatpush2.bf16.msra.mxu0 %v1226
        %1565 = vmatprep.subr.bf16.mxu0 0
        %1566 = vmatpush2.bf16.msra.mxu0 %v1225
        %1567 = vmatprep.subr.bf16.mxu0 0
        %1568 = vmatpush2.bf16.msra.mxu0 %v1224
        %1569 = vmatprep.subr.bf16.mxu0 0
        %1570 = vmatpush2.bf16.msra.mxu0 %v1223
        %1571 = vmatprep.subr.bf16.mxu0 0
        %1572 = vmatpush2.bf16.msra.mxu0 %v1222
        %1573 = vmatprep.subr.bf16.mxu0 0
        %1574 = vmatpush2.bf16.msra.mxu0 %v1221
        %1575 = vmatprep.subr.bf16.mxu0 0
        %1576 = vmatpush2.bf16.msra.mxu0 %v1220
        %1577 = vmatprep.subr.bf16.mxu0 0
        %1578 = vmatpush2.bf16.msra.mxu0 %v1219
        %1579 = vmatprep.mubr.bf16.mxu0 %v1484
        %1580 = vmatmul.mubr.bf16.gmra.mxu0 %v1483
        %v1581 = vpop.f32.mrf.mxu0
        %v1582 = vadd.f32 %v1230, %v1581
        %v1583 = vpop.f32.mrf.mxu0
        %v1584 = vpop.f32.mrf.mxu0
        %v1585 = vadd.f32 %v1235, %v1584
        %v1586 = vpop.f32.mrf.mxu0
        %1587 = vmatprep.mubr.bf16.mxu0 %v1486
        %1588 = vmatmul.mubr.bf16.gmra.mxu0 %v1485
        %v1589 = vpop.f32.mrf.mxu0
        %v1590 = vadd.f32 %v1240, %v1589
        %v1591 = vpop.f32.mrf.mxu0
        %v1592 = vpop.f32.mrf.mxu0
        %v1593 = vadd.f32 %v1245, %v1592
        %v1594 = vpop.f32.mrf.mxu0
        %1595 = vmatprep.mubr.bf16.mxu0 %v1488
        %1596 = vmatmul.mubr.bf16.gmra.mxu0 %v1487
        %v1597 = vpop.f32.mrf.mxu0
        %v1598 = vadd.f32 %v1250, %v1597
        %v1599 = vpop.f32.mrf.mxu0
        %v1600 = vpop.f32.mrf.mxu0
        %v1601 = vadd.f32 %v1255, %v1600
        %v1602 = vpop.f32.mrf.mxu0
        %1603 = vmatprep.mubr.bf16.mxu0 %v1490
        %1604 = vmatmul.mubr.bf16.gmra.mxu0 %v1489
        %v1605 = vpop.f32.mrf.mxu0
        %v1606 = vadd.f32 %v1260, %v1605
        %v1607 = vpop.f32.mrf.mxu0
        %v1608 = vpop.f32.mrf.mxu0
        %v1609 = vadd.f32 %v1265, %v1608
        %v1610 = vpop.f32.mrf.mxu0
        %1611 = vmatprep.mubr.bf16.mxu0 %v1492
        %1612 = vmatmul.mubr.bf16.gmra.mxu0 %v1491
        %v1613 = vpop.f32.mrf.mxu0
        %v1614 = vadd.f32 %v1270, %v1613
        %v1615 = vpop.f32.mrf.mxu0
        %v1616 = vpop.f32.mrf.mxu0
        %v1617 = vadd.f32 %v1275, %v1616
        %v1618 = vpop.f32.mrf.mxu0
        %1619 = vmatprep.mubr.bf16.mxu0 %v1494
        %1620 = vmatmul.mubr.bf16.gmra.mxu0 %v1493
        %v1621 = vpop.f32.mrf.mxu0
        %v1622 = vadd.f32 %v1280, %v1621
        %v1623 = vpop.f32.mrf.mxu0
        %v1624 = vpop.f32.mrf.mxu0
        %v1625 = vadd.f32 %v1285, %v1624
        %v1626 = vpop.f32.mrf.mxu0
        %1627 = vmatprep.mubr.bf16.mxu0 %v1496
        %1628 = vmatmul.mubr.bf16.gmra.mxu0 %v1495
        %v1629 = vpop.f32.mrf.mxu0
        %v1630 = vadd.f32 %v1290, %v1629
        %v1631 = vpop.f32.mrf.mxu0
        %v1632 = vpop.f32.mrf.mxu0
        %v1633 = vadd.f32 %v1295, %v1632
        %v1634 = vpop.f32.mrf.mxu0
        %1635 = vmatprep.mubr.bf16.mxu0 %v1498
        %1636 = vmatmul.mubr.bf16.gmra.mxu0 %v1497
        %v1637 = vpop.f32.mrf.mxu0
        %v1638 = vadd.f32 %v1300, %v1637
        %v1639 = vpop.f32.mrf.mxu0
        %v1640 = vpop.f32.mrf.mxu0
        %v1641 = vadd.f32 %v1305, %v1640
        %v1642 = vpop.f32.mrf.mxu0
        %1643 = vmatprep.mubr.bf16.mxu0 %v1500
        %1644 = vmatmul.mubr.bf16.gmra.mxu0 %v1499
        %v1645 = vpop.f32.mrf.mxu0
        %v1646 = vadd.f32 %v1310, %v1645
        %v1647 = vpop.f32.mrf.mxu0
        %v1648 = vpop.f32.mrf.mxu0
        %v1649 = vadd.f32 %v1315, %v1648
        %v1650 = vpop.f32.mrf.mxu0
        %1651 = vmatprep.mubr.bf16.mxu0 %v1502
        %1652 = vmatmul.mubr.bf16.gmra.mxu0 %v1501
        %v1653 = vpop.f32.mrf.mxu0
        %v1654 = vadd.f32 %v1320, %v1653
        %v1655 = vpop.f32.mrf.mxu0
        %v1656 = vpop.f32.mrf.mxu0
        %v1657 = vadd.f32 %v1325, %v1656
        %v1658 = vpop.f32.mrf.mxu0
        %1659 = vmatprep.mubr.bf16.mxu0 %v1504
        %1660 = vmatmul.mubr.bf16.gmra.mxu0 %v1503
        %v1661 = vpop.f32.mrf.mxu0
        %v1662 = vadd.f32 %v1330, %v1661
        %v1663 = vpop.f32.mrf.mxu0
        %v1664 = vpop.f32.mrf.mxu0
        %v1665 = vadd.f32 %v1335, %v1664
        %v1666 = vpop.f32.mrf.mxu0
        %1667 = vmatprep.mubr.bf16.mxu0 %v1506
        %1668 = vmatmul.mubr.bf16.gmra.mxu0 %v1505
        %v1669 = vpop.f32.mrf.mxu0
        %v1670 = vadd.f32 %v1340, %v1669
        %v1671 = vpop.f32.mrf.mxu0
        %v1672 = vpop.f32.mrf.mxu0
        %v1673 = vadd.f32 %v1345, %v1672
        %v1674 = vpop.f32.mrf.mxu0
        %1675 = vmatprep.mubr.bf16.mxu0 %v1508
        %1676 = vmatmul.mubr.bf16.gmra.mxu0 %v1507
        %v1677 = vpop.f32.mrf.mxu0
        %v1678 = vadd.f32 %v1350, %v1677
        %v1679 = vpop.f32.mrf.mxu0
        %v1680 = vpop.f32.mrf.mxu0
        %v1681 = vadd.f32 %v1355, %v1680
        %v1682 = vpop.f32.mrf.mxu0
        %1683 = vmatprep.mubr.bf16.mxu0 %v1510
        %1684 = vmatmul.mubr.bf16.gmra.mxu0 %v1509
        %v1685 = vpop.f32.mrf.mxu0
        %v1686 = vadd.f32 %v1360, %v1685
        %v1687 = vpop.f32.mrf.mxu0
        %v1688 = vpop.f32.mrf.mxu0
        %v1689 = vadd.f32 %v1365, %v1688
        %v1690 = vpop.f32.mrf.mxu0
        %1691 = vmatprep.mubr.bf16.mxu0 %v1512
        %1692 = vmatmul.mubr.bf16.gmra.mxu0 %v1511
        %v1693 = vpop.f32.mrf.mxu0
        %v1694 = vadd.f32 %v1370, %v1693
        %v1695 = vpop.f32.mrf.mxu0
        %v1696 = vpop.f32.mrf.mxu0
        %v1697 = vadd.f32 %v1375, %v1696
        %v1698 = vpop.f32.mrf.mxu0
        %1699 = vmatprep.mubr.bf16.mxu0 %v1514
        %1700 = vmatmul.mubr.bf16.gmra.mxu0 %v1513
        %v1701 = vpop.f32.mrf.mxu0
        %v1702 = vadd.f32 %v1380, %v1701
        %v1703 = vpop.f32.mrf.mxu0
        %v1704 = vpop.f32.mrf.mxu0
        %v1705 = vadd.f32 %v1385, %v1704
        %v1706 = vpop.f32.mrf.mxu0
        %1707 = vdwg.mxu0
        %v1708 = vmul.f32 %v1582, %v1582
        %v1709 = vmul.f32 %v1585, %v1585
        %v1710 = vmul.f32 %v1590, %v1590
        %v1711 = vmul.f32 %v1593, %v1593
        %v1712 = vmul.f32 %v1598, %v1598
        %v1713 = vmul.f32 %v1601, %v1601
        %v1714 = vmul.f32 %v1606, %v1606
        %v1715 = vmul.f32 %v1609, %v1609
        %v1716 = vmul.f32 %v1614, %v1614
        %v1717 = vmul.f32 %v1617, %v1617
        %v1718 = vmul.f32 %v1622, %v1622
        %v1719 = vmul.f32 %v1625, %v1625
        %v1720 = vmul.f32 %v1630, %v1630
        %v1721 = vmul.f32 %v1633, %v1633
        %v1722 = vmul.f32 %v1638, %v1638
        %v1723 = vmul.f32 %v1641, %v1641
        %v1724 = vmul.f32 %v1646, %v1646
        %v1725 = vmul.f32 %v1649, %v1649
        %v1726 = vmul.f32 %v1654, %v1654
        %v1727 = vmul.f32 %v1657, %v1657
        %v1728 = vmul.f32 %v1662, %v1662
        %v1729 = vmul.f32 %v1665, %v1665
        %v1730 = vmul.f32 %v1670, %v1670
        %v1731 = vmul.f32 %v1673, %v1673
        %v1732 = vmul.f32 %v1678, %v1678
        %v1733 = vmul.f32 %v1681, %v1681
        %v1734 = vmul.f32 %v1686, %v1686
        %v1735 = vmul.f32 %v1689, %v1689
        %v1736 = vmul.f32 %v1694, %v1694
        %v1737 = vmul.f32 %v1697, %v1697
        %v1738 = vmul.f32 %v1702, %v1702
        %v1739 = vmul.f32 %v1705, %v1705
        %v1740 = vmul.f32 %v1582, %v1708
        %v1741 = vmul.f32 %v1585, %v1709
        %v1742 = vmul.f32 %v1590, %v1710
        %v1743 = vmul.f32 %v1593, %v1711
        %v1744 = vmul.f32 %v1598, %v1712
        %v1745 = vmul.f32 %v1601, %v1713
        %v1746 = vmul.f32 %v1606, %v1714
        %v1747 = vmul.f32 %v1609, %v1715
        %v1748 = vmul.f32 %v1614, %v1716
        %v1749 = vmul.f32 %v1617, %v1717
        %v1750 = vmul.f32 %v1622, %v1718
        %v1751 = vmul.f32 %v1625, %v1719
        %v1752 = vmul.f32 %v1630, %v1720
        %v1753 = vmul.f32 %v1633, %v1721
        %v1754 = vmul.f32 %v1638, %v1722
        %v1755 = vmul.f32 %v1641, %v1723
        %v1756 = vmul.f32 %v1646, %v1724
        %v1757 = vmul.f32 %v1649, %v1725
        %v1758 = vmul.f32 %v1654, %v1726
        %v1759 = vmul.f32 %v1657, %v1727
        %v1760 = vmul.f32 %v1662, %v1728
        %v1761 = vmul.f32 %v1665, %v1729
        %v1762 = vmul.f32 %v1670, %v1730
        %v1763 = vmul.f32 %v1673, %v1731
        %v1764 = vmul.f32 %v1678, %v1732
        %v1765 = vmul.f32 %v1681, %v1733
        %v1766 = vmul.f32 %v1686, %v1734
        %v1767 = vmul.f32 %v1689, %v1735
        %v1768 = vmul.f32 %v1694, %v1736
        %v1769 = vmul.f32 %v1697, %v1737
        %v1770 = vmul.f32 %v1702, %v1738
        %v1771 = vmul.f32 %v1705, %v1739
        %v1772 = vmul.f32 %v1740, 0.044715
        %v1773 = vmul.f32 %v1741, 0.044715
        %v1774 = vmul.f32 %v1742, 0.044715
        %v1775 = vmul.f32 %v1743, 0.044715
        %v1776 = vmul.f32 %v1744, 0.044715
        %v1777 = vmul.f32 %v1745, 0.044715
        %v1778 = vmul.f32 %v1746, 0.044715
        %v1779 = vmul.f32 %v1747, 0.044715
        %v1780 = vmul.f32 %v1748, 0.044715
        %v1781 = vmul.f32 %v1749, 0.044715
        %v1782 = vmul.f32 %v1750, 0.044715
        %v1783 = vmul.f32 %v1751, 0.044715
        %v1784 = vmul.f32 %v1752, 0.044715
        %v1785 = vmul.f32 %v1753, 0.044715
        %v1786 = vmul.f32 %v1754, 0.044715
        %v1787 = vmul.f32 %v1755, 0.044715
        %v1788 = vmul.f32 %v1756, 0.044715
        %v1789 = vmul.f32 %v1757, 0.044715
        %v1790 = vmul.f32 %v1758, 0.044715
        %v1791 = vmul.f32 %v1759, 0.044715
        %v1792 = vmul.f32 %v1760, 0.044715
        %v1793 = vmul.f32 %v1761, 0.044715
        %v1794 = vmul.f32 %v1762, 0.044715
        %v1795 = vmul.f32 %v1763, 0.044715
        %v1796 = vmul.f32 %v1764, 0.044715
        %v1797 = vmul.f32 %v1765, 0.044715
        %v1798 = vmul.f32 %v1766, 0.044715
        %v1799 = vmul.f32 %v1767, 0.044715
        %v1800 = vmul.f32 %v1768, 0.044715
        %v1801 = vmul.f32 %v1769, 0.044715
        %v1802 = vmul.f32 %v1770, 0.044715
        %v1803 = vmul.f32 %v1771, 0.044715
        %v1804 = vadd.f32 %v1582, %v1772
        %v1805 = vadd.f32 %v1585, %v1773
        %v1806 = vadd.f32 %v1590, %v1774
        %v1807 = vadd.f32 %v1593, %v1775
        %v1808 = vadd.f32 %v1598, %v1776
        %v1809 = vadd.f32 %v1601, %v1777
        %v1810 = vadd.f32 %v1606, %v1778
        %v1811 = vadd.f32 %v1609, %v1779
        %v1812 = vadd.f32 %v1614, %v1780
        %v1813 = vadd.f32 %v1617, %v1781
        %v1814 = vadd.f32 %v1622, %v1782
        %v1815 = vadd.f32 %v1625, %v1783
        %v1816 = vadd.f32 %v1630, %v1784
        %v1817 = vadd.f32 %v1633, %v1785
        %v1818 = vadd.f32 %v1638, %v1786
        %v1819 = vadd.f32 %v1641, %v1787
        %v1820 = vadd.f32 %v1646, %v1788
        %v1821 = vadd.f32 %v1649, %v1789
        %v1822 = vadd.f32 %v1654, %v1790
        %v1823 = vadd.f32 %v1657, %v1791
        %v1824 = vadd.f32 %v1662, %v1792
        %v1825 = vadd.f32 %v1665, %v1793
        %v1826 = vadd.f32 %v1670, %v1794
        %v1827 = vadd.f32 %v1673, %v1795
        %v1828 = vadd.f32 %v1678, %v1796
        %v1829 = vadd.f32 %v1681, %v1797
        %v1830 = vadd.f32 %v1686, %v1798
        %v1831 = vadd.f32 %v1689, %v1799
        %v1832 = vadd.f32 %v1694, %v1800
        %v1833 = vadd.f32 %v1697, %v1801
        %v1834 = vadd.f32 %v1702, %v1802
        %v1835 = vadd.f32 %v1705, %v1803
        %v1836 = vmul.f32 %v1804, 0.7978846
        %v1837 = vmul.f32 %v1805, 0.7978846
        %v1838 = vmul.f32 %v1806, 0.7978846
        %v1839 = vmul.f32 %v1807, 0.7978846
        %v1840 = vmul.f32 %v1808, 0.7978846
        %v1841 = vmul.f32 %v1809, 0.7978846
        %v1842 = vmul.f32 %v1810, 0.7978846
        %v1843 = vmul.f32 %v1811, 0.7978846
        %v1844 = vmul.f32 %v1812, 0.7978846
        %v1845 = vmul.f32 %v1813, 0.7978846
        %v1846 = vmul.f32 %v1814, 0.7978846
        %v1847 = vmul.f32 %v1815, 0.7978846
        %v1848 = vmul.f32 %v1816, 0.7978846
        %v1849 = vmul.f32 %v1817, 0.7978846
        %v1850 = vmul.f32 %v1818, 0.7978846
        %v1851 = vmul.f32 %v1819, 0.7978846
        %v1852 = vmul.f32 %v1820, 0.7978846
        %v1853 = vmul.f32 %v1821, 0.7978846
        %v1854 = vmul.f32 %v1822, 0.7978846
        %v1855 = vmul.f32 %v1823, 0.7978846
        %v1856 = vmul.f32 %v1824, 0.7978846
        %v1857 = vmul.f32 %v1825, 0.7978846
        %v1858 = vmul.f32 %v1826, 0.7978846
        %v1859 = vmul.f32 %v1827, 0.7978846
        %v1860 = vmul.f32 %v1828, 0.7978846
        %v1861 = vmul.f32 %v1829, 0.7978846
        %v1862 = vmul.f32 %v1830, 0.7978846
        %v1863 = vmul.f32 %v1831, 0.7978846
        %v1864 = vmul.f32 %v1832, 0.7978846
        %v1865 = vmul.f32 %v1833, 0.7978846
        %v1866 = vmul.f32 %v1834, 0.7978846
        %v1867 = vmul.f32 %v1835, 0.7978846
        %v1868 = vtanh.pop %v1836
        %v1869 = vtanh.pop %v1837
        %v1870 = vtanh.pop %v1838
        %v1871 = vtanh.pop %v1839
        %v1872 = vtanh.pop %v1840
        %v1873 = vtanh.pop %v1841
        %v1874 = vtanh.pop %v1842
        %v1875 = vtanh.pop %v1843
        %v1876 = vtanh.pop %v1844
        %v1877 = vtanh.pop %v1845
        %v1878 = vtanh.pop %v1846
        %v1879 = vtanh.pop %v1847
        %v1880 = vtanh.pop %v1848
        %v1881 = vtanh.pop %v1849
        %v1882 = vtanh.pop %v1850
        %v1883 = vtanh.pop %v1851
        %v1884 = vtanh.pop %v1852
        %v1885 = vtanh.pop %v1853
        %v1886 = vtanh.pop %v1854
        %v1887 = vtanh.pop %v1855
        %v1888 = vtanh.pop %v1856
        %v1889 = vtanh.pop %v1857
        %v1890 = vtanh.pop %v1858
        %v1891 = vtanh.pop %v1859
        %v1892 = vtanh.pop %v1860
        %v1893 = vtanh.pop %v1861
        %v1894 = vtanh.pop %v1862
        %v1895 = vtanh.pop %v1863
        %v1896 = vtanh.pop %v1864
        %v1897 = vtanh.pop %v1865
        %v1898 = vtanh.pop %v1866
        %v1899 = vtanh.pop %v1867
        %v1900 = vadd.f32 %v1868, 1.0
        %v1901 = vadd.f32 %v1869, 1.0
        %v1902 = vadd.f32 %v1870, 1.0
        %v1903 = vadd.f32 %v1871, 1.0
        %v1904 = vadd.f32 %v1872, 1.0
        %v1905 = vadd.f32 %v1873, 1.0
        %v1906 = vadd.f32 %v1874, 1.0
        %v1907 = vadd.f32 %v1875, 1.0
        %v1908 = vadd.f32 %v1876, 1.0
        %v1909 = vadd.f32 %v1877, 1.0
        %v1910 = vadd.f32 %v1878, 1.0
        %v1911 = vadd.f32 %v1879, 1.0
        %v1912 = vadd.f32 %v1880, 1.0
        %v1913 = vadd.f32 %v1881, 1.0
        %v1914 = vadd.f32 %v1882, 1.0
        %v1915 = vadd.f32 %v1883, 1.0
        %v1916 = vadd.f32 %v1884, 1.0
        %v1917 = vadd.f32 %v1885, 1.0
        %v1918 = vadd.f32 %v1886, 1.0
        %v1919 = vadd.f32 %v1887, 1.0
        %v1920 = vadd.f32 %v1888, 1.0
        %v1921 = vadd.f32 %v1889, 1.0
        %v1922 = vadd.f32 %v1890, 1.0
        %v1923 = vadd.f32 %v1891, 1.0
        %v1924 = vadd.f32 %v1892, 1.0
        %v1925 = vadd.f32 %v1893, 1.0
        %v1926 = vadd.f32 %v1894, 1.0
        %v1927 = vadd.f32 %v1895, 1.0
        %v1928 = vadd.f32 %v1896, 1.0
        %v1929 = vadd.f32 %v1897, 1.0
        %v1930 = vadd.f32 %v1898, 1.0
        %v1931 = vadd.f32 %v1899, 1.0
        %v1932 = vmul.f32 %v1900, 0.5
        %v1933 = vmul.f32 %v1901, 0.5
        %v1934 = vmul.f32 %v1902, 0.5
        %v1935 = vmul.f32 %v1903, 0.5
        %v1936 = vmul.f32 %v1904, 0.5
        %v1937 = vmul.f32 %v1905, 0.5
        %v1938 = vmul.f32 %v1906, 0.5
        %v1939 = vmul.f32 %v1907, 0.5
        %v1940 = vmul.f32 %v1908, 0.5
        %v1941 = vmul.f32 %v1909, 0.5
        %v1942 = vmul.f32 %v1910, 0.5
        %v1943 = vmul.f32 %v1911, 0.5
        %v1944 = vmul.f32 %v1912, 0.5
        %v1945 = vmul.f32 %v1913, 0.5
        %v1946 = vmul.f32 %v1914, 0.5
        %v1947 = vmul.f32 %v1915, 0.5
        %v1948 = vmul.f32 %v1916, 0.5
        %v1949 = vmul.f32 %v1917, 0.5
        %v1950 = vmul.f32 %v1918, 0.5
        %v1951 = vmul.f32 %v1919, 0.5
        %v1952 = vmul.f32 %v1920, 0.5
        %v1953 = vmul.f32 %v1921, 0.5
        %v1954 = vmul.f32 %v1922, 0.5
        %v1955 = vmul.f32 %v1923, 0.5
        %v1956 = vmul.f32 %v1924, 0.5
        %v1957 = vmul.f32 %v1925, 0.5
        %v1958 = vmul.f32 %v1926, 0.5
        %v1959 = vmul.f32 %v1927, 0.5
        %v1960 = vmul.f32 %v1928, 0.5
        %v1961 = vmul.f32 %v1929, 0.5
        %v1962 = vmul.f32 %v1930, 0.5
        %v1963 = vmul.f32 %v1931, 0.5
        %v1964 = vmul.f32 %v1582, %v1932
        %v1965 = vmul.f32 %v1585, %v1933
        %v1966 = vmul.f32 %v1590, %v1934
        %v1967 = vmul.f32 %v1593, %v1935
        %v1968 = vmul.f32 %v1598, %v1936
        %v1969 = vmul.f32 %v1601, %v1937
        %v1970 = vmul.f32 %v1606, %v1938
        %v1971 = vmul.f32 %v1609, %v1939
        %v1972 = vmul.f32 %v1614, %v1940
        %v1973 = vmul.f32 %v1617, %v1941
        %v1974 = vmul.f32 %v1622, %v1942
        %v1975 = vmul.f32 %v1625, %v1943
        %v1976 = vmul.f32 %v1630, %v1944
        %v1977 = vmul.f32 %v1633, %v1945
        %v1978 = vmul.f32 %v1638, %v1946
        %v1979 = vmul.f32 %v1641, %v1947
        %v1980 = vmul.f32 %v1646, %v1948
        %v1981 = vmul.f32 %v1649, %v1949
        %v1982 = vmul.f32 %v1654, %v1950
        %v1983 = vmul.f32 %v1657, %v1951
        %v1984 = vmul.f32 %v1662, %v1952
        %v1985 = vmul.f32 %v1665, %v1953
        %v1986 = vmul.f32 %v1670, %v1954
        %v1987 = vmul.f32 %v1673, %v1955
        %v1988 = vmul.f32 %v1678, %v1956
        %v1989 = vmul.f32 %v1681, %v1957
        %v1990 = vmul.f32 %v1686, %v1958
        %v1991 = vmul.f32 %v1689, %v1959
        %v1992 = vmul.f32 %v1694, %v1960
        %v1993 = vmul.f32 %v1697, %v1961
        %v1994 = vmul.f32 %v1702, %v1962
        %v1995 = vmul.f32 %v1705, %v1963
        %v1996 = vld [vmem:[%s5] sm:$0xff]
        %v1997 = vpack.c.bf16 %v1965, %v1964
        %v1998 = vpack.c.bf16 %v1967, %v1966
        %v1999 = vpack.c.bf16 %v1969, %v1968
        %v2000 = vpack.c.bf16 %v1971, %v1970
        %v2001 = vpack.c.bf16 %v1973, %v1972
        %v2002 = vpack.c.bf16 %v1975, %v1974
        %v2003 = vpack.c.bf16 %v1977, %v1976
        %v2004 = vpack.c.bf16 %v1979, %v1978
        %v2005 = vpack.c.bf16 %v1981, %v1980
        %v2006 = vpack.c.bf16 %v1983, %v1982
        %v2007 = vpack.c.bf16 %v1985, %v1984
        %v2008 = vpack.c.bf16 %v1987, %v1986
        %v2009 = vpack.c.bf16 %v1989, %v1988
        %v2010 = vpack.c.bf16 %v1991, %v1990
        %v2011 = vpack.c.bf16 %v1993, %v1992
        %v2012 = vpack.c.bf16 %v1995, %v1994
        %v2013 = vld [vmem:[%s6] sm:$0xff]
        %2015 = vset.pattern.permute.xlu0 0
        %2016 = vperm.xlu0 %2015, %v2013
        %v2017 = vpop.permute.xlu0 %2016
        %v2020 = vunpack.c.l.b16 %v1996
        %v2021 = vunpack.c.h.b16 %v1996
        %v2022 = vpack.c.b16 %v2020, %v2020
        %v2023 = vpack.c.b16 %v2021, %v2021
        %2026 = vmatprep.subr.bf16.mxu0 0
        %2027 = vmatpush1.bf16.msra.mxu0 %v2004
        %2028 = vmatprep.subr.bf16.mxu0 0
        %2029 = vmatpush1.bf16.msra.mxu0 %v2003
        %2030 = vmatprep.subr.bf16.mxu0 0
        %2031 = vmatpush1.bf16.msra.mxu0 %v2002
        %2032 = vmatprep.subr.bf16.mxu0 0
        %2033 = vmatpush1.bf16.msra.mxu0 %v2001
        %2034 = vmatprep.subr.bf16.mxu0 0
        %2035 = vmatpush1.bf16.msra.mxu0 %v2000
        %2036 = vmatprep.subr.bf16.mxu0 0
        %2037 = vmatpush1.bf16.msra.mxu0 %v1999
        %2038 = vmatprep.subr.bf16.mxu0 0
        %2039 = vmatpush1.bf16.msra.mxu0 %v1998
        %2040 = vmatprep.subr.bf16.mxu0 0
        %2041 = vmatpush1.bf16.msra.mxu0 %v1997
        %2042 = vmatprep.subr.bf16.mxu0 0
        %2043 = vmatpush2.bf16.msra.mxu0 %v2012
        %2044 = vmatprep.subr.bf16.mxu0 0
        %2045 = vmatpush2.bf16.msra.mxu0 %v2011
        %2046 = vmatprep.subr.bf16.mxu0 0
        %2047 = vmatpush2.bf16.msra.mxu0 %v2010
        %2048 = vmatprep.subr.bf16.mxu0 0
        %2049 = vmatpush2.bf16.msra.mxu0 %v2009
        %2050 = vmatprep.subr.bf16.mxu0 0
        %2051 = vmatpush2.bf16.msra.mxu0 %v2008
        %2052 = vmatprep.subr.bf16.mxu0 0
        %2053 = vmatpush2.bf16.msra.mxu0 %v2007
        %2054 = vmatprep.subr.bf16.mxu0 0
        %2055 = vmatpush2.bf16.msra.mxu0 %v2006
        %2056 = vmatprep.subr.bf16.mxu0 0
        %2057 = vmatpush2.bf16.msra.mxu0 %v2005
        %2058 = vmatprep.mubr.bf16.mxu0 %v2023
        %2059 = vmatmul.mubr.bf16.gmra.mxu0 %v2022
        %v2060 = vpop.f32.mrf.mxu0
        %v2061 = vadd.f32 %v2017, %v2060
        %v2062 = vpop.f32.mrf.mxu0
        %v2063 = vpop.f32.mrf.mxu0
        %v2064 = vpop.f32.mrf.mxu0
        %2065 = vdwg.mxu0
        %2066 = vst [vmem:[%s321] sm:$0xff] %v2061
        %s2067 = sand.u32 %s207, 1
        %s2068 = scalar_lea.sflag [#allocation3], %s2067
        %s2069 = sand.u32 %s207, 1
        %s2070 = smul.addr %s2069, 8
        %s2071 = scalar_lea.vmem [#allocation2], %s2070
        // Predicated region
        $region49: #{_run_model.1} parent=47 // pred_check
          %p2072 = pneg %p217
        $region50: #{_run_model.1} parent=47 // pred_check_branch
          %2074 = sbr.rel (%p2072) target = $region52
        $region51: #{_run_model.1} parent=47 // pred_region
          %s2076 = ssub.s32 128, 128
          %2077 = vsyncadd %s2068, %s2076
          %s2078 = sadd.s32 %s26, %s25
          %s2079 = smul.addr %s2078, 128
          %s2080 = scalar_lea.hbm %s7, %s2079
          %s2082 = sshll.u32 %s2071, 4
          %s2083 = int_to_ptr.vmem [resolvable:$true] %s2082
          %2085 = dma.vmem_to_hbm [thread:$0]  %s2083, 128, %s2080, %s2068
        $region52: #{_run_model.1} parent=47 // pred_fallthru
          _
      $region48: #{_run_model.1} parent=5 // pred_fallthru
        _
      %p2086 = scmp.le.s32.totalorder 2, %s16
      // Predicated region
      $region53: #{_run_model.1} parent=5 // pred_check
        %p2087 = pneg %p2086
      $region54: #{_run_model.1} parent=5 // pred_check_branch
        %2089 = sbr.rel (%p2087) target = $region56
      $region55: #{_run_model.1} parent=5 // pred_region
        %s2090 = ssub.s32 %s16, 2
        // Predicated region
        $region57: #{_run_model.1} parent=55 // pred_check
          %p2091 = pneg %p223
        $region58: #{_run_model.1} parent=55 // pred_check_branch
          %2093 = sbr.rel (%p2091) target = $region60
        $region59: #{_run_model.1} parent=55 // pred_region
          %s2094 = sand.u32 %s208, 1
          %s2095 = scalar_lea.sflag [#allocation3], %s2094
          %s2096 = sand.u32 %s208, 1
          %s2097 = smul.addr %s2096, 8
          %s2098 = scalar_lea.vmem [#allocation2], %s2097
          %2099 = dma.done %s2095, 128
        $region60: #{_run_model.1} parent=55 // pred_fallthru
          _
      $region56: #{_run_model.1} parent=5 // pred_fallthru
        _
    $region6: #{_run_model.1} parent=1 // loop_footer
      %s20 = sadd.s32 1, %s16
    $region7: #{_run_model.1} parent=1 // loop_footer_branch
      %15 = sbr.rel target = $region3
    $region8: #{_run_model.1} parent=1 // loop_exit
      _
    %2100 = vsyncpa [#allocation3], 1
    %s2101 = scalar_lea.sflag [#allocation3], 1
    %2102 = vsyncpa %s2101, 1

</llo_original>
